<compile_context>
chip_gen: v6e
topology: v6e:2x2x1
jax: 0.10.0
libtpu: 0.0.40
codegen_flags: <defaults>
</compile_context>

<pallas_src>
import functools

import jax
import jax.numpy as jnp
from jax import lax
from jax.experimental import pallas as pl
from jax.experimental.pallas import tpu as pltpu


# ----------------------------------------------------------------------------
# in-kernel math helpers
# ----------------------------------------------------------------------------
def _gelu(x):
    # tanh-approx GELU (one EUP tanh + a few VPU fmas); ~1e-3 vs. exact erf,
    # which the perf review accepted for all three call sites.
    c = 0.7978845608028654  # sqrt(2/pi)
    return 0.5 * x * (1.0 + jnp.tanh(c * (x + 0.044715 * (x * x * x))))


# ----------------------------------------------------------------------------
# Pallas kernel: (folded decoder) -> spectral bases -> filter_encoder ->
#                edge_softmax -> message passing -> residual conv_ffn
# One grid step == batch_tile graphs.  All math f32.
# ----------------------------------------------------------------------------
def _specformer_kernel(length_ref,
                       eig_ref, u_ref, ut_ref, nf_ref,
                       wg_ref, bg_ref, bias_edge_ref, w2big_ref, b2t_ref,
                       wp_ref, bp_ref, wc1_ref, bc1_ref, wc2_ref, bc2_ref,
                       out_ref, *, n_nodes, batch_tile):
    f32 = jnp.float32
    N = n_nodes
    Bt = batch_tile
    D = eig_ref.shape[2]
    ND = N * D
    g = pl.program_id(0)

    # ---- node-validity masks from SMEM lengths (iota + compare, no DMA) -----
    def valid_mask(shape, graph_axis, node_axis):
        gi = lax.broadcasted_iota(jnp.int32, shape, graph_axis)
        ni = lax.broadcasted_iota(jnp.int32, shape, node_axis)
        lens = jnp.zeros(shape, jnp.int32)
        for b in range(Bt):  # Bt is capped; scalar SMEM reads + tiny selects
            lens = jnp.where(gi == b, length_ref[g * Bt + b], lens)
        return ni < lens

    valid_src = valid_mask((Bt, 1, N, 1), 0, 2)            # src-node validity
    valid_col = valid_mask((Bt, N, 1), 0, 1).astype(f32)   # dst-node validity

    eig3 = eig_ref[...]              # (Bt, N, D)  post cross-talk eig encodings
    u3 = u_ref[...]                  # (Bt, N, N)  U[b, i, k]
    ut3 = ut_ref[...]                # (Bt, N, N)  U^T[b, k, j]
    nf3 = nf_ref[...]                # (Bt, N, D)  post cross-talk node features

    # Leading-dim folds are layout preserving (N is a multiple of 8 sublanes).
    eig2 = eig3.reshape(Bt * N, D)
    nf2 = nf3.reshape(Bt * N, D)

    wg, bg = wg_ref[...], bg_ref[...]
    bias_edge = bias_edge_ref[...]                           # (N, N*D)
    w2big, b2t = w2big_ref[...], b2t_ref[...]                # (N*D, N*D), (1, N*D)
    wp, bp = wp_ref[...], bp_ref[...]
    wc1, bc1 = wc1_ref[...], bc1_ref[...]
    wc2, bc2 = wc2_ref[...], bc2_ref[...]

    # ---- per-node linears (decoder folded into filter_encoder head rows) ----
    gk = jnp.dot(eig2, wg, preferred_element_type=f32) + bg        # G[b,k,:]
    pre_nf = _gelu(jnp.dot(nf2, wp, preferred_element_type=f32) + bp)
    g3 = gk.reshape(Bt, N, D)
    pre_nf4 = pre_nf.reshape(Bt, 1, N, D)     # broadcast over the dst axis later

    # ---- spectral reconstruction, lane-dense over (src j, feat d) -----------
    #   T[b,k,j*D+d] = U[b,j,k] * G[b,k,d];   S = U @ T   (batched MXU matmul)
    t3 = (ut3[:, :, :, None] * g3[:, :, None, :]).reshape(Bt, N, ND)
    s3 = jnp.einsum('bik,bkm->bim', u3, t3, preferred_element_type=f32)

    # ---- filter_encoder on the edge stack (BN folded, eval), lane-dense -----
    h1 = _gelu(s3 + bias_edge[None])                               # (Bt, N, N*D)
    bases2 = _gelu(jnp.dot(h1.reshape(Bt * N, ND), w2big,
                           preferred_element_type=f32) + b2t)      # (Bt*N, N*D)
    bases4 = bases2.reshape(Bt, N, N, D)                           # (b, dst, src, d)

    # ---- edge softmax over valid sources + message passing (fused) ----------
    # Single mask (on the logits); masked columns then underflow to 0 in exp.
    logits = jnp.where(valid_src, bases4, f32(-1e30))
    mx = jnp.max(logits, axis=2, keepdims=True)                    # (Bt, N, 1, D)
    p = jnp.exp(logits - mx)                                       # (Bt, N, N, D)
    den = jnp.sum(p, axis=2)                                       # (Bt, N, D)
    num = jnp.sum(p * pre_nf4, axis=2)                             # (Bt, N, D)
    # reciprocal on the small tensor; padded dst rows are zeroed by valid_col.
    y3 = num * pl.reciprocal(jnp.maximum(den, 1e-20)) * valid_col

    # ---- residual + conv_ffn (BN folded, eval; dropouts = identity) ---------
    nf1 = nf2 + y3.reshape(Bt * N, D)
    c1 = jnp.maximum(jnp.dot(nf1, wc1, preferred_element_type=f32) + bc1, 0.0)
    c2 = jnp.maximum(jnp.dot(c1, wc2, preferred_element_type=f32) + bc2, 0.0)
    out_ref[...] = (nf1 + c2).reshape(Bt, N, D).astype(out_ref.dtype)


# ----------------------------------------------------------------------------
# Plain-JAX glue: cross-talk transformer (definition external to the reference)
# ----------------------------------------------------------------------------
def _layer_norm(x, g, b, eps=1e-5):
    m = jnp.mean(x, axis=-1, keepdims=True)
    v = jnp.mean((x - m) ** 2, axis=-1, keepdims=True)
    return (x - m) * jax.lax.rsqrt(v + eps) * g + b


def _cross_talk(eig, nf, key_padding_mask, p, num_heads):
    # TODO(synk): CrossTalkTransformer is not defined in the reference; implemented
    # here (plain JAX glue) as one joint self-attention + FFN block over
    # concat([eig, nf], axis=1) using the provided (B, 2N) key_padding_mask.
    B, N, D = eig.shape
    S = 2 * N
    hd = D // num_heads
    x = jnp.concatenate([eig, nf], axis=1)                                    # (B, 2N, D)

    def heads_of(w, b):
        return (x @ w + b).reshape(B, S, num_heads, hd).transpose(0, 2, 1, 3)

    q = heads_of(p["wq"], p["bq"])
    k = heads_of(p["wk"], p["bk"])
    v = heads_of(p["wv"], p["bv"])
    scores = jnp.einsum("bhqd,bhkd->bhqk", q, k) / jnp.sqrt(jnp.float32(hd))
    scores = jnp.where(key_padding_mask[:, None, None, :], -1e30, scores)
    attn = jax.nn.softmax(scores, axis=-1)
    o = jnp.einsum("bhqk,bhkd->bhqd", attn, v).transpose(0, 2, 1, 3).reshape(B, S, D)
    o = o @ p["wo"] + p["bo"]
    x = _layer_norm(x + o, p["ln1_g"], p["ln1_b"])
    f = jax.nn.gelu(x @ p["wf1"] + p["bf1"], approximate=False) @ p["wf2"] + p["bf2"]
    x = _layer_norm(x + f, p["ln2_g"], p["ln2_b"])
    return x[:, :N, :], x[:, N:, :]


# ----------------------------------------------------------------------------
# Generation-aware tiling
# ----------------------------------------------------------------------------
def _vmem_budget_and_limit():
    # v5e/v6e: 128 MiB physical VMEM per TC; v7x: 64 MiB.  Best-effort query,
    # conservative (v7x) fallback.
    try:
        cap = int(pltpu.get_tpu_info().vmem_capacity_bytes)
    except Exception:
        cap = 64 * 1024 * 1024
    budget = min(int(cap * 0.4), 48 * 1024 * 1024)   # headroom for weights + I/O buffers
    limit = min(cap // 2, 64 * 1024 * 1024)          # scoped VMEM limit, within physical
    return budget, limit


def _num_tensorcores():
    try:
        return max(1, int(getattr(jax.devices()[0], "num_cores", 1)))
    except Exception:
        return 1


def _pick_batch_tile(B, n_nodes, dim, vmem_budget):
    # Per-graph live footprint: ~10 x (N, N*D)/(N, N, D) f32 edge-stack
    # intermediates plus small node tensors.  Cap the tile at 64 graphs so the
    # straight-line body's live ranges (and the unrolled mask build) stay bounded.
    per_graph = 10 * n_nodes * n_nodes * dim * 4 + 16 * n_nodes * dim * 4
    max_bt = max(1, min(vmem_budget // per_graph, 64))
    divs = [c for c in range(1, B + 1) if B % c == 0 and c <= max_bt]
    bt = max(divs)                        # single-TC chips: fewest grid steps win
    n_cores = _num_tensorcores()
    if n_cores > 1:                       # multi-TC (v7x): keep work for every core
        multi = [c for c in divs if B // c >= min(n_cores, B)]
        if multi:
            bt = max(multi)
    return bt


# ----------------------------------------------------------------------------
# Forward wrapper
# ----------------------------------------------------------------------------
def modified_specformer_forward(params, eig, e, u, nf, length, *, batch_tile=None):
    del e  # only its shape (B, N) is used in the reference (identity construction)
    B, N, D = eig.shape
    H = params["wd"].shape[1]
    if N % 8 != 0:
        raise ValueError("kernel assumes N (max #nodes) is a multiple of the 8-row sublane tile")

    budget, vmem_limit = _vmem_budget_and_limit()
    bt = batch_tile if batch_tile is not None else _pick_batch_tile(B, N, D, budget)
    assert B % bt == 0, "batch must be divisible by the batch tile"

    # length_to_mask -> key-padding mask for the cross-talk transformer
    # (nf half left unmasked, matching the reference's torch.full_like(..., False)).
    ar = jnp.arange(N)
    mask1d = ar[None, :] >= length[:, None]                                   # (B, N) True = pad
    e_mask = jnp.concatenate([mask1d, jnp.zeros_like(mask1d)], axis=1)        # (B, 2N)
    eig2, nf2 = _cross_talk(eig, nf, e_mask, params["ct"], num_heads=H)

    ut = jnp.swapaxes(u, 1, 2)                                                # u^T, as in the reference

    # ---- host-side weight folding (loop-invariant; BN already folded, eval) --
    w1 = params["w1"]
    w1_id, w1_heads = w1[0:1, :], w1[1:1 + H, :]
    wg = params["wd"] @ w1_heads                    # decoder folded into head rows: (D, D)
    bg = params["bd"] @ w1_heads                    # (1, D)
    eye3 = jnp.eye(N, dtype=jnp.float32)[:, :, None]
    bias_edge = (eye3 * w1_id[None, :, :] + params["b1"][None, :, :]).reshape(N, N * D)
    w2big = jnp.kron(jnp.eye(N, dtype=jnp.float32), params["w2"])             # block-diag (N*D, N*D)
    b2t = jnp.tile(params["b2"], (1, N))                                      # (1, N*D)

    weights = [wg, bg, bias_edge, w2big, b2t,
               params["wp"], params["bp"],
               params["wc1"], params["bc1"],
               params["wc2"], params["bc2"]]

    bt_spec = lambda shape: pl.BlockSpec((bt,) + shape, lambda g, L: (g, 0, 0))
    w_spec = lambda w: pl.BlockSpec(w.shape, lambda g, L: (0, 0))

    grid_spec = pltpu.PrefetchScalarGridSpec(
        num_scalar_prefetch=1,                      # per-graph lengths -> SMEM
        grid=(B // bt,),
        in_specs=[bt_spec((N, D)),                  # eig (post cross-talk)
                  bt_spec((N, N)),                  # u
                  bt_spec((N, N)),                  # u^T
                  bt_spec((N, D))]                  # nf  (post cross-talk)
                 + [w_spec(w) for w in weights],
        out_specs=pl.BlockSpec((bt, N, D), lambda g, L: (g, 0, 0)),
    )

    kernel = functools.partial(_specformer_kernel, n_nodes=N, batch_tile=bt)
    nf_out = pl.pallas_call(
        kernel,
        out_shape=jax.ShapeDtypeStruct((B, N, D), jnp.float32),
        grid_spec=grid_spec,
        compiler_params=pltpu.CompilerParams(
            dimension_semantics=("parallel",),
            vmem_limit_bytes=vmem_limit),
    )(length.astype(jnp.int32), eig2, u, ut, nf2, *weights)

    # reference returns (nf_flat.reshape_as(nf), eig)
    return nf_out, eig2


# ----------------------------------------------------------------------------
# Deterministic parameter construction (synthetic weights, eval-mode BN folded)
# ----------------------------------------------------------------------------
def _init_params(key, D, H):
    kit = iter(jax.random.split(key, 64))

    def dense(fin, fout):
        w = jax.random.normal(next(kit), (fin, fout), jnp.float32) / jnp.sqrt(jnp.float32(fin))
        b = 0.02 * jax.random.normal(next(kit), (1, fout), jnp.float32)
        return w, b

    def bn_stats(c):
        gamma = 1.0 + 0.1 * jax.random.normal(next(kit), (c,), jnp.float32)
        beta = 0.05 * jax.random.normal(next(kit), (c,), jnp.float32)
        mean = 0.05 * jax.random.normal(next(kit), (c,), jnp.float32)
        var = 0.5 + jax.random.uniform(next(kit), (c,), jnp.float32)
        return gamma, beta, mean, var

    def fold_bn(w, b, stats, eps=1e-5):
        gamma, beta, mean, var = stats
        scale = gamma / jnp.sqrt(var + eps)
        return w * scale[None, :], (b - mean[None, :]) * scale[None, :] + beta[None, :]

    params = {}
    params["wd"], params["bd"] = dense(D, H)                     # decoder Linear(D, H)
    w1, b1 = dense(H + 1, D)                                     # filter_encoder
    params["w1"], params["b1"] = fold_bn(w1, b1, bn_stats(D))
    w2, b2 = dense(D, D)
    params["w2"], params["b2"] = fold_bn(w2, b2, bn_stats(D))
    params["wp"], params["bp"] = dense(D, D)                     # pre_conv_ffn
    wc1, bc1 = dense(D, D)                                       # conv_ffn
    params["wc1"], params["bc1"] = fold_bn(wc1, bc1, bn_stats(D))
    wc2, bc2 = dense(D, D)
    params["wc2"], params["bc2"] = fold_bn(wc2, bc2, bn_stats(D))

    ct = {}
    for nm in ("wq", "wk", "wv", "wo", "wf1", "wf2"):
        w, b = dense(D, D)
        ct[nm] = w
        ct["b" + nm[1:]] = b[0]
    ct["ln1_g"] = jnp.ones((D,), jnp.float32)
    ct["ln1_b"] = jnp.zeros((D,), jnp.float32)
    ct["ln2_g"] = jnp.ones((D,), jnp.float32)
    ct["ln2_b"] = jnp.zeros((D,), jnp.float32)
    params["ct"] = ct
    return params


if __name__ == "__main__":
    B, N, D, H = 4, 8, 32, 4                  # batch, max #nodes, embed_dim, num heads
    key = jax.random.PRNGKey(0)
    kp, ke, kev, ku, kn = jax.random.split(key, 5)

    params = _init_params(kp, D, H)
    eig = jax.random.normal(ke, (B, N, D), jnp.float32)   # eigenvalue encodings
    e = jax.random.normal(kev, (B, N), jnp.float32)       # eigenvalues (shape only)
    u = jax.random.normal(ku, (B, N, N), jnp.float32)     # eigenvectors
    nf = jax.random.normal(kn, (B, N, D), jnp.float32)    # node features
    length = jnp.array([N, 5, 3, N], dtype=jnp.int32)     # valid nodes per graph

    fwd = jax.jit(modified_specformer_forward)
    nf_out, eig_out = fwd(params, eig, e, u, nf, length)
    jax.block_until_ready((nf_out, eig_out))
    assert nf_out.shape == (B, N, D) and eig_out.shape == (B, N, D)
    assert bool(jnp.all(jnp.isfinite(nf_out))) and bool(jnp.all(jnp.isfinite(eig_out)))
    print("KERNEL_OK")
</pallas_src>

<mosaic_0001>
module attributes {stable_mosaic.version = 11 : i64} {
  func.func @_specformer_kernel(%arg0: i32, %arg1: memref<4xi32, #tpu.memory_space<smem>>, %arg2: memref<4x8x32xf32, #tpu.memory_space<vmem>>, %arg3: memref<4x8x8xf32, #tpu.memory_space<vmem>>, %arg4: memref<4x8x8xf32, #tpu.memory_space<vmem>>, %arg5: memref<4x8x32xf32, #tpu.memory_space<vmem>>, %arg6: memref<32x32xf32, #tpu.memory_space<vmem>>, %arg7: memref<1x32xf32, #tpu.memory_space<vmem>>, %arg8: memref<8x256xf32, #tpu.memory_space<vmem>>, %arg9: memref<256x256xf32, #tpu.memory_space<vmem>>, %arg10: memref<1x256xf32, #tpu.memory_space<vmem>>, %arg11: memref<32x32xf32, #tpu.memory_space<vmem>>, %arg12: memref<1x32xf32, #tpu.memory_space<vmem>>, %arg13: memref<32x32xf32, #tpu.memory_space<vmem>>, %arg14: memref<1x32xf32, #tpu.memory_space<vmem>>, %arg15: memref<32x32xf32, #tpu.memory_space<vmem>>, %arg16: memref<1x32xf32, #tpu.memory_space<vmem>>, %arg17: memref<4x8x32xf32, #tpu.memory_space<vmem>>) attributes {dimension_semantics = [#tpu.dimension_semantics<parallel>], iteration_bounds = array<i64: 1>, scalar_prefetch = 1 : i64, scratch_operands = 0 : i64, tpu.core_type = #tpu.core_type<tc>, window_params = [{transform_indices = @transform_0, window_bounds = array<i64: 4, 8, 32>}, {transform_indices = @transform_1, window_bounds = array<i64: 4, 8, 8>}, {transform_indices = @transform_2, window_bounds = array<i64: 4, 8, 8>}, {transform_indices = @transform_3, window_bounds = array<i64: 4, 8, 32>}, {pipeline_mode = #tpu.pipeline_mode<synchronous>, transform_indices = @transform_4, window_bounds = array<i64: 32, 32>}, {pipeline_mode = #tpu.pipeline_mode<synchronous>, transform_indices = @transform_5, window_bounds = array<i64: 1, 32>}, {pipeline_mode = #tpu.pipeline_mode<synchronous>, transform_indices = @transform_6, window_bounds = array<i64: 8, 256>}, {pipeline_mode = #tpu.pipeline_mode<synchronous>, transform_indices = @transform_7, window_bounds = array<i64: 256, 256>}, {pipeline_mode = #tpu.pipeline_mode<synchronous>, transform_indices = @transform_8, window_bounds = array<i64: 1, 256>}, {pipeline_mode = #tpu.pipeline_mode<synchronous>, transform_indices = @transform_9, window_bounds = array<i64: 32, 32>}, {pipeline_mode = #tpu.pipeline_mode<synchronous>, transform_indices = @transform_10, window_bounds = array<i64: 1, 32>}, {pipeline_mode = #tpu.pipeline_mode<synchronous>, transform_indices = @transform_11, window_bounds = array<i64: 32, 32>}, {pipeline_mode = #tpu.pipeline_mode<synchronous>, transform_indices = @transform_12, window_bounds = array<i64: 1, 32>}, {pipeline_mode = #tpu.pipeline_mode<synchronous>, transform_indices = @transform_13, window_bounds = array<i64: 32, 32>}, {pipeline_mode = #tpu.pipeline_mode<synchronous>, transform_indices = @transform_14, window_bounds = array<i64: 1, 32>}, {transform_indices = @transform_15, window_bounds = array<i64: 4, 8, 32>}]} {
    %0 = tpu.iota {dimensions = array<i32: 0>} : vector<4x1x8x1xi32>
    %1 = tpu.iota {dimensions = array<i32: 2>} : vector<4x1x8x1xi32>
    %c0_i32 = arith.constant 0 : i32
    %2 = vector.broadcast %c0_i32 : i32 to vector<4x1x8x1xi32>
    %c0_i32_0 = arith.constant 0 : i32
    %3 = vector.broadcast %c0_i32_0 : i32 to vector<4x1x8x1xi32>
    %4 = arith.cmpi eq, %0, %3 : vector<4x1x8x1xi32>
    %c4_i32 = arith.constant 4 : i32
    %5 = arith.muli %arg0, %c4_i32 : i32
    %c0_i32_1 = arith.constant 0 : i32
    %6 = arith.addi %5, %c0_i32_1 : i32
    %7 = arith.index_cast %6 : i32 to index
    %8 = memref.load %arg1[%7] : memref<4xi32, #tpu.memory_space<smem>>
    %9 = vector.broadcast %8 : i32 to vector<4x1x8x1xi32>
    %10 = arith.select %4, %9, %2 : vector<4x1x8x1xi1>, vector<4x1x8x1xi32>
    %c1_i32 = arith.constant 1 : i32
    %11 = vector.broadcast %c1_i32 : i32 to vector<4x1x8x1xi32>
    %12 = arith.cmpi eq, %0, %11 : vector<4x1x8x1xi32>
    %c4_i32_2 = arith.constant 4 : i32
    %13 = arith.muli %arg0, %c4_i32_2 : i32
    %c1_i32_3 = arith.constant 1 : i32
    %14 = arith.addi %13, %c1_i32_3 : i32
    %15 = arith.index_cast %14 : i32 to index
    %16 = memref.load %arg1[%15] : memref<4xi32, #tpu.memory_space<smem>>
    %17 = vector.broadcast %16 : i32 to vector<4x1x8x1xi32>
    %18 = arith.select %12, %17, %10 : vector<4x1x8x1xi1>, vector<4x1x8x1xi32>
    %c2_i32 = arith.constant 2 : i32
    %19 = vector.broadcast %c2_i32 : i32 to vector<4x1x8x1xi32>
    %20 = arith.cmpi eq, %0, %19 : vector<4x1x8x1xi32>
    %c4_i32_4 = arith.constant 4 : i32
    %21 = arith.muli %arg0, %c4_i32_4 : i32
    %c2_i32_5 = arith.constant 2 : i32
    %22 = arith.addi %21, %c2_i32_5 : i32
    %23 = arith.index_cast %22 : i32 to index
    %24 = memref.load %arg1[%23] : memref<4xi32, #tpu.memory_space<smem>>
    %25 = vector.broadcast %24 : i32 to vector<4x1x8x1xi32>
    %26 = arith.select %20, %25, %18 : vector<4x1x8x1xi1>, vector<4x1x8x1xi32>
    %c3_i32 = arith.constant 3 : i32
    %27 = vector.broadcast %c3_i32 : i32 to vector<4x1x8x1xi32>
    %28 = arith.cmpi eq, %0, %27 : vector<4x1x8x1xi32>
    %c4_i32_6 = arith.constant 4 : i32
    %29 = arith.muli %arg0, %c4_i32_6 : i32
    %c3_i32_7 = arith.constant 3 : i32
    %30 = arith.addi %29, %c3_i32_7 : i32
    %31 = arith.index_cast %30 : i32 to index
    %32 = memref.load %arg1[%31] : memref<4xi32, #tpu.memory_space<smem>>
    %33 = vector.broadcast %32 : i32 to vector<4x1x8x1xi32>
    %34 = arith.select %28, %33, %26 : vector<4x1x8x1xi1>, vector<4x1x8x1xi32>
    %35 = arith.cmpi slt, %1, %34 : vector<4x1x8x1xi32>
    %36 = tpu.iota {dimensions = array<i32: 0>} : vector<4x8x1xi32>
    %37 = tpu.iota {dimensions = array<i32: 1>} : vector<4x8x1xi32>
    %c0_i32_8 = arith.constant 0 : i32
    %38 = vector.broadcast %c0_i32_8 : i32 to vector<4x8x1xi32>
    %c0_i32_9 = arith.constant 0 : i32
    %39 = vector.broadcast %c0_i32_9 : i32 to vector<4x8x1xi32>
    %40 = arith.cmpi eq, %36, %39 : vector<4x8x1xi32>
    %c4_i32_10 = arith.constant 4 : i32
    %41 = arith.muli %arg0, %c4_i32_10 : i32
    %c0_i32_11 = arith.constant 0 : i32
    %42 = arith.addi %41, %c0_i32_11 : i32
    %43 = arith.index_cast %42 : i32 to index
    %44 = memref.load %arg1[%43] : memref<4xi32, #tpu.memory_space<smem>>
    %45 = vector.broadcast %44 : i32 to vector<4x8x1xi32>
    %46 = arith.select %40, %45, %38 : vector<4x8x1xi1>, vector<4x8x1xi32>
    %c1_i32_12 = arith.constant 1 : i32
    %47 = vector.broadcast %c1_i32_12 : i32 to vector<4x8x1xi32>
    %48 = arith.cmpi eq, %36, %47 : vector<4x8x1xi32>
    %c4_i32_13 = arith.constant 4 : i32
    %49 = arith.muli %arg0, %c4_i32_13 : i32
    %c1_i32_14 = arith.constant 1 : i32
    %50 = arith.addi %49, %c1_i32_14 : i32
    %51 = arith.index_cast %50 : i32 to index
    %52 = memref.load %arg1[%51] : memref<4xi32, #tpu.memory_space<smem>>
    %53 = vector.broadcast %52 : i32 to vector<4x8x1xi32>
    %54 = arith.select %48, %53, %46 : vector<4x8x1xi1>, vector<4x8x1xi32>
    %c2_i32_15 = arith.constant 2 : i32
    %55 = vector.broadcast %c2_i32_15 : i32 to vector<4x8x1xi32>
    %56 = arith.cmpi eq, %36, %55 : vector<4x8x1xi32>
    %c4_i32_16 = arith.constant 4 : i32
    %57 = arith.muli %arg0, %c4_i32_16 : i32
    %c2_i32_17 = arith.constant 2 : i32
    %58 = arith.addi %57, %c2_i32_17 : i32
    %59 = arith.index_cast %58 : i32 to index
    %60 = memref.load %arg1[%59] : memref<4xi32, #tpu.memory_space<smem>>
    %61 = vector.broadcast %60 : i32 to vector<4x8x1xi32>
    %62 = arith.select %56, %61, %54 : vector<4x8x1xi1>, vector<4x8x1xi32>
    %c3_i32_18 = arith.constant 3 : i32
    %63 = vector.broadcast %c3_i32_18 : i32 to vector<4x8x1xi32>
    %64 = arith.cmpi eq, %36, %63 : vector<4x8x1xi32>
    %c4_i32_19 = arith.constant 4 : i32
    %65 = arith.muli %arg0, %c4_i32_19 : i32
    %c3_i32_20 = arith.constant 3 : i32
    %66 = arith.addi %65, %c3_i32_20 : i32
    %67 = arith.index_cast %66 : i32 to index
    %68 = memref.load %arg1[%67] : memref<4xi32, #tpu.memory_space<smem>>
    %69 = vector.broadcast %68 : i32 to vector<4x8x1xi32>
    %70 = arith.select %64, %69, %62 : vector<4x8x1xi1>, vector<4x8x1xi32>
    %71 = arith.cmpi slt, %37, %70 : vector<4x8x1xi32>
    %72 = arith.extui %71 : vector<4x8x1xi1> to vector<4x8x1xi32>
    %73 = arith.sitofp %72 : vector<4x8x1xi32> to vector<4x8x1xf32>
    %c0 = arith.constant 0 : index
    %c0_21 = arith.constant 0 : index
    %c0_22 = arith.constant 0 : index
    %74 = vector.load %arg2[%c0, %c0_21, %c0_22] : memref<4x8x32xf32, #tpu.memory_space<vmem>>, vector<4x8x32xf32>
    %c0_23 = arith.constant 0 : index
    %c0_24 = arith.constant 0 : index
    %c0_25 = arith.constant 0 : index
    %75 = vector.load %arg3[%c0_23, %c0_24, %c0_25] : memref<4x8x8xf32, #tpu.memory_space<vmem>>, vector<4x8x8xf32>
    %c0_26 = arith.constant 0 : index
    %c0_27 = arith.constant 0 : index
    %c0_28 = arith.constant 0 : index
    %76 = vector.load %arg4[%c0_26, %c0_27, %c0_28] : memref<4x8x8xf32, #tpu.memory_space<vmem>>, vector<4x8x8xf32>
    %c0_29 = arith.constant 0 : index
    %c0_30 = arith.constant 0 : index
    %c0_31 = arith.constant 0 : index
    %77 = vector.load %arg5[%c0_29, %c0_30, %c0_31] : memref<4x8x32xf32, #tpu.memory_space<vmem>>, vector<4x8x32xf32>
    %78 = vector.shape_cast %74 : vector<4x8x32xf32> to vector<32x32xf32>
    %79 = vector.shape_cast %77 : vector<4x8x32xf32> to vector<32x32xf32>
    %c0_32 = arith.constant 0 : index
    %c0_33 = arith.constant 0 : index
    %80 = vector.load %arg6[%c0_32, %c0_33] : memref<32x32xf32, #tpu.memory_space<vmem>>, vector<32x32xf32>
    %c0_34 = arith.constant 0 : index
    %c0_35 = arith.constant 0 : index
    %81 = vector.load %arg7[%c0_34, %c0_35] : memref<1x32xf32, #tpu.memory_space<vmem>>, vector<1x32xf32>
    %c0_36 = arith.constant 0 : index
    %c0_37 = arith.constant 0 : index
    %82 = vector.load %arg8[%c0_36, %c0_37] : memref<8x256xf32, #tpu.memory_space<vmem>>, vector<8x256xf32>
    %c0_38 = arith.constant 0 : index
    %c0_39 = arith.constant 0 : index
    %83 = vector.load %arg9[%c0_38, %c0_39] : memref<256x256xf32, #tpu.memory_space<vmem>>, vector<256x256xf32>
    %c0_40 = arith.constant 0 : index
    %c0_41 = arith.constant 0 : index
    %84 = vector.load %arg10[%c0_40, %c0_41] : memref<1x256xf32, #tpu.memory_space<vmem>>, vector<1x256xf32>
    %c0_42 = arith.constant 0 : index
    %c0_43 = arith.constant 0 : index
    %85 = vector.load %arg11[%c0_42, %c0_43] : memref<32x32xf32, #tpu.memory_space<vmem>>, vector<32x32xf32>
    %c0_44 = arith.constant 0 : index
    %c0_45 = arith.constant 0 : index
    %86 = vector.load %arg12[%c0_44, %c0_45] : memref<1x32xf32, #tpu.memory_space<vmem>>, vector<1x32xf32>
    %c0_46 = arith.constant 0 : index
    %c0_47 = arith.constant 0 : index
    %87 = vector.load %arg13[%c0_46, %c0_47] : memref<32x32xf32, #tpu.memory_space<vmem>>, vector<32x32xf32>
    %c0_48 = arith.constant 0 : index
    %c0_49 = arith.constant 0 : index
    %88 = vector.load %arg14[%c0_48, %c0_49] : memref<1x32xf32, #tpu.memory_space<vmem>>, vector<1x32xf32>
    %c0_50 = arith.constant 0 : index
    %c0_51 = arith.constant 0 : index
    %89 = vector.load %arg15[%c0_50, %c0_51] : memref<32x32xf32, #tpu.memory_space<vmem>>, vector<32x32xf32>
    %c0_52 = arith.constant 0 : index
    %c0_53 = arith.constant 0 : index
    %90 = vector.load %arg16[%c0_52, %c0_53] : memref<1x32xf32, #tpu.memory_space<vmem>>, vector<1x32xf32>
    %cst = arith.constant dense<0.000000e+00> : vector<32x32xf32>
    %91 = tpu.matmul %78, %80, %cst {dimension_numbers = #tpu.dot_dimension_numbers<[1], [0], [0], [1], [0, 0, 1, 1], [], []>} : vector<32x32xf32>, vector<32x32xf32>, vector<32x32xf32> -> vector<32x32xf32>
    %92 = vector.broadcast %81 : vector<1x32xf32> to vector<32x32xf32>
    %93 = arith.addf %91, %92 : vector<32x32xf32>
    %cst_54 = arith.constant dense<0.000000e+00> : vector<32x32xf32>
    %94 = tpu.matmul %79, %85, %cst_54 {dimension_numbers = #tpu.dot_dimension_numbers<[1], [0], [0], [1], [0, 0, 1, 1], [], []>} : vector<32x32xf32>, vector<32x32xf32>, vector<32x32xf32> -> vector<32x32xf32>
    %95 = vector.broadcast %86 : vector<1x32xf32> to vector<32x32xf32>
    %96 = arith.addf %94, %95 : vector<32x32xf32>
    %cst_55 = arith.constant 5.000000e-01 : f32
    %97 = vector.broadcast %cst_55 : f32 to vector<32x32xf32>
    %98 = arith.mulf %97, %96 : vector<32x32xf32>
    %99 = arith.mulf %96, %96 : vector<32x32xf32>
    %100 = arith.mulf %99, %96 : vector<32x32xf32>
    %cst_56 = arith.constant 4.471500e-02 : f32
    %101 = vector.broadcast %cst_56 : f32 to vector<32x32xf32>
    %102 = arith.mulf %101, %100 : vector<32x32xf32>
    %103 = arith.addf %96, %102 : vector<32x32xf32>
    %cst_57 = arith.constant 0.797884583 : f32
    %104 = vector.broadcast %cst_57 : f32 to vector<32x32xf32>
    %105 = arith.mulf %104, %103 : vector<32x32xf32>
    %106 = math.tanh %105 : vector<32x32xf32>
    %cst_58 = arith.constant 1.000000e+00 : f32
    %107 = vector.broadcast %cst_58 : f32 to vector<32x32xf32>
    %108 = arith.addf %107, %106 : vector<32x32xf32>
    %109 = arith.mulf %98, %108 : vector<32x32xf32>
    %110 = vector.shape_cast %93 : vector<32x32xf32> to vector<4x8x32xf32>
    %111 = vector.shape_cast %109 : vector<32x32xf32> to vector<4x1x8x32xf32>
    %112 = vector.shape_cast %76 : vector<4x8x8xf32> to vector<4x8x8x1xf32>
    %113 = vector.shape_cast %110 : vector<4x8x32xf32> to vector<4x8x1x32xf32>
    %114 = vector.broadcast %112 : vector<4x8x8x1xf32> to vector<4x8x8x32xf32>
    %115 = vector.broadcast %113 : vector<4x8x1x32xf32> to vector<4x8x8x32xf32>
    %116 = arith.mulf %114, %115 : vector<4x8x8x32xf32>
    %117 = vector.shape_cast %116 : vector<4x8x8x32xf32> to vector<4x8x256xf32>
    "tpu.trace_start"() <{level = 10 : i32, message = "bik,bkm->bim"}> : () -> ()
    %cst_59 = arith.constant dense<0.000000e+00> : vector<4x8x256xf32>
    %118 = tpu.matmul %75, %117, %cst_59 {dimension_numbers = #tpu.dot_dimension_numbers<[2], [1], [1], [2], [0, 0, 0, 1, 1, 2], [0], [0]>} : vector<4x8x8xf32>, vector<4x8x256xf32>, vector<4x8x256xf32> -> vector<4x8x256xf32>
    "tpu.trace_stop"() : () -> ()
    %119 = vector.shape_cast %82 : vector<8x256xf32> to vector<1x8x256xf32>
    %120 = vector.broadcast %119 : vector<1x8x256xf32> to vector<4x8x256xf32>
    %121 = arith.addf %118, %120 : vector<4x8x256xf32>
    %cst_60 = arith.constant 5.000000e-01 : f32
    %122 = vector.broadcast %cst_60 : f32 to vector<4x8x256xf32>
    %123 = arith.mulf %122, %121 : vector<4x8x256xf32>
    %124 = arith.mulf %121, %121 : vector<4x8x256xf32>
    %125 = arith.mulf %124, %121 : vector<4x8x256xf32>
    %cst_61 = arith.constant 4.471500e-02 : f32
    %126 = vector.broadcast %cst_61 : f32 to vector<4x8x256xf32>
    %127 = arith.mulf %126, %125 : vector<4x8x256xf32>
    %128 = arith.addf %121, %127 : vector<4x8x256xf32>
    %cst_62 = arith.constant 0.797884583 : f32
    %129 = vector.broadcast %cst_62 : f32 to vector<4x8x256xf32>
    %130 = arith.mulf %129, %128 : vector<4x8x256xf32>
    %131 = math.tanh %130 : vector<4x8x256xf32>
    %cst_63 = arith.constant 1.000000e+00 : f32
    %132 = vector.broadcast %cst_63 : f32 to vector<4x8x256xf32>
    %133 = arith.addf %132, %131 : vector<4x8x256xf32>
    %134 = arith.mulf %123, %133 : vector<4x8x256xf32>
    %135 = vector.shape_cast %134 : vector<4x8x256xf32> to vector<32x256xf32>
    %cst_64 = arith.constant dense<0.000000e+00> : vector<32x256xf32>
    %136 = tpu.matmul %135, %83, %cst_64 {dimension_numbers = #tpu.dot_dimension_numbers<[1], [0], [0], [1], [0, 0, 1, 1], [], []>} : vector<32x256xf32>, vector<256x256xf32>, vector<32x256xf32> -> vector<32x256xf32>
    %137 = vector.broadcast %84 : vector<1x256xf32> to vector<32x256xf32>
    %138 = arith.addf %136, %137 : vector<32x256xf32>
    %cst_65 = arith.constant 5.000000e-01 : f32
    %139 = vector.broadcast %cst_65 : f32 to vector<32x256xf32>
    %140 = arith.mulf %139, %138 : vector<32x256xf32>
    %141 = arith.mulf %138, %138 : vector<32x256xf32>
    %142 = arith.mulf %141, %138 : vector<32x256xf32>
    %cst_66 = arith.constant 4.471500e-02 : f32
    %143 = vector.broadcast %cst_66 : f32 to vector<32x256xf32>
    %144 = arith.mulf %143, %142 : vector<32x256xf32>
    %145 = arith.addf %138, %144 : vector<32x256xf32>
    %cst_67 = arith.constant 0.797884583 : f32
    %146 = vector.broadcast %cst_67 : f32 to vector<32x256xf32>
    %147 = arith.mulf %146, %145 : vector<32x256xf32>
    %148 = math.tanh %147 : vector<32x256xf32>
    %cst_68 = arith.constant 1.000000e+00 : f32
    %149 = vector.broadcast %cst_68 : f32 to vector<32x256xf32>
    %150 = arith.addf %149, %148 : vector<32x256xf32>
    %151 = arith.mulf %140, %150 : vector<32x256xf32>
    %152 = vector.shape_cast %151 : vector<32x256xf32> to vector<4x8x8x32xf32>
    %cst_69 = arith.constant -1.000000e+30 : f32
    %153 = vector.shape_cast %35 : vector<4x1x8x1xi1> to vector<4x1x8x1xi1>
    %154 = vector.broadcast %153 : vector<4x1x8x1xi1> to vector<4x8x8x32xi1>
    %155 = vector.broadcast %cst_69 : f32 to vector<4x8x8x32xf32>
    %156 = arith.select %154, %152, %155 : vector<4x8x8x32xi1>, vector<4x8x8x32xf32>
    %cst_70 = arith.constant dense<0xFF800000> : vector<4x8x32xf32>
    %157 = vector.multi_reduction <maximumf>, %156, %cst_70 [2] : vector<4x8x8x32xf32> to vector<4x8x32xf32>
    %158 = vector.shape_cast %157 : vector<4x8x32xf32> to vector<4x8x1x32xf32>
    %159 = vector.broadcast %158 : vector<4x8x1x32xf32> to vector<4x8x8x32xf32>
    %160 = arith.subf %156, %159 : vector<4x8x8x32xf32>
    %161 = math.exp %160 : vector<4x8x8x32xf32>
    %cst_71 = arith.constant dense<0.000000e+00> : vector<4x8x32xf32>
    %162 = vector.multi_reduction <add>, %161, %cst_71 [2] : vector<4x8x8x32xf32> to vector<4x8x32xf32>
    %163 = vector.broadcast %111 : vector<4x1x8x32xf32> to vector<4x8x8x32xf32>
    %164 = arith.mulf %161, %163 : vector<4x8x8x32xf32>
    %cst_72 = arith.constant dense<0.000000e+00> : vector<4x8x32xf32>
    %165 = vector.multi_reduction <add>, %164, %cst_72 [2] : vector<4x8x8x32xf32> to vector<4x8x32xf32>
    %cst_73 = arith.constant 9.99999968E-21 : f32
    %166 = vector.broadcast %cst_73 : f32 to vector<4x8x32xf32>
    %167 = arith.maximumf %162, %166 : vector<4x8x32xf32>
    %168 = tpu.reciprocal %167 : vector<4x8x32xf32> -> vector<4x8x32xf32>
    %169 = arith.mulf %165, %168 : vector<4x8x32xf32>
    %170 = vector.broadcast %73 : vector<4x8x1xf32> to vector<4x8x32xf32>
    %171 = arith.mulf %169, %170 : vector<4x8x32xf32>
    %172 = vector.shape_cast %171 : vector<4x8x32xf32> to vector<32x32xf32>
    %173 = arith.addf %79, %172 : vector<32x32xf32>
    %cst_74 = arith.constant dense<0.000000e+00> : vector<32x32xf32>
    %174 = tpu.matmul %173, %87, %cst_74 {dimension_numbers = #tpu.dot_dimension_numbers<[1], [0], [0], [1], [0, 0, 1, 1], [], []>} : vector<32x32xf32>, vector<32x32xf32>, vector<32x32xf32> -> vector<32x32xf32>
    %175 = vector.broadcast %88 : vector<1x32xf32> to vector<32x32xf32>
    %176 = arith.addf %174, %175 : vector<32x32xf32>
    %cst_75 = arith.constant 0.000000e+00 : f32
    %177 = vector.broadcast %cst_75 : f32 to vector<32x32xf32>
    %178 = arith.maximumf %176, %177 : vector<32x32xf32>
    %cst_76 = arith.constant dense<0.000000e+00> : vector<32x32xf32>
    %179 = tpu.matmul %178, %89, %cst_76 {dimension_numbers = #tpu.dot_dimension_numbers<[1], [0], [0], [1], [0, 0, 1, 1], [], []>} : vector<32x32xf32>, vector<32x32xf32>, vector<32x32xf32> -> vector<32x32xf32>
    %180 = vector.broadcast %90 : vector<1x32xf32> to vector<32x32xf32>
    %181 = arith.addf %179, %180 : vector<32x32xf32>
    %cst_77 = arith.constant 0.000000e+00 : f32
    %182 = vector.broadcast %cst_77 : f32 to vector<32x32xf32>
    %183 = arith.maximumf %181, %182 : vector<32x32xf32>
    %184 = arith.addf %173, %183 : vector<32x32xf32>
    %185 = vector.shape_cast %184 : vector<32x32xf32> to vector<4x8x32xf32>
    %c0_78 = arith.constant 0 : index
    %c0_79 = arith.constant 0 : index
    %c0_80 = arith.constant 0 : index
    %186 = vector.load %arg17[%c0_78, %c0_79, %c0_80] : memref<4x8x32xf32, #tpu.memory_space<vmem>>, vector<4x8x32xf32>
    tpu.vector_store %arg17[%c0_78, %c0_79, %c0_80], %185 {strides = array<i32>} : memref<4x8x32xf32, #tpu.memory_space<vmem>>, vector<4x8x32xf32>,
    return
  }
  func.func @transform_0(%arg0: i32, %arg1: memref<4xi32, #tpu.memory_space<smem>>) -> (i32, i32, i32) {
    %c0_i32 = arith.constant 0 : i32
    %c0_i32_0 = arith.constant 0 : i32
    %c0_i32_1 = arith.constant 0 : i32
    return %arg0, %c0_i32, %c0_i32_0 : i32, i32, i32
  }
  func.func @transform_1(%arg0: i32, %arg1: memref<4xi32, #tpu.memory_space<smem>>) -> (i32, i32, i32) {
    %c0_i32 = arith.constant 0 : i32
    %c0_i32_0 = arith.constant 0 : i32
    %c0_i32_1 = arith.constant 0 : i32
    return %arg0, %c0_i32, %c0_i32_0 : i32, i32, i32
  }
  func.func @transform_2(%arg0: i32, %arg1: memref<4xi32, #tpu.memory_space<smem>>) -> (i32, i32, i32) {
    %c0_i32 = arith.constant 0 : i32
    %c0_i32_0 = arith.constant 0 : i32
    %c0_i32_1 = arith.constant 0 : i32
    return %arg0, %c0_i32, %c0_i32_0 : i32, i32, i32
  }
  func.func @transform_3(%arg0: i32, %arg1: memref<4xi32, #tpu.memory_space<smem>>) -> (i32, i32, i32) {
    %c0_i32 = arith.constant 0 : i32
    %c0_i32_0 = arith.constant 0 : i32
    %c0_i32_1 = arith.constant 0 : i32
    return %arg0, %c0_i32, %c0_i32_0 : i32, i32, i32
  }
  func.func @transform_4(%arg0: i32, %arg1: memref<4xi32, #tpu.memory_space<smem>>) -> (i32, i32) {
    %c0_i32 = arith.constant 0 : i32
    %c0_i32_0 = arith.constant 0 : i32
    %c0_i32_1 = arith.constant 0 : i32
    return %c0_i32, %c0_i32_0 : i32, i32
  }
  func.func @transform_5(%arg0: i32, %arg1: memref<4xi32, #tpu.memory_space<smem>>) -> (i32, i32) {
    %c0_i32 = arith.constant 0 : i32
    %c0_i32_0 = arith.constant 0 : i32
    %c0_i32_1 = arith.constant 0 : i32
    return %c0_i32, %c0_i32_0 : i32, i32
  }
  func.func @transform_6(%arg0: i32, %arg1: memref<4xi32, #tpu.memory_space<smem>>) -> (i32, i32) {
    %c0_i32 = arith.constant 0 : i32
    %c0_i32_0 = arith.constant 0 : i32
    %c0_i32_1 = arith.constant 0 : i32
    return %c0_i32, %c0_i32_0 : i32, i32
  }
  func.func @transform_7(%arg0: i32, %arg1: memref<4xi32, #tpu.memory_space<smem>>) -> (i32, i32) {
    %c0_i32 = arith.constant 0 : i32
    %c0_i32_0 = arith.constant 0 : i32
    %c0_i32_1 = arith.constant 0 : i32
    return %c0_i32, %c0_i32_0 : i32, i32
  }
  func.func @transform_8(%arg0: i32, %arg1: memref<4xi32, #tpu.memory_space<smem>>) -> (i32, i32) {
    %c0_i32 = arith.constant 0 : i32
    %c0_i32_0 = arith.constant 0 : i32
    %c0_i32_1 = arith.constant 0 : i32
    return %c0_i32, %c0_i32_0 : i32, i32
  }
  func.func @transform_9(%arg0: i32, %arg1: memref<4xi32, #tpu.memory_space<smem>>) -> (i32, i32) {
    %c0_i32 = arith.constant 0 : i32
    %c0_i32_0 = arith.constant 0 : i32
    %c0_i32_1 = arith.constant 0 : i32
    return %c0_i32, %c0_i32_0 : i32, i32
  }
  func.func @transform_10(%arg0: i32, %arg1: memref<4xi32, #tpu.memory_space<smem>>) -> (i32, i32) {
    %c0_i32 = arith.constant 0 : i32
    %c0_i32_0 = arith.constant 0 : i32
    %c0_i32_1 = arith.constant 0 : i32
    return %c0_i32, %c0_i32_0 : i32, i32
  }
  func.func @transform_11(%arg0: i32, %arg1: memref<4xi32, #tpu.memory_space<smem>>) -> (i32, i32) {
    %c0_i32 = arith.constant 0 : i32
    %c0_i32_0 = arith.constant 0 : i32
    %c0_i32_1 = arith.constant 0 : i32
    return %c0_i32, %c0_i32_0 : i32, i32
  }
  func.func @transform_12(%arg0: i32, %arg1: memref<4xi32, #tpu.memory_space<smem>>) -> (i32, i32) {
    %c0_i32 = arith.constant 0 : i32
    %c0_i32_0 = arith.constant 0 : i32
    %c0_i32_1 = arith.constant 0 : i32
    return %c0_i32, %c0_i32_0 : i32, i32
  }
  func.func @transform_13(%arg0: i32, %arg1: memref<4xi32, #tpu.memory_space<smem>>) -> (i32, i32) {
    %c0_i32 = arith.constant 0 : i32
    %c0_i32_0 = arith.constant 0 : i32
    %c0_i32_1 = arith.constant 0 : i32
    return %c0_i32, %c0_i32_0 : i32, i32
  }
  func.func @transform_14(%arg0: i32, %arg1: memref<4xi32, #tpu.memory_space<smem>>) -> (i32, i32) {
    %c0_i32 = arith.constant 0 : i32
    %c0_i32_0 = arith.constant 0 : i32
    %c0_i32_1 = arith.constant 0 : i32
    return %c0_i32, %c0_i32_0 : i32, i32
  }
  func.func @transform_15(%arg0: i32, %arg1: memref<4xi32, #tpu.memory_space<smem>>) -> (i32, i32, i32) {
    %c0_i32 = arith.constant 0 : i32
    %c0_i32_0 = arith.constant 0 : i32
    %c0_i32_1 = arith.constant 0 : i32
    return %arg0, %c0_i32, %c0_i32_0 : i32, i32, i32
  }
}

</mosaic_0001>

<llo_original>
// kernel: modified_specformer_forward.1
$region0: #{modified_specformer_forward.1}
  #allocation0 [shape = 'u32[]', space=smem, size = 0x4, offset = 0x4, fixed_abs, tag = 'smem constant byte address 0x4 - core index']
  #allocation1 [shape = 'u32[144,128]{1,0:T(1,128)}', space=vmem, size = 0x12000, scoped, tag = 'internal scratch']
  #allocation2 [shape = 's32[1]{0}', space=sflag, size = 0x4, scoped, tag = 'scoped memory for modified_specformer_forward.1']
  #allocation3 [shape = 'u8[512]{0}', space=smem, size = 0x200, scoped, tag = 'prefetched SMEM operand 0']
  %s0 = inlined_call_operand.vmem [shape: s32[4], index: 0, kind: input, shape index: {}]
  %s1 = inlined_call_operand.vmem [shape: f32[4,8,32], index: 1, kind: input, shape index: {}]
  %s2 = inlined_call_operand.vmem [shape: f32[4,8,8], index: 2, kind: input, shape index: {}]
  %s3 = inlined_call_operand.vmem [shape: f32[4,8,8], index: 3, kind: input, shape index: {}]
  %s4 = inlined_call_operand.vmem [shape: f32[4,8,32], index: 4, kind: input, shape index: {}]
  %s5 = inlined_call_operand.vmem [shape: f32[32,32], index: 5, kind: input, shape index: {}]
  %s6 = inlined_call_operand.vmem [shape: f32[1,32], index: 6, kind: input, shape index: {}]
  %s7 = inlined_call_operand.vmem [shape: f32[8,256], index: 7, kind: input, shape index: {}]
  %s8 = inlined_call_operand.vmem [shape: f32[256,256], index: 8, kind: input, shape index: {}]
  %s9 = inlined_call_operand.vmem [shape: f32[1,256], index: 9, kind: input, shape index: {}]
  %s10 = inlined_call_operand.vmem [shape: f32[32,32], index: 10, kind: input, shape index: {}]
  %s11 = inlined_call_operand.vmem [shape: f32[1,32], index: 11, kind: input, shape index: {}]
  %s12 = inlined_call_operand.vmem [shape: f32[32,32], index: 12, kind: input, shape index: {}]
  %s13 = inlined_call_operand.vmem [shape: f32[1,32], index: 13, kind: input, shape index: {}]
  %s14 = inlined_call_operand.vmem [shape: f32[32,32], index: 14, kind: input, shape index: {}]
  %s15 = inlined_call_operand.vmem [shape: f32[1,32], index: 15, kind: input, shape index: {}]
  %s16 = inlined_call_operand.hbm [shape: f32[4,8,32], index: 16, kind: output, shape index: {}]
  %s17 = sld [smem:[#allocation0]]
  $region70: #{modified_specformer_forward.1} parent=0
    _
  %s19 = ssub.s32 1, %s17
  %s20 = scalar_select 0, %s19, %s17
  %s21 = sshll.u32 %s0, 4
  %s22 = int_to_ptr.vmem [resolvable:$true] %s21
  %24 = dma.vmem_to_smem %s22, 16, [#allocation3], [#allocation2]
  %25 = dma.done [#allocation2], 16
  %26 = sfence
  $region1: #{modified_specformer_forward.1} parent=0
    #allocation4 [shape = 'u8[16384]{0}', space=vmem, size = 0x4000, scoped, tag = 'output window, operand 0, single buffered']
    #allocation5 [shape = 's32[1]{0}', space=sflag, size = 0x4, scoped, tag = 'scoped memory for modified_specformer_forward.1']
    %27 = vsyncpa [#allocation5], 0
    // Predicated region
    $region2: #{modified_specformer_forward.1} parent=1 // pred_check
      _
    $region3: #{modified_specformer_forward.1} parent=1 // pred_check_branch
      %29 = sbr.rel (0) target = $region5
    $region4: #{modified_specformer_forward.1} parent=1 // pred_region
      _
    $region5: #{modified_specformer_forward.1} parent=1 // pred_fallthru
      _
    // Predicated region
    $region6: #{modified_specformer_forward.1} parent=1 // pred_check
      _
    $region7: #{modified_specformer_forward.1} parent=1 // pred_check_branch
      %31 = sbr.rel (0) target = $region9
    $region8: #{modified_specformer_forward.1} parent=1 // pred_region
      _
    $region9: #{modified_specformer_forward.1} parent=1 // pred_fallthru
      _
    // Predicated region
    $region10: #{modified_specformer_forward.1} parent=1 // pred_check
      _
    $region11: #{modified_specformer_forward.1} parent=1 // pred_check_branch
      %33 = sbr.rel (0) target = $region13
    $region12: #{modified_specformer_forward.1} parent=1 // pred_region
      _
    $region13: #{modified_specformer_forward.1} parent=1 // pred_fallthru
      _
    // Predicated region
    $region14: #{modified_specformer_forward.1} parent=1 // pred_check
      _
    $region15: #{modified_specformer_forward.1} parent=1 // pred_check_branch
      %35 = sbr.rel (0) target = $region17
    $region16: #{modified_specformer_forward.1} parent=1 // pred_region
      _
    $region17: #{modified_specformer_forward.1} parent=1 // pred_fallthru
      _
    // Predicated region
    $region18: #{modified_specformer_forward.1} parent=1 // pred_check
      _
    $region19: #{modified_specformer_forward.1} parent=1 // pred_check_branch
      %37 = sbr.rel (0) target = $region21
    $region20: #{modified_specformer_forward.1} parent=1 // pred_region
      _
    $region21: #{modified_specformer_forward.1} parent=1 // pred_fallthru
      _
    // Predicated region
    $region22: #{modified_specformer_forward.1} parent=1 // pred_check
      _
    $region23: #{modified_specformer_forward.1} parent=1 // pred_check_branch
      %39 = sbr.rel (0) target = $region25
    $region24: #{modified_specformer_forward.1} parent=1 // pred_region
      _
    $region25: #{modified_specformer_forward.1} parent=1 // pred_fallthru
      _
    // Predicated region
    $region26: #{modified_specformer_forward.1} parent=1 // pred_check
      _
    $region27: #{modified_specformer_forward.1} parent=1 // pred_check_branch
      %41 = sbr.rel (0) target = $region29
    $region28: #{modified_specformer_forward.1} parent=1 // pred_region
      _
    $region29: #{modified_specformer_forward.1} parent=1 // pred_fallthru
      _
    // Predicated region
    $region30: #{modified_specformer_forward.1} parent=1 // pred_check
      _
    $region31: #{modified_specformer_forward.1} parent=1 // pred_check_branch
      %43 = sbr.rel (0) target = $region33
    $region32: #{modified_specformer_forward.1} parent=1 // pred_region
      _
    $region33: #{modified_specformer_forward.1} parent=1 // pred_fallthru
      _
    // Predicated region
    $region34: #{modified_specformer_forward.1} parent=1 // pred_check
      _
    $region35: #{modified_specformer_forward.1} parent=1 // pred_check_branch
      %45 = sbr.rel (0) target = $region37
    $region36: #{modified_specformer_forward.1} parent=1 // pred_region
      _
    $region37: #{modified_specformer_forward.1} parent=1 // pred_fallthru
      _
    // Predicated region
    $region38: #{modified_specformer_forward.1} parent=1 // pred_check
      _
    $region39: #{modified_specformer_forward.1} parent=1 // pred_check_branch
      %47 = sbr.rel (0) target = $region41
    $region40: #{modified_specformer_forward.1} parent=1 // pred_region
      _
    $region41: #{modified_specformer_forward.1} parent=1 // pred_fallthru
      _
    // Predicated region
    $region42: #{modified_specformer_forward.1} parent=1 // pred_check
      _
    $region43: #{modified_specformer_forward.1} parent=1 // pred_check_branch
      %49 = sbr.rel (0) target = $region45
    $region44: #{modified_specformer_forward.1} parent=1 // pred_region
      _
    $region45: #{modified_specformer_forward.1} parent=1 // pred_fallthru
      _
    // Predicated region
    $region46: #{modified_specformer_forward.1} parent=1 // pred_check
      _
    $region47: #{modified_specformer_forward.1} parent=1 // pred_check_branch
      %51 = sbr.rel (0) target = $region49
    $region48: #{modified_specformer_forward.1} parent=1 // pred_region
      _
    $region49: #{modified_specformer_forward.1} parent=1 // pred_fallthru
      _
    // Predicated region
    $region50: #{modified_specformer_forward.1} parent=1 // pred_check
      _
    $region51: #{modified_specformer_forward.1} parent=1 // pred_check_branch
      %53 = sbr.rel (0) target = $region53
    $region52: #{modified_specformer_forward.1} parent=1 // pred_region
      _
    $region53: #{modified_specformer_forward.1} parent=1 // pred_fallthru
      _
    // Predicated region
    $region54: #{modified_specformer_forward.1} parent=1 // pred_check
      _
    $region55: #{modified_specformer_forward.1} parent=1 // pred_check_branch
      %55 = sbr.rel (0) target = $region57
    $region56: #{modified_specformer_forward.1} parent=1 // pred_region
      _
    $region57: #{modified_specformer_forward.1} parent=1 // pred_fallthru
      _
    // Predicated region
    $region58: #{modified_specformer_forward.1} parent=1 // pred_check
      _
    $region59: #{modified_specformer_forward.1} parent=1 // pred_check_branch
      %57 = sbr.rel (0) target = $region61
    $region60: #{modified_specformer_forward.1} parent=1 // pred_region
      _
    $region61: #{modified_specformer_forward.1} parent=1 // pred_fallthru
      _
    %v58 = vlaneseq
    %v59 = vshrl.u32 %v58, 7
    %s60 = smul.u32 0, 4
    %s61 = sld [smem:[#allocation3 + %s60]]
    %v62 = vstv %s61
    %s63 = sadd.s32 %s60, 1
    %s64 = sld [smem:[#allocation3 + %s63]]
    %v65 = vstv %s64
    %s66 = sadd.s32 %s60, 2
    %s67 = sld [smem:[#allocation3 + %s66]]
    %v68 = vstv %s67
    %s69 = sadd.s32 %s60, 3
    %s70 = sld [smem:[#allocation3 + %s69]]
    %v71 = vstv %s70
    %vm72 = vcmp.lt.s32.totalorder %v59, %v62
    %vm73 = vcmp.lt.s32.totalorder %v59, %v65
    %vm74 = vcmp.lt.s32.totalorder %v59, %v68
    %vm75 = vcmp.lt.s32.totalorder %v59, %v71
    %v76 = vsel %vm72, 1, 0
    %v77 = vsel %vm73, 1, 0
    %v78 = vsel %vm74, 1, 0
    %v79 = vsel %vm75, 1, 0
    %v80 = vcvt.s32.f32 %v76
    %v81 = vcvt.s32.f32 %v77
    %v82 = vcvt.s32.f32 %v78
    %v83 = vcvt.s32.f32 %v79
    %v84 = vld [vmem:[%s1] sm:$0xff]
    %v85 = vld [vmem:[%s1 + $0x8] sm:$0xff]
    %v86 = vld [vmem:[%s1 + $0x10] sm:$0xff]
    %v87 = vld [vmem:[%s1 + $0x18] sm:$0xff]
    %v88 = vld [vmem:[%s2] sm:$0xff]
    %v89 = vld [vmem:[%s2 + $0x8] sm:$0xff]
    %v90 = vld [vmem:[%s2 + $0x10] sm:$0xff]
    %v91 = vld [vmem:[%s2 + $0x18] sm:$0xff]
    %v92 = vld [vmem:[%s3] sm:$0xff]
    %v93 = vld [vmem:[%s3 + $0x8] sm:$0xff]
    %v94 = vld [vmem:[%s3 + $0x10] sm:$0xff]
    %v95 = vld [vmem:[%s3 + $0x18] sm:$0xff]
    %v96 = vld [vmem:[%s4] sm:$0xff]
    %v97 = vld [vmem:[%s4 + $0x8] sm:$0xff]
    %v98 = vld [vmem:[%s4 + $0x10] sm:$0xff]
    %v99 = vld [vmem:[%s4 + $0x18] sm:$0xff]
    %v100 = vld [vmem:[%s5] sm:$0xff]
    %v101 = vld [vmem:[%s5 + $0x8] sm:$0xff]
    %v102 = vld [vmem:[%s5 + $0x10] sm:$0xff]
    %v103 = vld [vmem:[%s5 + $0x18] sm:$0xff]
    %v104 = vld [vmem:[%s6] sm:$0x1]
    %v105 = vld [vmem:[%s7] sm:$0xff]
    %v106 = vld [vmem:[%s7 + $0x8] sm:$0xff]
    %v107 = vld [vmem:[%s8] sm:$0xff]
    %v108 = vld [vmem:[%s8 + $0x8] sm:$0xff]
    %v109 = vld [vmem:[%s8 + $0x10] sm:$0xff]
    %v110 = vld [vmem:[%s8 + $0x18] sm:$0xff]
    %v111 = vld [vmem:[%s8 + $0x20] sm:$0xff]
    %v112 = vld [vmem:[%s8 + $0x28] sm:$0xff]
    %v113 = vld [vmem:[%s8 + $0x30] sm:$0xff]
    %v114 = vld [vmem:[%s8 + $0x38] sm:$0xff]
    %v115 = vld [vmem:[%s8 + $0x40] sm:$0xff]
    %v116 = vld [vmem:[%s8 + $0x48] sm:$0xff]
    %v117 = vld [vmem:[%s8 + $0x50] sm:$0xff]
    %v118 = vld [vmem:[%s8 + $0x58] sm:$0xff]
    %v119 = vld [vmem:[%s8 + $0x60] sm:$0xff]
    %v120 = vld [vmem:[%s8 + $0x68] sm:$0xff]
    %v121 = vld [vmem:[%s8 + $0x70] sm:$0xff]
    %v122 = vld [vmem:[%s8 + $0x78] sm:$0xff]
    %v123 = vld [vmem:[%s8 + $0x80] sm:$0xff]
    %v124 = vld [vmem:[%s8 + $0x88] sm:$0xff]
    %v125 = vld [vmem:[%s8 + $0x90] sm:$0xff]
    %v126 = vld [vmem:[%s8 + $0x98] sm:$0xff]
    %v127 = vld [vmem:[%s8 + $0xa0] sm:$0xff]
    %v128 = vld [vmem:[%s8 + $0xa8] sm:$0xff]
    %v129 = vld [vmem:[%s8 + $0xb0] sm:$0xff]
    %v130 = vld [vmem:[%s8 + $0xb8] sm:$0xff]
    %v131 = vld [vmem:[%s8 + $0xc0] sm:$0xff]
    %v132 = vld [vmem:[%s8 + $0xc8] sm:$0xff]
    %v133 = vld [vmem:[%s8 + $0xd0] sm:$0xff]
    %v134 = vld [vmem:[%s8 + $0xd8] sm:$0xff]
    %v135 = vld [vmem:[%s8 + $0xe0] sm:$0xff]
    %v136 = vld [vmem:[%s8 + $0xe8] sm:$0xff]
    %v137 = vld [vmem:[%s8 + $0xf0] sm:$0xff]
    %v138 = vld [vmem:[%s8 + $0xf8] sm:$0xff]
    %v139 = vld [vmem:[%s8 + $0x100] sm:$0xff]
    %v140 = vld [vmem:[%s8 + $0x108] sm:$0xff]
    %v141 = vld [vmem:[%s8 + $0x110] sm:$0xff]
    %v142 = vld [vmem:[%s8 + $0x118] sm:$0xff]
    %v143 = vld [vmem:[%s8 + $0x120] sm:$0xff]
    %v144 = vld [vmem:[%s8 + $0x128] sm:$0xff]
    %v145 = vld [vmem:[%s8 + $0x130] sm:$0xff]
    %v146 = vld [vmem:[%s8 + $0x138] sm:$0xff]
    %v147 = vld [vmem:[%s8 + $0x140] sm:$0xff]
    %v148 = vld [vmem:[%s8 + $0x148] sm:$0xff]
    %v149 = vld [vmem:[%s8 + $0x150] sm:$0xff]
    %v150 = vld [vmem:[%s8 + $0x158] sm:$0xff]
    %v151 = vld [vmem:[%s8 + $0x160] sm:$0xff]
    %v152 = vld [vmem:[%s8 + $0x168] sm:$0xff]
    %v153 = vld [vmem:[%s8 + $0x170] sm:$0xff]
    %v154 = vld [vmem:[%s8 + $0x178] sm:$0xff]
    %v155 = vld [vmem:[%s8 + $0x180] sm:$0xff]
    %v156 = vld [vmem:[%s8 + $0x188] sm:$0xff]
    %v157 = vld [vmem:[%s8 + $0x190] sm:$0xff]
    %v158 = vld [vmem:[%s8 + $0x198] sm:$0xff]
    %v159 = vld [vmem:[%s8 + $0x1a0] sm:$0xff]
    %v160 = vld [vmem:[%s8 + $0x1a8] sm:$0xff]
    %v161 = vld [vmem:[%s8 + $0x1b0] sm:$0xff]
    %v162 = vld [vmem:[%s8 + $0x1b8] sm:$0xff]
    %v163 = vld [vmem:[%s8 + $0x1c0] sm:$0xff]
    %v164 = vld [vmem:[%s8 + $0x1c8] sm:$0xff]
    %v165 = vld [vmem:[%s8 + $0x1d0] sm:$0xff]
    %v166 = vld [vmem:[%s8 + $0x1d8] sm:$0xff]
    %v167 = vld [vmem:[%s8 + $0x1e0] sm:$0xff]
    %v168 = vld [vmem:[%s8 + $0x1e8] sm:$0xff]
    %v169 = vld [vmem:[%s8 + $0x1f0] sm:$0xff]
    %v170 = vld [vmem:[%s8 + $0x1f8] sm:$0xff]
    %v171 = vld [vmem:[%s9] sm:$0x3]
    %v172 = vld [vmem:[%s10] sm:$0xff]
    %v173 = vld [vmem:[%s10 + $0x8] sm:$0xff]
    %v174 = vld [vmem:[%s10 + $0x10] sm:$0xff]
    %v175 = vld [vmem:[%s10 + $0x18] sm:$0xff]
    %v176 = vld [vmem:[%s11] sm:$0x1]
    %v177 = vld [vmem:[%s12] sm:$0xff]
    %v178 = vld [vmem:[%s12 + $0x8] sm:$0xff]
    %v179 = vld [vmem:[%s12 + $0x10] sm:$0xff]
    %v180 = vld [vmem:[%s12 + $0x18] sm:$0xff]
    %v181 = vld [vmem:[%s13] sm:$0x1]
    %v182 = vld [vmem:[%s14] sm:$0xff]
    %v183 = vld [vmem:[%s14 + $0x8] sm:$0xff]
    %v184 = vld [vmem:[%s14 + $0x10] sm:$0xff]
    %v185 = vld [vmem:[%s14 + $0x18] sm:$0xff]
    %v186 = vld [vmem:[%s15] sm:$0x1]
    %v188 = vlaneseq
    %v189 = vshrl.u32 %v188, 7
    %v190 = vsub.s32 0, %v189
    %v191 = vrot.slane %v104, %v190
    %vm193 = vcmask 261120
    %v195 = vsel %vm193, %v84, 0
    %v198 = vsel %vm193, %v85, 0
    %v201 = vsel %vm193, %v86, 0
    %v204 = vsel %vm193, %v87, 0
    %206 = vmatprep.subr.mxu0 0.0
    %207 = vmatpush1.msra.mxu0 0.0
    %208 = vmatprep.subr.mxu0 0.0
    %209 = vmatpush1.msra.mxu0 0.0
    %210 = vmatprep.subr.mxu0 0.0
    %211 = vmatpush1.msra.mxu0 0.0
    %212 = vmatprep.subr.mxu0 0.0
    %213 = vmatpush1.msra.mxu0 0.0
    %214 = vmatprep.subr.mxu0 0.0
    %215 = vmatpush1.msra.mxu0 0.0
    %216 = vmatprep.subr.mxu0 0.0
    %217 = vmatpush1.msra.mxu0 0.0
    %218 = vmatprep.subr.mxu0 0.0
    %219 = vmatpush1.msra.mxu0 0.0
    %220 = vmatprep.subr.mxu0 0.0
    %221 = vmatpush1.msra.mxu0 0.0
    %222 = vmatprep.subr.mxu0 0.0
    %223 = vmatpush1.msra.mxu0 0.0
    %224 = vmatprep.subr.mxu0 0.0
    %225 = vmatpush1.msra.mxu0 0.0
    %226 = vmatprep.subr.mxu0 0.0
    %227 = vmatpush1.msra.mxu0 0.0
    %228 = vmatprep.subr.mxu0 0.0
    %229 = vmatpush1.msra.mxu0 0.0
    %230 = vmatprep.subr.mxu0 0.0
    %231 = vmatpush1.msra.mxu0 %v103
    %232 = vmatprep.subr.mxu0 0.0
    %233 = vmatpush1.msra.mxu0 %v102
    %234 = vmatprep.subr.mxu0 0.0
    %235 = vmatpush1.msra.mxu0 %v101
    %236 = vmatprep.subr.mxu0 0.0
    %237 = vmatpush1.msra.mxu0 %v100
    %238 = vmatprep.subr.mxu0 0.0
    %239 = vmatpush2.msra.mxu0 0.0
    %240 = vmatprep.subr.mxu0 0.0
    %241 = vmatpush2.msra.mxu0 0.0
    %242 = vmatprep.subr.mxu0 0.0
    %243 = vmatpush2.msra.mxu0 0.0
    %244 = vmatprep.subr.mxu0 0.0
    %245 = vmatpush2.msra.mxu0 0.0
    %246 = vmatprep.subr.mxu0 0.0
    %247 = vmatpush2.msra.mxu0 0.0
    %248 = vmatprep.subr.mxu0 0.0
    %249 = vmatpush2.msra.mxu0 0.0
    %250 = vmatprep.subr.mxu0 0.0
    %251 = vmatpush2.msra.mxu0 0.0
    %252 = vmatprep.subr.mxu0 0.0
    %253 = vmatpush2.msra.mxu0 0.0
    %254 = vmatprep.subr.mxu0 0.0
    %255 = vmatpush2.msra.mxu0 0.0
    %256 = vmatprep.subr.mxu0 0.0
    %257 = vmatpush2.msra.mxu0 0.0
    %258 = vmatprep.subr.mxu0 0.0
    %259 = vmatpush2.msra.mxu0 0.0
    %260 = vmatprep.subr.mxu0 0.0
    %261 = vmatpush2.msra.mxu0 0.0
    %262 = vmatprep.subr.mxu0 0.0
    %263 = vmatpush2.msra.mxu0 0.0
    %264 = vmatprep.subr.mxu0 0.0
    %265 = vmatpush2.msra.mxu0 0.0
    %266 = vmatprep.subr.mxu0 0.0
    %267 = vmatpush2.msra.mxu0 0.0
    %268 = vmatprep.subr.mxu0 0.0
    %269 = vmatpush2.msra.mxu0 0.0
    %270 = vmatprep.mubr.f32.mxu0 0.0
    %271 = vmatmul.mubr.f32.gmra.mxu0 %v195
    %v272 = vpop.f32.mrf.mxu0
    %v273 = vadd.f32 %v191, %v272
    %v274 = vpop.f32.mrf.mxu0
    %275 = vmatprep.mubr.f32.mxu0 0.0
    %276 = vmatmul.mubr.f32.gmra.mxu0 %v198
    %v277 = vpop.f32.mrf.mxu0
    %v278 = vadd.f32 %v191, %v277
    %v279 = vpop.f32.mrf.mxu0
    %280 = vmatprep.mubr.f32.mxu0 0.0
    %281 = vmatmul.mubr.f32.gmra.mxu0 %v201
    %v282 = vpop.f32.mrf.mxu0
    %v283 = vadd.f32 %v191, %v282
    %v284 = vpop.f32.mrf.mxu0
    %285 = vmatprep.mubr.f32.mxu0 0.0
    %286 = vmatmul.mubr.f32.gmra.mxu0 %v204
    %v287 = vpop.f32.mrf.mxu0
    %v288 = vadd.f32 %v191, %v287
    %v289 = vpop.f32.mrf.mxu0
    %290 = vdwg.mxu0
    %v292 = vlaneseq
    %v293 = vshrl.u32 %v292, 7
    %v294 = vsub.s32 0, %v293
    %v295 = vrot.slane %v176, %v294
    %v298 = vsel %vm193, %v96, 0
    %v301 = vsel %vm193, %v97, 0
    %v304 = vsel %vm193, %v98, 0
    %v307 = vsel %vm193, %v99, 0
    %309 = vmatprep.subr.mxu0 0.0
    %310 = vmatpush1.msra.mxu0 0.0
    %311 = vmatprep.subr.mxu0 0.0
    %312 = vmatpush1.msra.mxu0 0.0
    %313 = vmatprep.subr.mxu0 0.0
    %314 = vmatpush1.msra.mxu0 0.0
    %315 = vmatprep.subr.mxu0 0.0
    %316 = vmatpush1.msra.mxu0 0.0
    %317 = vmatprep.subr.mxu0 0.0
    %318 = vmatpush1.msra.mxu0 0.0
    %319 = vmatprep.subr.mxu0 0.0
    %320 = vmatpush1.msra.mxu0 0.0
    %321 = vmatprep.subr.mxu0 0.0
    %322 = vmatpush1.msra.mxu0 0.0
    %323 = vmatprep.subr.mxu0 0.0
    %324 = vmatpush1.msra.mxu0 0.0
    %325 = vmatprep.subr.mxu0 0.0
    %326 = vmatpush1.msra.mxu0 0.0
    %327 = vmatprep.subr.mxu0 0.0
    %328 = vmatpush1.msra.mxu0 0.0
    %329 = vmatprep.subr.mxu0 0.0
    %330 = vmatpush1.msra.mxu0 0.0
    %331 = vmatprep.subr.mxu0 0.0
    %332 = vmatpush1.msra.mxu0 0.0
    %333 = vmatprep.subr.mxu0 0.0
    %334 = vmatpush1.msra.mxu0 %v175
    %335 = vmatprep.subr.mxu0 0.0
    %336 = vmatpush1.msra.mxu0 %v174
    %337 = vmatprep.subr.mxu0 0.0
    %338 = vmatpush1.msra.mxu0 %v173
    %339 = vmatprep.subr.mxu0 0.0
    %340 = vmatpush1.msra.mxu0 %v172
    %341 = vmatprep.subr.mxu0 0.0
    %342 = vmatpush2.msra.mxu0 0.0
    %343 = vmatprep.subr.mxu0 0.0
    %344 = vmatpush2.msra.mxu0 0.0
    %345 = vmatprep.subr.mxu0 0.0
    %346 = vmatpush2.msra.mxu0 0.0
    %347 = vmatprep.subr.mxu0 0.0
    %348 = vmatpush2.msra.mxu0 0.0
    %349 = vmatprep.subr.mxu0 0.0
    %350 = vmatpush2.msra.mxu0 0.0
    %351 = vmatprep.subr.mxu0 0.0
    %352 = vmatpush2.msra.mxu0 0.0
    %353 = vmatprep.subr.mxu0 0.0
    %354 = vmatpush2.msra.mxu0 0.0
    %355 = vmatprep.subr.mxu0 0.0
    %356 = vmatpush2.msra.mxu0 0.0
    %357 = vmatprep.subr.mxu0 0.0
    %358 = vmatpush2.msra.mxu0 0.0
    %359 = vmatprep.subr.mxu0 0.0
    %360 = vmatpush2.msra.mxu0 0.0
    %361 = vmatprep.subr.mxu0 0.0
    %362 = vmatpush2.msra.mxu0 0.0
    %363 = vmatprep.subr.mxu0 0.0
    %364 = vmatpush2.msra.mxu0 0.0
    %365 = vmatprep.subr.mxu0 0.0
    %366 = vmatpush2.msra.mxu0 0.0
    %367 = vmatprep.subr.mxu0 0.0
    %368 = vmatpush2.msra.mxu0 0.0
    %369 = vmatprep.subr.mxu0 0.0
    %370 = vmatpush2.msra.mxu0 0.0
    %371 = vmatprep.subr.mxu0 0.0
    %372 = vmatpush2.msra.mxu0 0.0
    %373 = vmatprep.mubr.f32.mxu0 0.0
    %374 = vmatmul.mubr.f32.gmra.mxu0 %v298
    %v375 = vpop.f32.mrf.mxu0
    %v376 = vadd.f32 %v295, %v375
    %v377 = vpop.f32.mrf.mxu0
    %378 = vmatprep.mubr.f32.mxu0 0.0
    %379 = vmatmul.mubr.f32.gmra.mxu0 %v301
    %v380 = vpop.f32.mrf.mxu0
    %v381 = vadd.f32 %v295, %v380
    %v382 = vpop.f32.mrf.mxu0
    %383 = vmatprep.mubr.f32.mxu0 0.0
    %384 = vmatmul.mubr.f32.gmra.mxu0 %v304
    %v385 = vpop.f32.mrf.mxu0
    %v386 = vadd.f32 %v295, %v385
    %v387 = vpop.f32.mrf.mxu0
    %388 = vmatprep.mubr.f32.mxu0 0.0
    %389 = vmatmul.mubr.f32.gmra.mxu0 %v307
    %v390 = vpop.f32.mrf.mxu0
    %v391 = vadd.f32 %v295, %v390
    %v392 = vpop.f32.mrf.mxu0
    %393 = vdwg.mxu0
    %v394 = vmul.f32 %v376, 0.5
    %v395 = vmul.f32 %v381, 0.5
    %v396 = vmul.f32 %v386, 0.5
    %v397 = vmul.f32 %v391, 0.5
    %v398 = vmul.f32 %v376, %v376
    %v399 = vmul.f32 %v381, %v381
    %v400 = vmul.f32 %v386, %v386
    %v401 = vmul.f32 %v391, %v391
    %v402 = vmul.f32 %v398, %v376
    %v403 = vmul.f32 %v399, %v381
    %v404 = vmul.f32 %v400, %v386
    %v405 = vmul.f32 %v401, %v391
    %v406 = vmul.f32 %v402, 0.044715
    %v407 = vmul.f32 %v403, 0.044715
    %v408 = vmul.f32 %v404, 0.044715
    %v409 = vmul.f32 %v405, 0.044715
    %v410 = vadd.f32 %v376, %v406
    %v411 = vadd.f32 %v381, %v407
    %v412 = vadd.f32 %v386, %v408
    %v413 = vadd.f32 %v391, %v409
    %v414 = vmul.f32 %v410, 0.7978846
    %v415 = vmul.f32 %v411, 0.7978846
    %v416 = vmul.f32 %v412, 0.7978846
    %v417 = vmul.f32 %v413, 0.7978846
    %v418 = vtanh.pop %v414
    %v419 = vtanh.pop %v415
    %v420 = vtanh.pop %v416
    %v421 = vtanh.pop %v417
    %v422 = vadd.f32 %v418, 1.0
    %v423 = vadd.f32 %v419, 1.0
    %v424 = vadd.f32 %v420, 1.0
    %v425 = vadd.f32 %v421, 1.0
    %v426 = vmul.f32 %v394, %v422
    %v427 = vmul.f32 %v395, %v423
    %v428 = vmul.f32 %v396, %v424
    %v429 = vmul.f32 %v397, %v425
    %v430 = vlaneseq
    %v431 = vshrl.u32 %v430, 7
    %v432 = vsub.s32 0, %v431
    %v433 = vrot.slane %v92, %v432
    %435 = vbcast.lane.b32.xlu0 %v433, 256
    %v436 = vpop.permute.xlu0 %435
    %v437 = vlaneseq
    %v438 = vshrl.u32 %v437, 7
    %v439 = vsub.s32 1, %v438
    %v440 = vrot.slane %v92, %v439
    %442 = vbcast.lane.b32.xlu0 %v440, 256
    %v443 = vpop.permute.xlu0 %442
    %v444 = vlaneseq
    %v445 = vshrl.u32 %v444, 7
    %v446 = vsub.s32 2, %v445
    %v447 = vrot.slane %v92, %v446
    %449 = vbcast.lane.b32.xlu0 %v447, 256
    %v450 = vpop.permute.xlu0 %449
    %v451 = vlaneseq
    %v452 = vshrl.u32 %v451, 7
    %v453 = vsub.s32 3, %v452
    %v454 = vrot.slane %v92, %v453
    %456 = vbcast.lane.b32.xlu0 %v454, 256
    %v457 = vpop.permute.xlu0 %456
    %v458 = vlaneseq
    %v459 = vshrl.u32 %v458, 7
    %v460 = vsub.s32 4, %v459
    %v461 = vrot.slane %v92, %v460
    %463 = vbcast.lane.b32.xlu0 %v461, 256
    %v464 = vpop.permute.xlu0 %463
    %v465 = vlaneseq
    %v466 = vshrl.u32 %v465, 7
    %v467 = vsub.s32 5, %v466
    %v468 = vrot.slane %v92, %v467
    %470 = vbcast.lane.b32.xlu0 %v468, 256
    %v471 = vpop.permute.xlu0 %470
    %v472 = vlaneseq
    %v473 = vshrl.u32 %v472, 7
    %v474 = vsub.s32 6, %v473
    %v475 = vrot.slane %v92, %v474
    %477 = vbcast.lane.b32.xlu0 %v475, 256
    %v478 = vpop.permute.xlu0 %477
    %v479 = vlaneseq
    %v480 = vshrl.u32 %v479, 7
    %v481 = vsub.s32 7, %v480
    %v482 = vrot.slane %v92, %v481
    %484 = vbcast.lane.b32.xlu0 %v482, 256
    %v485 = vpop.permute.xlu0 %484
    %v486 = vlaneseq
    %v487 = vshrl.u32 %v486, 7
    %v488 = vsub.s32 0, %v487
    %v489 = vrot.slane %v93, %v488
    %491 = vbcast.lane.b32.xlu0 %v489, 256
    %v492 = vpop.permute.xlu0 %491
    %v493 = vlaneseq
    %v494 = vshrl.u32 %v493, 7
    %v495 = vsub.s32 1, %v494
    %v496 = vrot.slane %v93, %v495
    %498 = vbcast.lane.b32.xlu0 %v496, 256
    %v499 = vpop.permute.xlu0 %498
    %v500 = vlaneseq
    %v501 = vshrl.u32 %v500, 7
    %v502 = vsub.s32 2, %v501
    %v503 = vrot.slane %v93, %v502
    %505 = vbcast.lane.b32.xlu0 %v503, 256
    %v506 = vpop.permute.xlu0 %505
    %v507 = vlaneseq
    %v508 = vshrl.u32 %v507, 7
    %v509 = vsub.s32 3, %v508
    %v510 = vrot.slane %v93, %v509
    %512 = vbcast.lane.b32.xlu0 %v510, 256
    %v513 = vpop.permute.xlu0 %512
    %v514 = vlaneseq
    %v515 = vshrl.u32 %v514, 7
    %v516 = vsub.s32 4, %v515
    %v517 = vrot.slane %v93, %v516
    %519 = vbcast.lane.b32.xlu0 %v517, 256
    %v520 = vpop.permute.xlu0 %519
    %v521 = vlaneseq
    %v522 = vshrl.u32 %v521, 7
    %v523 = vsub.s32 5, %v522
    %v524 = vrot.slane %v93, %v523
    %526 = vbcast.lane.b32.xlu0 %v524, 256
    %v527 = vpop.permute.xlu0 %526
    %v528 = vlaneseq
    %v529 = vshrl.u32 %v528, 7
    %v530 = vsub.s32 6, %v529
    %v531 = vrot.slane %v93, %v530
    %533 = vbcast.lane.b32.xlu0 %v531, 256
    %v534 = vpop.permute.xlu0 %533
    %v535 = vlaneseq
    %v536 = vshrl.u32 %v535, 7
    %v537 = vsub.s32 7, %v536
    %v538 = vrot.slane %v93, %v537
    %540 = vbcast.lane.b32.xlu0 %v538, 256
    %v541 = vpop.permute.xlu0 %540
    %v542 = vlaneseq
    %v543 = vshrl.u32 %v542, 7
    %v544 = vsub.s32 0, %v543
    %v545 = vrot.slane %v94, %v544
    %547 = vbcast.lane.b32.xlu0 %v545, 256
    %v548 = vpop.permute.xlu0 %547
    %v549 = vlaneseq
    %v550 = vshrl.u32 %v549, 7
    %v551 = vsub.s32 1, %v550
    %v552 = vrot.slane %v94, %v551
    %554 = vbcast.lane.b32.xlu0 %v552, 256
    %v555 = vpop.permute.xlu0 %554
    %v556 = vlaneseq
    %v557 = vshrl.u32 %v556, 7
    %v558 = vsub.s32 2, %v557
    %v559 = vrot.slane %v94, %v558
    %561 = vbcast.lane.b32.xlu0 %v559, 256
    %v562 = vpop.permute.xlu0 %561
    %v563 = vlaneseq
    %v564 = vshrl.u32 %v563, 7
    %v565 = vsub.s32 3, %v564
    %v566 = vrot.slane %v94, %v565
    %568 = vbcast.lane.b32.xlu0 %v566, 256
    %v569 = vpop.permute.xlu0 %568
    %v570 = vlaneseq
    %v571 = vshrl.u32 %v570, 7
    %v572 = vsub.s32 4, %v571
    %v573 = vrot.slane %v94, %v572
    %575 = vbcast.lane.b32.xlu0 %v573, 256
    %v576 = vpop.permute.xlu0 %575
    %v577 = vlaneseq
    %v578 = vshrl.u32 %v577, 7
    %v579 = vsub.s32 5, %v578
    %v580 = vrot.slane %v94, %v579
    %582 = vbcast.lane.b32.xlu0 %v580, 256
    %v583 = vpop.permute.xlu0 %582
    %v584 = vlaneseq
    %v585 = vshrl.u32 %v584, 7
    %v586 = vsub.s32 6, %v585
    %v587 = vrot.slane %v94, %v586
    %589 = vbcast.lane.b32.xlu0 %v587, 256
    %v590 = vpop.permute.xlu0 %589
    %v591 = vlaneseq
    %v592 = vshrl.u32 %v591, 7
    %v593 = vsub.s32 7, %v592
    %v594 = vrot.slane %v94, %v593
    %596 = vbcast.lane.b32.xlu0 %v594, 256
    %v597 = vpop.permute.xlu0 %596
    %v598 = vlaneseq
    %v599 = vshrl.u32 %v598, 7
    %v600 = vsub.s32 0, %v599
    %v601 = vrot.slane %v95, %v600
    %603 = vbcast.lane.b32.xlu0 %v601, 256
    %v604 = vpop.permute.xlu0 %603
    %v605 = vlaneseq
    %v606 = vshrl.u32 %v605, 7
    %v607 = vsub.s32 1, %v606
    %v608 = vrot.slane %v95, %v607
    %610 = vbcast.lane.b32.xlu0 %v608, 256
    %v611 = vpop.permute.xlu0 %610
    %v612 = vlaneseq
    %v613 = vshrl.u32 %v612, 7
    %v614 = vsub.s32 2, %v613
    %v615 = vrot.slane %v95, %v614
    %617 = vbcast.lane.b32.xlu0 %v615, 256
    %v618 = vpop.permute.xlu0 %617
    %v619 = vlaneseq
    %v620 = vshrl.u32 %v619, 7
    %v621 = vsub.s32 3, %v620
    %v622 = vrot.slane %v95, %v621
    %624 = vbcast.lane.b32.xlu0 %v622, 256
    %v625 = vpop.permute.xlu0 %624
    %v626 = vlaneseq
    %v627 = vshrl.u32 %v626, 7
    %v628 = vsub.s32 4, %v627
    %v629 = vrot.slane %v95, %v628
    %631 = vbcast.lane.b32.xlu0 %v629, 256
    %v632 = vpop.permute.xlu0 %631
    %v633 = vlaneseq
    %v634 = vshrl.u32 %v633, 7
    %v635 = vsub.s32 5, %v634
    %v636 = vrot.slane %v95, %v635
    %638 = vbcast.lane.b32.xlu0 %v636, 256
    %v639 = vpop.permute.xlu0 %638
    %v640 = vlaneseq
    %v641 = vshrl.u32 %v640, 7
    %v642 = vsub.s32 6, %v641
    %v643 = vrot.slane %v95, %v642
    %645 = vbcast.lane.b32.xlu0 %v643, 256
    %v646 = vpop.permute.xlu0 %645
    %v647 = vlaneseq
    %v648 = vshrl.u32 %v647, 7
    %v649 = vsub.s32 7, %v648
    %v650 = vrot.slane %v95, %v649
    %652 = vbcast.lane.b32.xlu0 %v650, 256
    %v653 = vpop.permute.xlu0 %652
    %v658 = vcombine.high %v273, %v273
    %v660 = vunpack.c.l.s4 1966171168
    %v661 = vunpack.c.0.s8 %v660
    %v662 = vlaneseq
    %v663 = vshrl.u32 %v662, 7
    %v664 = vsub.s32 %v661, %v663
    %v665 = vrot.slane %v273, %v664
    %v667 = vunpack.c.l.s4 1966171168
    %v668 = vunpack.c.0.s8 %v667
    %v669 = vlaneseq
    %v670 = vshrl.u32 %v669, 7
    %v671 = vsub.s32 %v668, %v670
    %v672 = vrot.slane %v658, %v671
    %v673 = vcombine.high %v665, %v665
    %v674 = vcombine.high %v672, %v672
    %v676 = vunpack.c.l.s4 1966171168
    %v677 = vunpack.c.0.s8 %v676
    %v678 = vlaneseq
    %v679 = vshrl.u32 %v678, 7
    %v680 = vsub.s32 %v677, %v679
    %v681 = vrot.slane %v665, %v680
    %v683 = vunpack.c.l.s4 1966171168
    %v684 = vunpack.c.0.s8 %v683
    %v685 = vlaneseq
    %v686 = vshrl.u32 %v685, 7
    %v687 = vsub.s32 %v684, %v686
    %v688 = vrot.slane %v672, %v687
    %v690 = vunpack.c.l.s4 1966171168
    %v691 = vunpack.c.0.s8 %v690
    %v692 = vlaneseq
    %v693 = vshrl.u32 %v692, 7
    %v694 = vsub.s32 %v691, %v693
    %v695 = vrot.slane %v673, %v694
    %v697 = vunpack.c.l.s4 1966171168
    %v698 = vunpack.c.0.s8 %v697
    %v699 = vlaneseq
    %v700 = vshrl.u32 %v699, 7
    %v701 = vsub.s32 %v698, %v700
    %v702 = vrot.slane %v674, %v701
    %v703 = vcombine.high %v681, %v681
    %v704 = vcombine.high %v688, %v688
    %v705 = vcombine.high %v695, %v695
    %v706 = vcombine.high %v702, %v702
    %v707 = vcombine.high %v278, %v278
    %v709 = vunpack.c.l.s4 1966171168
    %v710 = vunpack.c.0.s8 %v709
    %v711 = vlaneseq
    %v712 = vshrl.u32 %v711, 7
    %v713 = vsub.s32 %v710, %v712
    %v714 = vrot.slane %v278, %v713
    %v716 = vunpack.c.l.s4 1966171168
    %v717 = vunpack.c.0.s8 %v716
    %v718 = vlaneseq
    %v719 = vshrl.u32 %v718, 7
    %v720 = vsub.s32 %v717, %v719
    %v721 = vrot.slane %v707, %v720
    %v722 = vcombine.high %v714, %v714
    %v723 = vcombine.high %v721, %v721
    %v725 = vunpack.c.l.s4 1966171168
    %v726 = vunpack.c.0.s8 %v725
    %v727 = vlaneseq
    %v728 = vshrl.u32 %v727, 7
    %v729 = vsub.s32 %v726, %v728
    %v730 = vrot.slane %v714, %v729
    %v732 = vunpack.c.l.s4 1966171168
    %v733 = vunpack.c.0.s8 %v732
    %v734 = vlaneseq
    %v735 = vshrl.u32 %v734, 7
    %v736 = vsub.s32 %v733, %v735
    %v737 = vrot.slane %v721, %v736
    %v739 = vunpack.c.l.s4 1966171168
    %v740 = vunpack.c.0.s8 %v739
    %v741 = vlaneseq
    %v742 = vshrl.u32 %v741, 7
    %v743 = vsub.s32 %v740, %v742
    %v744 = vrot.slane %v722, %v743
    %v746 = vunpack.c.l.s4 1966171168
    %v747 = vunpack.c.0.s8 %v746
    %v748 = vlaneseq
    %v749 = vshrl.u32 %v748, 7
    %v750 = vsub.s32 %v747, %v749
    %v751 = vrot.slane %v723, %v750
    %v752 = vcombine.high %v730, %v730
    %v753 = vcombine.high %v737, %v737
    %v754 = vcombine.high %v744, %v744
    %v755 = vcombine.high %v751, %v751
    %v756 = vcombine.high %v283, %v283
    %v758 = vunpack.c.l.s4 1966171168
    %v759 = vunpack.c.0.s8 %v758
    %v760 = vlaneseq
    %v761 = vshrl.u32 %v760, 7
    %v762 = vsub.s32 %v759, %v761
    %v763 = vrot.slane %v283, %v762
    %v765 = vunpack.c.l.s4 1966171168
    %v766 = vunpack.c.0.s8 %v765
    %v767 = vlaneseq
    %v768 = vshrl.u32 %v767, 7
    %v769 = vsub.s32 %v766, %v768
    %v770 = vrot.slane %v756, %v769
    %v771 = vcombine.high %v763, %v763
    %v772 = vcombine.high %v770, %v770
    %v774 = vunpack.c.l.s4 1966171168
    %v775 = vunpack.c.0.s8 %v774
    %v776 = vlaneseq
    %v777 = vshrl.u32 %v776, 7
    %v778 = vsub.s32 %v775, %v777
    %v779 = vrot.slane %v763, %v778
    %v781 = vunpack.c.l.s4 1966171168
    %v782 = vunpack.c.0.s8 %v781
    %v783 = vlaneseq
    %v784 = vshrl.u32 %v783, 7
    %v785 = vsub.s32 %v782, %v784
    %v786 = vrot.slane %v770, %v785
    %v788 = vunpack.c.l.s4 1966171168
    %v789 = vunpack.c.0.s8 %v788
    %v790 = vlaneseq
    %v791 = vshrl.u32 %v790, 7
    %v792 = vsub.s32 %v789, %v791
    %v793 = vrot.slane %v771, %v792
    %v795 = vunpack.c.l.s4 1966171168
    %v796 = vunpack.c.0.s8 %v795
    %v797 = vlaneseq
    %v798 = vshrl.u32 %v797, 7
    %v799 = vsub.s32 %v796, %v798
    %v800 = vrot.slane %v772, %v799
    %v801 = vcombine.high %v779, %v779
    %v802 = vcombine.high %v786, %v786
    %v803 = vcombine.high %v793, %v793
    %v804 = vcombine.high %v800, %v800
    %v805 = vcombine.high %v288, %v288
    %v807 = vunpack.c.l.s4 1966171168
    %v808 = vunpack.c.0.s8 %v807
    %v809 = vlaneseq
    %v810 = vshrl.u32 %v809, 7
    %v811 = vsub.s32 %v808, %v810
    %v812 = vrot.slane %v288, %v811
    %v814 = vunpack.c.l.s4 1966171168
    %v815 = vunpack.c.0.s8 %v814
    %v816 = vlaneseq
    %v817 = vshrl.u32 %v816, 7
    %v818 = vsub.s32 %v815, %v817
    %v819 = vrot.slane %v805, %v818
    %v820 = vcombine.high %v812, %v812
    %v821 = vcombine.high %v819, %v819
    %v823 = vunpack.c.l.s4 1966171168
    %v824 = vunpack.c.0.s8 %v823
    %v825 = vlaneseq
    %v826 = vshrl.u32 %v825, 7
    %v827 = vsub.s32 %v824, %v826
    %v828 = vrot.slane %v812, %v827
    %v830 = vunpack.c.l.s4 1966171168
    %v831 = vunpack.c.0.s8 %v830
    %v832 = vlaneseq
    %v833 = vshrl.u32 %v832, 7
    %v834 = vsub.s32 %v831, %v833
    %v835 = vrot.slane %v819, %v834
    %v837 = vunpack.c.l.s4 1966171168
    %v838 = vunpack.c.0.s8 %v837
    %v839 = vlaneseq
    %v840 = vshrl.u32 %v839, 7
    %v841 = vsub.s32 %v838, %v840
    %v842 = vrot.slane %v820, %v841
    %v844 = vunpack.c.l.s4 1966171168
    %v845 = vunpack.c.0.s8 %v844
    %v846 = vlaneseq
    %v847 = vshrl.u32 %v846, 7
    %v848 = vsub.s32 %v845, %v847
    %v849 = vrot.slane %v821, %v848
    %v850 = vcombine.high %v828, %v828
    %v851 = vcombine.high %v835, %v835
    %v852 = vcombine.high %v842, %v842
    %v853 = vcombine.high %v849, %v849
    %v854 = vlaneseq
    %v855 = vshrl.u32 %v854, 7
    %v856 = vsub.s32 0, %v855
    %v857 = vrot.slane %v681, %v856
    %v858 = vlaneseq
    %v859 = vshrl.u32 %v858, 7
    %v860 = vsub.s32 0, %v859
    %v861 = vrot.slane %v695, %v860
    %v862 = vlaneseq
    %v863 = vshrl.u32 %v862, 7
    %v864 = vsub.s32 0, %v863
    %v865 = vrot.slane %v703, %v864
    %v866 = vlaneseq
    %v867 = vshrl.u32 %v866, 7
    %v868 = vsub.s32 0, %v867
    %v869 = vrot.slane %v705, %v868
    %v870 = vlaneseq
    %v871 = vshrl.u32 %v870, 7
    %v872 = vsub.s32 0, %v871
    %v873 = vrot.slane %v688, %v872
    %v874 = vlaneseq
    %v875 = vshrl.u32 %v874, 7
    %v876 = vsub.s32 0, %v875
    %v877 = vrot.slane %v702, %v876
    %v878 = vlaneseq
    %v879 = vshrl.u32 %v878, 7
    %v880 = vsub.s32 0, %v879
    %v881 = vrot.slane %v704, %v880
    %v882 = vlaneseq
    %v883 = vshrl.u32 %v882, 7
    %v884 = vsub.s32 0, %v883
    %v885 = vrot.slane %v706, %v884
    %v886 = vlaneseq
    %v887 = vshrl.u32 %v886, 7
    %v888 = vsub.s32 0, %v887
    %v889 = vrot.slane %v730, %v888
    %v890 = vlaneseq
    %v891 = vshrl.u32 %v890, 7
    %v892 = vsub.s32 0, %v891
    %v893 = vrot.slane %v744, %v892
    %v894 = vlaneseq
    %v895 = vshrl.u32 %v894, 7
    %v896 = vsub.s32 0, %v895
    %v897 = vrot.slane %v752, %v896
    %v898 = vlaneseq
    %v899 = vshrl.u32 %v898, 7
    %v900 = vsub.s32 0, %v899
    %v901 = vrot.slane %v754, %v900
    %v902 = vlaneseq
    %v903 = vshrl.u32 %v902, 7
    %v904 = vsub.s32 0, %v903
    %v905 = vrot.slane %v737, %v904
    %v906 = vlaneseq
    %v907 = vshrl.u32 %v906, 7
    %v908 = vsub.s32 0, %v907
    %v909 = vrot.slane %v751, %v908
    %v910 = vlaneseq
    %v911 = vshrl.u32 %v910, 7
    %v912 = vsub.s32 0, %v911
    %v913 = vrot.slane %v753, %v912
    %v914 = vlaneseq
    %v915 = vshrl.u32 %v914, 7
    %v916 = vsub.s32 0, %v915
    %v917 = vrot.slane %v755, %v916
    %v918 = vlaneseq
    %v919 = vshrl.u32 %v918, 7
    %v920 = vsub.s32 0, %v919
    %v921 = vrot.slane %v779, %v920
    %v922 = vlaneseq
    %v923 = vshrl.u32 %v922, 7
    %v924 = vsub.s32 0, %v923
    %v925 = vrot.slane %v793, %v924
    %v926 = vlaneseq
    %v927 = vshrl.u32 %v926, 7
    %v928 = vsub.s32 0, %v927
    %v929 = vrot.slane %v801, %v928
    %v930 = vlaneseq
    %v931 = vshrl.u32 %v930, 7
    %v932 = vsub.s32 0, %v931
    %v933 = vrot.slane %v803, %v932
    %v934 = vlaneseq
    %v935 = vshrl.u32 %v934, 7
    %v936 = vsub.s32 0, %v935
    %v937 = vrot.slane %v786, %v936
    %v938 = vlaneseq
    %v939 = vshrl.u32 %v938, 7
    %v940 = vsub.s32 0, %v939
    %v941 = vrot.slane %v800, %v940
    %v942 = vlaneseq
    %v943 = vshrl.u32 %v942, 7
    %v944 = vsub.s32 0, %v943
    %v945 = vrot.slane %v802, %v944
    %v946 = vlaneseq
    %v947 = vshrl.u32 %v946, 7
    %v948 = vsub.s32 0, %v947
    %v949 = vrot.slane %v804, %v948
    %v950 = vlaneseq
    %v951 = vshrl.u32 %v950, 7
    %v952 = vsub.s32 0, %v951
    %v953 = vrot.slane %v828, %v952
    %v954 = vlaneseq
    %v955 = vshrl.u32 %v954, 7
    %v956 = vsub.s32 0, %v955
    %v957 = vrot.slane %v842, %v956
    %v958 = vlaneseq
    %v959 = vshrl.u32 %v958, 7
    %v960 = vsub.s32 0, %v959
    %v961 = vrot.slane %v850, %v960
    %v962 = vlaneseq
    %v963 = vshrl.u32 %v962, 7
    %v964 = vsub.s32 0, %v963
    %v965 = vrot.slane %v852, %v964
    %v966 = vlaneseq
    %v967 = vshrl.u32 %v966, 7
    %v968 = vsub.s32 0, %v967
    %v969 = vrot.slane %v835, %v968
    %v970 = vlaneseq
    %v971 = vshrl.u32 %v970, 7
    %v972 = vsub.s32 0, %v971
    %v973 = vrot.slane %v849, %v972
    %v974 = vlaneseq
    %v975 = vshrl.u32 %v974, 7
    %v976 = vsub.s32 0, %v975
    %v977 = vrot.slane %v851, %v976
    %v978 = vlaneseq
    %v979 = vshrl.u32 %v978, 7
    %v980 = vsub.s32 0, %v979
    %v981 = vrot.slane %v853, %v980
    %v1014 = vmul.f32 %v436, %v857
    %v1015 = vmul.f32 %v443, %v861
    %v1016 = vmul.f32 %v450, %v865
    %v1017 = vmul.f32 %v457, %v869
    %v1018 = vmul.f32 %v464, %v873
    %v1019 = vmul.f32 %v471, %v877
    %v1020 = vmul.f32 %v478, %v881
    %v1021 = vmul.f32 %v485, %v885
    %v1022 = vmul.f32 %v492, %v889
    %v1023 = vmul.f32 %v499, %v893
    %v1024 = vmul.f32 %v506, %v897
    %v1025 = vmul.f32 %v513, %v901
    %v1026 = vmul.f32 %v520, %v905
    %v1027 = vmul.f32 %v527, %v909
    %v1028 = vmul.f32 %v534, %v913
    %v1029 = vmul.f32 %v541, %v917
    %v1030 = vmul.f32 %v548, %v921
    %v1031 = vmul.f32 %v555, %v925
    %v1032 = vmul.f32 %v562, %v929
    %v1033 = vmul.f32 %v569, %v933
    %v1034 = vmul.f32 %v576, %v937
    %v1035 = vmul.f32 %v583, %v941
    %v1036 = vmul.f32 %v590, %v945
    %v1037 = vmul.f32 %v597, %v949
    %v1038 = vmul.f32 %v604, %v953
    %v1039 = vmul.f32 %v611, %v957
    %v1040 = vmul.f32 %v618, %v961
    %v1041 = vmul.f32 %v625, %v965
    %v1042 = vmul.f32 %v632, %v969
    %v1043 = vmul.f32 %v639, %v973
    %v1044 = vmul.f32 %v646, %v977
    %v1045 = vmul.f32 %v653, %v981
    %v1046 = vcombine.low %v1014, %v1016
    %v1047 = vcombine.high %v1014, %v1016
    %v1049 = vunpack.c.l.s4 1983009808
    %v1050 = vunpack.c.0.s8 %v1049
    %v1051 = vlaneseq
    %v1052 = vshrl.u32 %v1051, 7
    %v1053 = vsub.s32 %v1050, %v1052
    %v1054 = vrot.slane %v1046, %v1053
    %v1056 = vunpack.c.l.s4 1983009808
    %v1057 = vunpack.c.0.s8 %v1056
    %v1058 = vlaneseq
    %v1059 = vshrl.u32 %v1058, 7
    %v1060 = vsub.s32 %v1057, %v1059
    %v1061 = vrot.slane %v1047, %v1060
    %v1062 = vcombine.low %v1015, %v1017
    %v1063 = vcombine.high %v1015, %v1017
    %v1065 = vunpack.c.l.s4 1983009808
    %v1066 = vunpack.c.0.s8 %v1065
    %v1067 = vlaneseq
    %v1068 = vshrl.u32 %v1067, 7
    %v1069 = vsub.s32 %v1066, %v1068
    %v1070 = vrot.slane %v1062, %v1069
    %v1072 = vunpack.c.l.s4 1983009808
    %v1073 = vunpack.c.0.s8 %v1072
    %v1074 = vlaneseq
    %v1075 = vshrl.u32 %v1074, 7
    %v1076 = vsub.s32 %v1073, %v1075
    %v1077 = vrot.slane %v1063, %v1076
    %v1078 = vcombine.low %v1018, %v1020
    %v1079 = vcombine.high %v1018, %v1020
    %v1081 = vunpack.c.l.s4 1983009808
    %v1082 = vunpack.c.0.s8 %v1081
    %v1083 = vlaneseq
    %v1084 = vshrl.u32 %v1083, 7
    %v1085 = vsub.s32 %v1082, %v1084
    %v1086 = vrot.slane %v1078, %v1085
    %v1088 = vunpack.c.l.s4 1983009808
    %v1089 = vunpack.c.0.s8 %v1088
    %v1090 = vlaneseq
    %v1091 = vshrl.u32 %v1090, 7
    %v1092 = vsub.s32 %v1089, %v1091
    %v1093 = vrot.slane %v1079, %v1092
    %v1094 = vcombine.low %v1019, %v1021
    %v1095 = vcombine.high %v1019, %v1021
    %v1097 = vunpack.c.l.s4 1983009808
    %v1098 = vunpack.c.0.s8 %v1097
    %v1099 = vlaneseq
    %v1100 = vshrl.u32 %v1099, 7
    %v1101 = vsub.s32 %v1098, %v1100
    %v1102 = vrot.slane %v1094, %v1101
    %v1104 = vunpack.c.l.s4 1983009808
    %v1105 = vunpack.c.0.s8 %v1104
    %v1106 = vlaneseq
    %v1107 = vshrl.u32 %v1106, 7
    %v1108 = vsub.s32 %v1105, %v1107
    %v1109 = vrot.slane %v1095, %v1108
    %v1110 = vcombine.low %v1054, %v1070
    %v1111 = vcombine.high %v1054, %v1070
    %v1113 = vunpack.c.l.s4 1934713408
    %v1114 = vunpack.c.0.s8 %v1113
    %v1115 = vlaneseq
    %v1116 = vshrl.u32 %v1115, 7
    %v1117 = vsub.s32 %v1114, %v1116
    %v1118 = vrot.slane %v1110, %v1117
    %v1120 = vunpack.c.l.s4 1934713408
    %v1121 = vunpack.c.0.s8 %v1120
    %v1122 = vlaneseq
    %v1123 = vshrl.u32 %v1122, 7
    %v1124 = vsub.s32 %v1121, %v1123
    %v1125 = vrot.slane %v1111, %v1124
    %v1126 = vcombine.low %v1061, %v1077
    %v1127 = vcombine.high %v1061, %v1077
    %v1129 = vunpack.c.l.s4 1934713408
    %v1130 = vunpack.c.0.s8 %v1129
    %v1131 = vlaneseq
    %v1132 = vshrl.u32 %v1131, 7
    %v1133 = vsub.s32 %v1130, %v1132
    %v1134 = vrot.slane %v1126, %v1133
    %v1136 = vunpack.c.l.s4 1934713408
    %v1137 = vunpack.c.0.s8 %v1136
    %v1138 = vlaneseq
    %v1139 = vshrl.u32 %v1138, 7
    %v1140 = vsub.s32 %v1137, %v1139
    %v1141 = vrot.slane %v1127, %v1140
    %v1142 = vcombine.low %v1086, %v1102
    %v1143 = vcombine.high %v1086, %v1102
    %v1145 = vunpack.c.l.s4 1934713408
    %v1146 = vunpack.c.0.s8 %v1145
    %v1147 = vlaneseq
    %v1148 = vshrl.u32 %v1147, 7
    %v1149 = vsub.s32 %v1146, %v1148
    %v1150 = vrot.slane %v1142, %v1149
    %v1152 = vunpack.c.l.s4 1934713408
    %v1153 = vunpack.c.0.s8 %v1152
    %v1154 = vlaneseq
    %v1155 = vshrl.u32 %v1154, 7
    %v1156 = vsub.s32 %v1153, %v1155
    %v1157 = vrot.slane %v1143, %v1156
    %v1158 = vcombine.low %v1093, %v1109
    %v1159 = vcombine.high %v1093, %v1109
    %v1161 = vunpack.c.l.s4 1934713408
    %v1162 = vunpack.c.0.s8 %v1161
    %v1163 = vlaneseq
    %v1164 = vshrl.u32 %v1163, 7
    %v1165 = vsub.s32 %v1162, %v1164
    %v1166 = vrot.slane %v1158, %v1165
    %v1168 = vunpack.c.l.s4 1934713408
    %v1169 = vunpack.c.0.s8 %v1168
    %v1170 = vlaneseq
    %v1171 = vshrl.u32 %v1170, 7
    %v1172 = vsub.s32 %v1169, %v1171
    %v1173 = vrot.slane %v1159, %v1172
    %v1174 = vcombine.low %v1118, %v1150
    %v1175 = vcombine.high %v1118, %v1150
    %v1176 = vcombine.low %v1125, %v1157
    %v1177 = vcombine.high %v1125, %v1157
    %v1178 = vcombine.low %v1134, %v1166
    %v1179 = vcombine.high %v1134, %v1166
    %v1180 = vcombine.low %v1141, %v1173
    %v1181 = vcombine.high %v1141, %v1173
    %v1182 = vcombine.low %v1022, %v1024
    %v1183 = vcombine.high %v1022, %v1024
    %v1185 = vunpack.c.l.s4 1983009808
    %v1186 = vunpack.c.0.s8 %v1185
    %v1187 = vlaneseq
    %v1188 = vshrl.u32 %v1187, 7
    %v1189 = vsub.s32 %v1186, %v1188
    %v1190 = vrot.slane %v1182, %v1189
    %v1192 = vunpack.c.l.s4 1983009808
    %v1193 = vunpack.c.0.s8 %v1192
    %v1194 = vlaneseq
    %v1195 = vshrl.u32 %v1194, 7
    %v1196 = vsub.s32 %v1193, %v1195
    %v1197 = vrot.slane %v1183, %v1196
    %v1198 = vcombine.low %v1023, %v1025
    %v1199 = vcombine.high %v1023, %v1025
    %v1201 = vunpack.c.l.s4 1983009808
    %v1202 = vunpack.c.0.s8 %v1201
    %v1203 = vlaneseq
    %v1204 = vshrl.u32 %v1203, 7
    %v1205 = vsub.s32 %v1202, %v1204
    %v1206 = vrot.slane %v1198, %v1205
    %v1208 = vunpack.c.l.s4 1983009808
    %v1209 = vunpack.c.0.s8 %v1208
    %v1210 = vlaneseq
    %v1211 = vshrl.u32 %v1210, 7
    %v1212 = vsub.s32 %v1209, %v1211
    %v1213 = vrot.slane %v1199, %v1212
    %v1214 = vcombine.low %v1026, %v1028
    %v1215 = vcombine.high %v1026, %v1028
    %v1217 = vunpack.c.l.s4 1983009808
    %v1218 = vunpack.c.0.s8 %v1217
    %v1219 = vlaneseq
    %v1220 = vshrl.u32 %v1219, 7
    %v1221 = vsub.s32 %v1218, %v1220
    %v1222 = vrot.slane %v1214, %v1221
    %v1224 = vunpack.c.l.s4 1983009808
    %v1225 = vunpack.c.0.s8 %v1224
    %v1226 = vlaneseq
    %v1227 = vshrl.u32 %v1226, 7
    %v1228 = vsub.s32 %v1225, %v1227
    %v1229 = vrot.slane %v1215, %v1228
    %v1230 = vcombine.low %v1027, %v1029
    %v1231 = vcombine.high %v1027, %v1029
    %v1233 = vunpack.c.l.s4 1983009808
    %v1234 = vunpack.c.0.s8 %v1233
    %v1235 = vlaneseq
    %v1236 = vshrl.u32 %v1235, 7
    %v1237 = vsub.s32 %v1234, %v1236
    %v1238 = vrot.slane %v1230, %v1237
    %v1240 = vunpack.c.l.s4 1983009808
    %v1241 = vunpack.c.0.s8 %v1240
    %v1242 = vlaneseq
    %v1243 = vshrl.u32 %v1242, 7
    %v1244 = vsub.s32 %v1241, %v1243
    %v1245 = vrot.slane %v1231, %v1244
    %v1246 = vcombine.low %v1190, %v1206
    %v1247 = vcombine.high %v1190, %v1206
    %v1249 = vunpack.c.l.s4 1934713408
    %v1250 = vunpack.c.0.s8 %v1249
    %v1251 = vlaneseq
    %v1252 = vshrl.u32 %v1251, 7
    %v1253 = vsub.s32 %v1250, %v1252
    %v1254 = vrot.slane %v1246, %v1253
    %v1256 = vunpack.c.l.s4 1934713408
    %v1257 = vunpack.c.0.s8 %v1256
    %v1258 = vlaneseq
    %v1259 = vshrl.u32 %v1258, 7
    %v1260 = vsub.s32 %v1257, %v1259
    %v1261 = vrot.slane %v1247, %v1260
    %v1262 = vcombine.low %v1197, %v1213
    %v1263 = vcombine.high %v1197, %v1213
    %v1265 = vunpack.c.l.s4 1934713408
    %v1266 = vunpack.c.0.s8 %v1265
    %v1267 = vlaneseq
    %v1268 = vshrl.u32 %v1267, 7
    %v1269 = vsub.s32 %v1266, %v1268
    %v1270 = vrot.slane %v1262, %v1269
    %v1272 = vunpack.c.l.s4 1934713408
    %v1273 = vunpack.c.0.s8 %v1272
    %v1274 = vlaneseq
    %v1275 = vshrl.u32 %v1274, 7
    %v1276 = vsub.s32 %v1273, %v1275
    %v1277 = vrot.slane %v1263, %v1276
    %v1278 = vcombine.low %v1222, %v1238
    %v1279 = vcombine.high %v1222, %v1238
    %v1281 = vunpack.c.l.s4 1934713408
    %v1282 = vunpack.c.0.s8 %v1281
    %v1283 = vlaneseq
    %v1284 = vshrl.u32 %v1283, 7
    %v1285 = vsub.s32 %v1282, %v1284
    %v1286 = vrot.slane %v1278, %v1285
    %v1288 = vunpack.c.l.s4 1934713408
    %v1289 = vunpack.c.0.s8 %v1288
    %v1290 = vlaneseq
    %v1291 = vshrl.u32 %v1290, 7
    %v1292 = vsub.s32 %v1289, %v1291
    %v1293 = vrot.slane %v1279, %v1292
    %v1294 = vcombine.low %v1229, %v1245
    %v1295 = vcombine.high %v1229, %v1245
    %v1297 = vunpack.c.l.s4 1934713408
    %v1298 = vunpack.c.0.s8 %v1297
    %v1299 = vlaneseq
    %v1300 = vshrl.u32 %v1299, 7
    %v1301 = vsub.s32 %v1298, %v1300
    %v1302 = vrot.slane %v1294, %v1301
    %v1304 = vunpack.c.l.s4 1934713408
    %v1305 = vunpack.c.0.s8 %v1304
    %v1306 = vlaneseq
    %v1307 = vshrl.u32 %v1306, 7
    %v1308 = vsub.s32 %v1305, %v1307
    %v1309 = vrot.slane %v1295, %v1308
    %v1310 = vcombine.low %v1254, %v1286
    %v1311 = vcombine.high %v1254, %v1286
    %v1312 = vcombine.low %v1261, %v1293
    %v1313 = vcombine.high %v1261, %v1293
    %v1314 = vcombine.low %v1270, %v1302
    %v1315 = vcombine.high %v1270, %v1302
    %v1316 = vcombine.low %v1277, %v1309
    %v1317 = vcombine.high %v1277, %v1309
    %v1318 = vcombine.low %v1030, %v1032
    %v1319 = vcombine.high %v1030, %v1032
    %v1321 = vunpack.c.l.s4 1983009808
    %v1322 = vunpack.c.0.s8 %v1321
    %v1323 = vlaneseq
    %v1324 = vshrl.u32 %v1323, 7
    %v1325 = vsub.s32 %v1322, %v1324
    %v1326 = vrot.slane %v1318, %v1325
    %v1328 = vunpack.c.l.s4 1983009808
    %v1329 = vunpack.c.0.s8 %v1328
    %v1330 = vlaneseq
    %v1331 = vshrl.u32 %v1330, 7
    %v1332 = vsub.s32 %v1329, %v1331
    %v1333 = vrot.slane %v1319, %v1332
    %v1334 = vcombine.low %v1031, %v1033
    %v1335 = vcombine.high %v1031, %v1033
    %v1337 = vunpack.c.l.s4 1983009808
    %v1338 = vunpack.c.0.s8 %v1337
    %v1339 = vlaneseq
    %v1340 = vshrl.u32 %v1339, 7
    %v1341 = vsub.s32 %v1338, %v1340
    %v1342 = vrot.slane %v1334, %v1341
    %v1344 = vunpack.c.l.s4 1983009808
    %v1345 = vunpack.c.0.s8 %v1344
    %v1346 = vlaneseq
    %v1347 = vshrl.u32 %v1346, 7
    %v1348 = vsub.s32 %v1345, %v1347
    %v1349 = vrot.slane %v1335, %v1348
    %v1350 = vcombine.low %v1034, %v1036
    %v1351 = vcombine.high %v1034, %v1036
    %v1353 = vunpack.c.l.s4 1983009808
    %v1354 = vunpack.c.0.s8 %v1353
    %v1355 = vlaneseq
    %v1356 = vshrl.u32 %v1355, 7
    %v1357 = vsub.s32 %v1354, %v1356
    %v1358 = vrot.slane %v1350, %v1357
    %v1360 = vunpack.c.l.s4 1983009808
    %v1361 = vunpack.c.0.s8 %v1360
    %v1362 = vlaneseq
    %v1363 = vshrl.u32 %v1362, 7
    %v1364 = vsub.s32 %v1361, %v1363
    %v1365 = vrot.slane %v1351, %v1364
    %v1366 = vcombine.low %v1035, %v1037
    %v1367 = vcombine.high %v1035, %v1037
    %v1369 = vunpack.c.l.s4 1983009808
    %v1370 = vunpack.c.0.s8 %v1369
    %v1371 = vlaneseq
    %v1372 = vshrl.u32 %v1371, 7
    %v1373 = vsub.s32 %v1370, %v1372
    %v1374 = vrot.slane %v1366, %v1373
    %v1376 = vunpack.c.l.s4 1983009808
    %v1377 = vunpack.c.0.s8 %v1376
    %v1378 = vlaneseq
    %v1379 = vshrl.u32 %v1378, 7
    %v1380 = vsub.s32 %v1377, %v1379
    %v1381 = vrot.slane %v1367, %v1380
    %v1382 = vcombine.low %v1326, %v1342
    %v1383 = vcombine.high %v1326, %v1342
    %v1385 = vunpack.c.l.s4 1934713408
    %v1386 = vunpack.c.0.s8 %v1385
    %v1387 = vlaneseq
    %v1388 = vshrl.u32 %v1387, 7
    %v1389 = vsub.s32 %v1386, %v1388
    %v1390 = vrot.slane %v1382, %v1389
    %v1392 = vunpack.c.l.s4 1934713408
    %v1393 = vunpack.c.0.s8 %v1392
    %v1394 = vlaneseq
    %v1395 = vshrl.u32 %v1394, 7
    %v1396 = vsub.s32 %v1393, %v1395
    %v1397 = vrot.slane %v1383, %v1396
    %v1398 = vcombine.low %v1333, %v1349
    %v1399 = vcombine.high %v1333, %v1349
    %v1401 = vunpack.c.l.s4 1934713408
    %v1402 = vunpack.c.0.s8 %v1401
    %v1403 = vlaneseq
    %v1404 = vshrl.u32 %v1403, 7
    %v1405 = vsub.s32 %v1402, %v1404
    %v1406 = vrot.slane %v1398, %v1405
    %v1408 = vunpack.c.l.s4 1934713408
    %v1409 = vunpack.c.0.s8 %v1408
    %v1410 = vlaneseq
    %v1411 = vshrl.u32 %v1410, 7
    %v1412 = vsub.s32 %v1409, %v1411
    %v1413 = vrot.slane %v1399, %v1412
    %v1414 = vcombine.low %v1358, %v1374
    %v1415 = vcombine.high %v1358, %v1374
    %v1417 = vunpack.c.l.s4 1934713408
    %v1418 = vunpack.c.0.s8 %v1417
    %v1419 = vlaneseq
    %v1420 = vshrl.u32 %v1419, 7
    %v1421 = vsub.s32 %v1418, %v1420
    %v1422 = vrot.slane %v1414, %v1421
    %v1424 = vunpack.c.l.s4 1934713408
    %v1425 = vunpack.c.0.s8 %v1424
    %v1426 = vlaneseq
    %v1427 = vshrl.u32 %v1426, 7
    %v1428 = vsub.s32 %v1425, %v1427
    %v1429 = vrot.slane %v1415, %v1428
    %v1430 = vcombine.low %v1365, %v1381
    %v1431 = vcombine.high %v1365, %v1381
    %v1433 = vunpack.c.l.s4 1934713408
    %v1434 = vunpack.c.0.s8 %v1433
    %v1435 = vlaneseq
    %v1436 = vshrl.u32 %v1435, 7
    %v1437 = vsub.s32 %v1434, %v1436
    %v1438 = vrot.slane %v1430, %v1437
    %v1440 = vunpack.c.l.s4 1934713408
    %v1441 = vunpack.c.0.s8 %v1440
    %v1442 = vlaneseq
    %v1443 = vshrl.u32 %v1442, 7
    %v1444 = vsub.s32 %v1441, %v1443
    %v1445 = vrot.slane %v1431, %v1444
    %v1446 = vcombine.low %v1390, %v1422
    %v1447 = vcombine.high %v1390, %v1422
    %v1448 = vcombine.low %v1397, %v1429
    %v1449 = vcombine.high %v1397, %v1429
    %v1450 = vcombine.low %v1406, %v1438
    %v1451 = vcombine.high %v1406, %v1438
    %v1452 = vcombine.low %v1413, %v1445
    %v1453 = vcombine.high %v1413, %v1445
    %v1454 = vcombine.low %v1038, %v1040
    %v1455 = vcombine.high %v1038, %v1040
    %v1457 = vunpack.c.l.s4 1983009808
    %v1458 = vunpack.c.0.s8 %v1457
    %v1459 = vlaneseq
    %v1460 = vshrl.u32 %v1459, 7
    %v1461 = vsub.s32 %v1458, %v1460
    %v1462 = vrot.slane %v1454, %v1461
    %v1464 = vunpack.c.l.s4 1983009808
    %v1465 = vunpack.c.0.s8 %v1464
    %v1466 = vlaneseq
    %v1467 = vshrl.u32 %v1466, 7
    %v1468 = vsub.s32 %v1465, %v1467
    %v1469 = vrot.slane %v1455, %v1468
    %v1470 = vcombine.low %v1039, %v1041
    %v1471 = vcombine.high %v1039, %v1041
    %v1473 = vunpack.c.l.s4 1983009808
    %v1474 = vunpack.c.0.s8 %v1473
    %v1475 = vlaneseq
    %v1476 = vshrl.u32 %v1475, 7
    %v1477 = vsub.s32 %v1474, %v1476
    %v1478 = vrot.slane %v1470, %v1477
    %v1480 = vunpack.c.l.s4 1983009808
    %v1481 = vunpack.c.0.s8 %v1480
    %v1482 = vlaneseq
    %v1483 = vshrl.u32 %v1482, 7
    %v1484 = vsub.s32 %v1481, %v1483
    %v1485 = vrot.slane %v1471, %v1484
    %v1486 = vcombine.low %v1042, %v1044
    %v1487 = vcombine.high %v1042, %v1044
    %v1489 = vunpack.c.l.s4 1983009808
    %v1490 = vunpack.c.0.s8 %v1489
    %v1491 = vlaneseq
    %v1492 = vshrl.u32 %v1491, 7
    %v1493 = vsub.s32 %v1490, %v1492
    %v1494 = vrot.slane %v1486, %v1493
    %v1496 = vunpack.c.l.s4 1983009808
    %v1497 = vunpack.c.0.s8 %v1496
    %v1498 = vlaneseq
    %v1499 = vshrl.u32 %v1498, 7
    %v1500 = vsub.s32 %v1497, %v1499
    %v1501 = vrot.slane %v1487, %v1500
    %v1502 = vcombine.low %v1043, %v1045
    %v1503 = vcombine.high %v1043, %v1045
    %v1505 = vunpack.c.l.s4 1983009808
    %v1506 = vunpack.c.0.s8 %v1505
    %v1507 = vlaneseq
    %v1508 = vshrl.u32 %v1507, 7
    %v1509 = vsub.s32 %v1506, %v1508
    %v1510 = vrot.slane %v1502, %v1509
    %v1512 = vunpack.c.l.s4 1983009808
    %v1513 = vunpack.c.0.s8 %v1512
    %v1514 = vlaneseq
    %v1515 = vshrl.u32 %v1514, 7
    %v1516 = vsub.s32 %v1513, %v1515
    %v1517 = vrot.slane %v1503, %v1516
    %v1518 = vcombine.low %v1462, %v1478
    %v1519 = vcombine.high %v1462, %v1478
    %v1521 = vunpack.c.l.s4 1934713408
    %v1522 = vunpack.c.0.s8 %v1521
    %v1523 = vlaneseq
    %v1524 = vshrl.u32 %v1523, 7
    %v1525 = vsub.s32 %v1522, %v1524
    %v1526 = vrot.slane %v1518, %v1525
    %v1528 = vunpack.c.l.s4 1934713408
    %v1529 = vunpack.c.0.s8 %v1528
    %v1530 = vlaneseq
    %v1531 = vshrl.u32 %v1530, 7
    %v1532 = vsub.s32 %v1529, %v1531
    %v1533 = vrot.slane %v1519, %v1532
    %v1534 = vcombine.low %v1469, %v1485
    %v1535 = vcombine.high %v1469, %v1485
    %v1537 = vunpack.c.l.s4 1934713408
    %v1538 = vunpack.c.0.s8 %v1537
    %v1539 = vlaneseq
    %v1540 = vshrl.u32 %v1539, 7
    %v1541 = vsub.s32 %v1538, %v1540
    %v1542 = vrot.slane %v1534, %v1541
    %v1544 = vunpack.c.l.s4 1934713408
    %v1545 = vunpack.c.0.s8 %v1544
    %v1546 = vlaneseq
    %v1547 = vshrl.u32 %v1546, 7
    %v1548 = vsub.s32 %v1545, %v1547
    %v1549 = vrot.slane %v1535, %v1548
    %v1550 = vcombine.low %v1494, %v1510
    %v1551 = vcombine.high %v1494, %v1510
    %v1553 = vunpack.c.l.s4 1934713408
    %v1554 = vunpack.c.0.s8 %v1553
    %v1555 = vlaneseq
    %v1556 = vshrl.u32 %v1555, 7
    %v1557 = vsub.s32 %v1554, %v1556
    %v1558 = vrot.slane %v1550, %v1557
    %v1560 = vunpack.c.l.s4 1934713408
    %v1561 = vunpack.c.0.s8 %v1560
    %v1562 = vlaneseq
    %v1563 = vshrl.u32 %v1562, 7
    %v1564 = vsub.s32 %v1561, %v1563
    %v1565 = vrot.slane %v1551, %v1564
    %v1566 = vcombine.low %v1501, %v1517
    %v1567 = vcombine.high %v1501, %v1517
    %v1569 = vunpack.c.l.s4 1934713408
    %v1570 = vunpack.c.0.s8 %v1569
    %v1571 = vlaneseq
    %v1572 = vshrl.u32 %v1571, 7
    %v1573 = vsub.s32 %v1570, %v1572
    %v1574 = vrot.slane %v1566, %v1573
    %v1576 = vunpack.c.l.s4 1934713408
    %v1577 = vunpack.c.0.s8 %v1576
    %v1578 = vlaneseq
    %v1579 = vshrl.u32 %v1578, 7
    %v1580 = vsub.s32 %v1577, %v1579
    %v1581 = vrot.slane %v1567, %v1580
    %v1582 = vcombine.low %v1526, %v1558
    %v1583 = vcombine.high %v1526, %v1558
    %v1584 = vcombine.low %v1533, %v1565
    %v1585 = vcombine.high %v1533, %v1565
    %v1586 = vcombine.low %v1542, %v1574
    %v1587 = vcombine.high %v1542, %v1574
    %v1588 = vcombine.low %v1549, %v1581
    %v1589 = vcombine.high %v1549, %v1581
    %1594 = vrot.lane.b32.xlu0 %v1175, 32
    %v1595 = vpop.permute.xlu0 %1594
    %1596 = vrot.lane.b32.xlu0 %v1311, 32
    %v1597 = vpop.permute.xlu0 %1596
    %1598 = vrot.lane.b32.xlu0 %v1447, 32
    %v1599 = vpop.permute.xlu0 %1598
    %1600 = vrot.lane.b32.xlu0 %v1583, 32
    %v1601 = vpop.permute.xlu0 %1600
    %1610 = vrot.lane.b32.xlu0 %v1176, 64
    %v1611 = vpop.permute.xlu0 %1610
    %1612 = vrot.lane.b32.xlu0 %v1312, 64
    %v1613 = vpop.permute.xlu0 %1612
    %1614 = vrot.lane.b32.xlu0 %v1448, 64
    %v1615 = vpop.permute.xlu0 %1614
    %1616 = vrot.lane.b32.xlu0 %v1584, 64
    %v1617 = vpop.permute.xlu0 %1616
    %1626 = vrot.lane.b32.xlu0 %v1177, 96
    %v1627 = vpop.permute.xlu0 %1626
    %1628 = vrot.lane.b32.xlu0 %v1313, 96
    %v1629 = vpop.permute.xlu0 %1628
    %1630 = vrot.lane.b32.xlu0 %v1449, 96
    %v1631 = vpop.permute.xlu0 %1630
    %1632 = vrot.lane.b32.xlu0 %v1585, 96
    %v1633 = vpop.permute.xlu0 %1632
    %1642 = vrot.lane.b32.xlu0 %v1179, 32
    %v1643 = vpop.permute.xlu0 %1642
    %1644 = vrot.lane.b32.xlu0 %v1315, 32
    %v1645 = vpop.permute.xlu0 %1644
    %1646 = vrot.lane.b32.xlu0 %v1451, 32
    %v1647 = vpop.permute.xlu0 %1646
    %1648 = vrot.lane.b32.xlu0 %v1587, 32
    %v1649 = vpop.permute.xlu0 %1648
    %1658 = vrot.lane.b32.xlu0 %v1180, 64
    %v1659 = vpop.permute.xlu0 %1658
    %1660 = vrot.lane.b32.xlu0 %v1316, 64
    %v1661 = vpop.permute.xlu0 %1660
    %1662 = vrot.lane.b32.xlu0 %v1452, 64
    %v1663 = vpop.permute.xlu0 %1662
    %1664 = vrot.lane.b32.xlu0 %v1588, 64
    %v1665 = vpop.permute.xlu0 %1664
    %1674 = vrot.lane.b32.xlu0 %v1181, 96
    %v1675 = vpop.permute.xlu0 %1674
    %1676 = vrot.lane.b32.xlu0 %v1317, 96
    %v1677 = vpop.permute.xlu0 %1676
    %1678 = vrot.lane.b32.xlu0 %v1453, 96
    %v1679 = vpop.permute.xlu0 %1678
    %1680 = vrot.lane.b32.xlu0 %v1589, 96
    %v1681 = vpop.permute.xlu0 %1680
    %v1686 = vsel %vm193, %v1174, %v1595
    %v1687 = vsel %vm193, %v1310, %v1597
    %v1688 = vsel %vm193, %v1446, %v1599
    %v1689 = vsel %vm193, %v1582, %v1601
    %vm1690 = vcmask 523264
    %v1691 = vsel %vm1690, %v1686, %v1611
    %v1692 = vsel %vm1690, %v1687, %v1613
    %v1693 = vsel %vm1690, %v1688, %v1615
    %v1694 = vsel %vm1690, %v1689, %v1617
    %vm1695 = vcmask 785408
    %v1696 = vsel %vm1695, %v1691, %v1627
    %v1697 = vsel %vm1695, %v1692, %v1629
    %v1698 = vsel %vm1695, %v1693, %v1631
    %v1699 = vsel %vm1695, %v1694, %v1633
    %v1700 = vsel %vm193, %v1178, %v1643
    %v1701 = vsel %vm193, %v1314, %v1645
    %v1702 = vsel %vm193, %v1450, %v1647
    %v1703 = vsel %vm193, %v1586, %v1649
    %v1704 = vsel %vm1690, %v1700, %v1659
    %v1705 = vsel %vm1690, %v1701, %v1661
    %v1706 = vsel %vm1690, %v1702, %v1663
    %v1707 = vsel %vm1690, %v1703, %v1665
    %v1708 = vsel %vm1695, %v1704, %v1675
    %v1709 = vsel %vm1695, %v1705, %v1677
    %v1710 = vsel %vm1695, %v1706, %v1679
    %v1711 = vsel %vm1695, %v1707, %v1681
    %vm1712 = vcmask 64512
    %v1714 = vsel %vm1712, %v88, 0
    %1716 = vmatprep.subr.mxu0 0.0
    %1717 = vmatpush1.msra.mxu0 0.0
    %1718 = vmatprep.subr.mxu0 0.0
    %1719 = vmatpush1.msra.mxu0 0.0
    %1720 = vmatprep.subr.mxu0 0.0
    %1721 = vmatpush1.msra.mxu0 0.0
    %1722 = vmatprep.subr.mxu0 0.0
    %1723 = vmatpush1.msra.mxu0 0.0
    %1724 = vmatprep.subr.mxu0 0.0
    %1725 = vmatpush1.msra.mxu0 0.0
    %1726 = vmatprep.subr.mxu0 0.0
    %1727 = vmatpush1.msra.mxu0 0.0
    %1728 = vmatprep.subr.mxu0 0.0
    %1729 = vmatpush1.msra.mxu0 0.0
    %1730 = vmatprep.subr.mxu0 0.0
    %1731 = vmatpush1.msra.mxu0 0.0
    %1732 = vmatprep.subr.mxu0 0.0
    %1733 = vmatpush1.msra.mxu0 0.0
    %1734 = vmatprep.subr.mxu0 0.0
    %1735 = vmatpush1.msra.mxu0 0.0
    %1736 = vmatprep.subr.mxu0 0.0
    %1737 = vmatpush1.msra.mxu0 0.0
    %1738 = vmatprep.subr.mxu0 0.0
    %1739 = vmatpush1.msra.mxu0 0.0
    %1740 = vmatprep.subr.mxu0 0.0
    %1741 = vmatpush1.msra.mxu0 0.0
    %1742 = vmatprep.subr.mxu0 0.0
    %1743 = vmatpush1.msra.mxu0 0.0
    %1744 = vmatprep.subr.mxu0 0.0
    %1745 = vmatpush1.msra.mxu0 0.0
    %1746 = vmatprep.subr.mxu0 %v1708
    %1747 = vmatpush1.msra.mxu0 %v1696
    %1748 = vmatprep.subr.mxu0 0.0
    %1749 = vmatpush2.msra.mxu0 0.0
    %1750 = vmatprep.subr.mxu0 0.0
    %1751 = vmatpush2.msra.mxu0 0.0
    %1752 = vmatprep.subr.mxu0 0.0
    %1753 = vmatpush2.msra.mxu0 0.0
    %1754 = vmatprep.subr.mxu0 0.0
    %1755 = vmatpush2.msra.mxu0 0.0
    %1756 = vmatprep.subr.mxu0 0.0
    %1757 = vmatpush2.msra.mxu0 0.0
    %1758 = vmatprep.subr.mxu0 0.0
    %1759 = vmatpush2.msra.mxu0 0.0
    %1760 = vmatprep.subr.mxu0 0.0
    %1761 = vmatpush2.msra.mxu0 0.0
    %1762 = vmatprep.subr.mxu0 0.0
    %1763 = vmatpush2.msra.mxu0 0.0
    %1764 = vmatprep.subr.mxu0 0.0
    %1765 = vmatpush2.msra.mxu0 0.0
    %1766 = vmatprep.subr.mxu0 0.0
    %1767 = vmatpush2.msra.mxu0 0.0
    %1768 = vmatprep.subr.mxu0 0.0
    %1769 = vmatpush2.msra.mxu0 0.0
    %1770 = vmatprep.subr.mxu0 0.0
    %1771 = vmatpush2.msra.mxu0 0.0
    %1772 = vmatprep.subr.mxu0 0.0
    %1773 = vmatpush2.msra.mxu0 0.0
    %1774 = vmatprep.subr.mxu0 0.0
    %1775 = vmatpush2.msra.mxu0 0.0
    %1776 = vmatprep.subr.mxu0 0.0
    %1777 = vmatpush2.msra.mxu0 0.0
    %1778 = vmatprep.subr.mxu0 0.0
    %1779 = vmatpush2.msra.mxu0 0.0
    %1780 = vmatprep.mubr.f32.mxu0 0.0
    %1781 = vmatmul.mubr.f32.gmra.mxu0 %v1714
    %v1782 = vpop.f32.mrf.mxu0
    %v1783 = vadd.f32 %v105, %v1782
    %v1784 = vpop.f32.mrf.mxu0
    %v1785 = vadd.f32 %v106, %v1784
    %1786 = vdwg.mxu0
    %v1788 = vsel %vm1712, %v89, 0
    %1790 = vmatprep.subr.mxu0 0.0
    %1791 = vmatpush1.msra.mxu0 0.0
    %1792 = vmatprep.subr.mxu0 0.0
    %1793 = vmatpush1.msra.mxu0 0.0
    %1794 = vmatprep.subr.mxu0 0.0
    %1795 = vmatpush1.msra.mxu0 0.0
    %1796 = vmatprep.subr.mxu0 0.0
    %1797 = vmatpush1.msra.mxu0 0.0
    %1798 = vmatprep.subr.mxu0 0.0
    %1799 = vmatpush1.msra.mxu0 0.0
    %1800 = vmatprep.subr.mxu0 0.0
    %1801 = vmatpush1.msra.mxu0 0.0
    %1802 = vmatprep.subr.mxu0 0.0
    %1803 = vmatpush1.msra.mxu0 0.0
    %1804 = vmatprep.subr.mxu0 0.0
    %1805 = vmatpush1.msra.mxu0 0.0
    %1806 = vmatprep.subr.mxu0 0.0
    %1807 = vmatpush1.msra.mxu0 0.0
    %1808 = vmatprep.subr.mxu0 0.0
    %1809 = vmatpush1.msra.mxu0 0.0
    %1810 = vmatprep.subr.mxu0 0.0
    %1811 = vmatpush1.msra.mxu0 0.0
    %1812 = vmatprep.subr.mxu0 0.0
    %1813 = vmatpush1.msra.mxu0 0.0
    %1814 = vmatprep.subr.mxu0 0.0
    %1815 = vmatpush1.msra.mxu0 0.0
    %1816 = vmatprep.subr.mxu0 0.0
    %1817 = vmatpush1.msra.mxu0 0.0
    %1818 = vmatprep.subr.mxu0 0.0
    %1819 = vmatpush1.msra.mxu0 0.0
    %1820 = vmatprep.subr.mxu0 %v1709
    %1821 = vmatpush1.msra.mxu0 %v1697
    %1822 = vmatprep.subr.mxu0 0.0
    %1823 = vmatpush2.msra.mxu0 0.0
    %1824 = vmatprep.subr.mxu0 0.0
    %1825 = vmatpush2.msra.mxu0 0.0
    %1826 = vmatprep.subr.mxu0 0.0
    %1827 = vmatpush2.msra.mxu0 0.0
    %1828 = vmatprep.subr.mxu0 0.0
    %1829 = vmatpush2.msra.mxu0 0.0
    %1830 = vmatprep.subr.mxu0 0.0
    %1831 = vmatpush2.msra.mxu0 0.0
    %1832 = vmatprep.subr.mxu0 0.0
    %1833 = vmatpush2.msra.mxu0 0.0
    %1834 = vmatprep.subr.mxu0 0.0
    %1835 = vmatpush2.msra.mxu0 0.0
    %1836 = vmatprep.subr.mxu0 0.0
    %1837 = vmatpush2.msra.mxu0 0.0
    %1838 = vmatprep.subr.mxu0 0.0
    %1839 = vmatpush2.msra.mxu0 0.0
    %1840 = vmatprep.subr.mxu0 0.0
    %1841 = vmatpush2.msra.mxu0 0.0
    %1842 = vmatprep.subr.mxu0 0.0
    %1843 = vmatpush2.msra.mxu0 0.0
    %1844 = vmatprep.subr.mxu0 0.0
    %1845 = vmatpush2.msra.mxu0 0.0
    %1846 = vmatprep.subr.mxu0 0.0
    %1847 = vmatpush2.msra.mxu0 0.0
    %1848 = vmatprep.subr.mxu0 0.0
    %1849 = vmatpush2.msra.mxu0 0.0
    %1850 = vmatprep.subr.mxu0 0.0
    %1851 = vmatpush2.msra.mxu0 0.0
    %1852 = vmatprep.subr.mxu0 0.0
    %1853 = vmatpush2.msra.mxu0 0.0
    %1854 = vmatprep.mubr.f32.mxu0 0.0
    %1855 = vmatmul.mubr.f32.gmra.mxu0 %v1788
    %v1856 = vpop.f32.mrf.mxu0
    %v1857 = vadd.f32 %v105, %v1856
    %v1858 = vpop.f32.mrf.mxu0
    %v1859 = vadd.f32 %v106, %v1858
    %1860 = vdwg.mxu0
    %v1862 = vsel %vm1712, %v90, 0
    %1864 = vmatprep.subr.mxu0 0.0
    %1865 = vmatpush1.msra.mxu0 0.0
    %1866 = vmatprep.subr.mxu0 0.0
    %1867 = vmatpush1.msra.mxu0 0.0
    %1868 = vmatprep.subr.mxu0 0.0
    %1869 = vmatpush1.msra.mxu0 0.0
    %1870 = vmatprep.subr.mxu0 0.0
    %1871 = vmatpush1.msra.mxu0 0.0
    %1872 = vmatprep.subr.mxu0 0.0
    %1873 = vmatpush1.msra.mxu0 0.0
    %1874 = vmatprep.subr.mxu0 0.0
    %1875 = vmatpush1.msra.mxu0 0.0
    %1876 = vmatprep.subr.mxu0 0.0
    %1877 = vmatpush1.msra.mxu0 0.0
    %1878 = vmatprep.subr.mxu0 0.0
    %1879 = vmatpush1.msra.mxu0 0.0
    %1880 = vmatprep.subr.mxu0 0.0
    %1881 = vmatpush1.msra.mxu0 0.0
    %1882 = vmatprep.subr.mxu0 0.0
    %1883 = vmatpush1.msra.mxu0 0.0
    %1884 = vmatprep.subr.mxu0 0.0
    %1885 = vmatpush1.msra.mxu0 0.0
    %1886 = vmatprep.subr.mxu0 0.0
    %1887 = vmatpush1.msra.mxu0 0.0
    %1888 = vmatprep.subr.mxu0 0.0
    %1889 = vmatpush1.msra.mxu0 0.0
    %1890 = vmatprep.subr.mxu0 0.0
    %1891 = vmatpush1.msra.mxu0 0.0
    %1892 = vmatprep.subr.mxu0 0.0
    %1893 = vmatpush1.msra.mxu0 0.0
    %1894 = vmatprep.subr.mxu0 %v1710
    %1895 = vmatpush1.msra.mxu0 %v1698
    %1896 = vmatprep.subr.mxu0 0.0
    %1897 = vmatpush2.msra.mxu0 0.0
    %1898 = vmatprep.subr.mxu0 0.0
    %1899 = vmatpush2.msra.mxu0 0.0
    %1900 = vmatprep.subr.mxu0 0.0
    %1901 = vmatpush2.msra.mxu0 0.0
    %1902 = vmatprep.subr.mxu0 0.0
    %1903 = vmatpush2.msra.mxu0 0.0
    %1904 = vmatprep.subr.mxu0 0.0
    %1905 = vmatpush2.msra.mxu0 0.0
    %1906 = vmatprep.subr.mxu0 0.0
    %1907 = vmatpush2.msra.mxu0 0.0
    %1908 = vmatprep.subr.mxu0 0.0
    %1909 = vmatpush2.msra.mxu0 0.0
    %1910 = vmatprep.subr.mxu0 0.0
    %1911 = vmatpush2.msra.mxu0 0.0
    %1912 = vmatprep.subr.mxu0 0.0
    %1913 = vmatpush2.msra.mxu0 0.0
    %1914 = vmatprep.subr.mxu0 0.0
    %1915 = vmatpush2.msra.mxu0 0.0
    %1916 = vmatprep.subr.mxu0 0.0
    %1917 = vmatpush2.msra.mxu0 0.0
    %1918 = vmatprep.subr.mxu0 0.0
    %1919 = vmatpush2.msra.mxu0 0.0
    %1920 = vmatprep.subr.mxu0 0.0
    %1921 = vmatpush2.msra.mxu0 0.0
    %1922 = vmatprep.subr.mxu0 0.0
    %1923 = vmatpush2.msra.mxu0 0.0
    %1924 = vmatprep.subr.mxu0 0.0
    %1925 = vmatpush2.msra.mxu0 0.0
    %1926 = vmatprep.subr.mxu0 0.0
    %1927 = vmatpush2.msra.mxu0 0.0
    %1928 = vmatprep.mubr.f32.mxu0 0.0
    %1929 = vmatmul.mubr.f32.gmra.mxu0 %v1862
    %v1930 = vpop.f32.mrf.mxu0
    %v1931 = vadd.f32 %v105, %v1930
    %v1932 = vpop.f32.mrf.mxu0
    %v1933 = vadd.f32 %v106, %v1932
    %1934 = vdwg.mxu0
    %v1936 = vsel %vm1712, %v91, 0
    %1938 = vmatprep.subr.mxu0 0.0
    %1939 = vmatpush1.msra.mxu0 0.0
    %1940 = vmatprep.subr.mxu0 0.0
    %1941 = vmatpush1.msra.mxu0 0.0
    %1942 = vmatprep.subr.mxu0 0.0
    %1943 = vmatpush1.msra.mxu0 0.0
    %1944 = vmatprep.subr.mxu0 0.0
    %1945 = vmatpush1.msra.mxu0 0.0
    %1946 = vmatprep.subr.mxu0 0.0
    %1947 = vmatpush1.msra.mxu0 0.0
    %1948 = vmatprep.subr.mxu0 0.0
    %1949 = vmatpush1.msra.mxu0 0.0
    %1950 = vmatprep.subr.mxu0 0.0
    %1951 = vmatpush1.msra.mxu0 0.0
    %1952 = vmatprep.subr.mxu0 0.0
    %1953 = vmatpush1.msra.mxu0 0.0
    %1954 = vmatprep.subr.mxu0 0.0
    %1955 = vmatpush1.msra.mxu0 0.0
    %1956 = vmatprep.subr.mxu0 0.0
    %1957 = vmatpush1.msra.mxu0 0.0
    %1958 = vmatprep.subr.mxu0 0.0
    %1959 = vmatpush1.msra.mxu0 0.0
    %1960 = vmatprep.subr.mxu0 0.0
    %1961 = vmatpush1.msra.mxu0 0.0
    %1962 = vmatprep.subr.mxu0 0.0
    %1963 = vmatpush1.msra.mxu0 0.0
    %1964 = vmatprep.subr.mxu0 0.0
    %1965 = vmatpush1.msra.mxu0 0.0
    %1966 = vmatprep.subr.mxu0 0.0
    %1967 = vmatpush1.msra.mxu0 0.0
    %1968 = vmatprep.subr.mxu0 %v1711
    %1969 = vmatpush1.msra.mxu0 %v1699
    %1970 = vmatprep.subr.mxu0 0.0
    %1971 = vmatpush2.msra.mxu0 0.0
    %1972 = vmatprep.subr.mxu0 0.0
    %1973 = vmatpush2.msra.mxu0 0.0
    %1974 = vmatprep.subr.mxu0 0.0
    %1975 = vmatpush2.msra.mxu0 0.0
    %1976 = vmatprep.subr.mxu0 0.0
    %1977 = vmatpush2.msra.mxu0 0.0
    %1978 = vmatprep.subr.mxu0 0.0
    %1979 = vmatpush2.msra.mxu0 0.0
    %1980 = vmatprep.subr.mxu0 0.0
    %1981 = vmatpush2.msra.mxu0 0.0
    %1982 = vmatprep.subr.mxu0 0.0
    %1983 = vmatpush2.msra.mxu0 0.0
    %1984 = vmatprep.subr.mxu0 0.0
    %1985 = vmatpush2.msra.mxu0 0.0
    %1986 = vmatprep.subr.mxu0 0.0
    %1987 = vmatpush2.msra.mxu0 0.0
    %1988 = vmatprep.subr.mxu0 0.0
    %1989 = vmatpush2.msra.mxu0 0.0
    %1990 = vmatprep.subr.mxu0 0.0
    %1991 = vmatpush2.msra.mxu0 0.0
    %1992 = vmatprep.subr.mxu0 0.0
    %1993 = vmatpush2.msra.mxu0 0.0
    %1994 = vmatprep.subr.mxu0 0.0
    %1995 = vmatpush2.msra.mxu0 0.0
    %1996 = vmatprep.subr.mxu0 0.0
    %1997 = vmatpush2.msra.mxu0 0.0
    %1998 = vmatprep.subr.mxu0 0.0
    %1999 = vmatpush2.msra.mxu0 0.0
    %2000 = vmatprep.subr.mxu0 0.0
    %2001 = vmatpush2.msra.mxu0 0.0
    %2002 = vmatprep.mubr.f32.mxu0 0.0
    %2003 = vmatmul.mubr.f32.gmra.mxu0 %v1936
    %v2004 = vpop.f32.mrf.mxu0
    %v2005 = vadd.f32 %v105, %v2004
    %v2006 = vpop.f32.mrf.mxu0
    %v2007 = vadd.f32 %v106, %v2006
    %2008 = vdwg.mxu0
    %v2009 = vmul.f32 %v1783, 0.5
    %v2010 = vmul.f32 %v1785, 0.5
    %v2011 = vmul.f32 %v1857, 0.5
    %v2012 = vmul.f32 %v1859, 0.5
    %v2013 = vmul.f32 %v1931, 0.5
    %v2014 = vmul.f32 %v1933, 0.5
    %v2015 = vmul.f32 %v2005, 0.5
    %v2016 = vmul.f32 %v2007, 0.5
    %v2017 = vmul.f32 %v1783, %v1783
    %v2018 = vmul.f32 %v1785, %v1785
    %v2019 = vmul.f32 %v1857, %v1857
    %v2020 = vmul.f32 %v1859, %v1859
    %v2021 = vmul.f32 %v1931, %v1931
    %v2022 = vmul.f32 %v1933, %v1933
    %v2023 = vmul.f32 %v2005, %v2005
    %v2024 = vmul.f32 %v2007, %v2007
    %v2025 = vmul.f32 %v2017, %v1783
    %v2026 = vmul.f32 %v2018, %v1785
    %v2027 = vmul.f32 %v2019, %v1857
    %v2028 = vmul.f32 %v2020, %v1859
    %v2029 = vmul.f32 %v2021, %v1931
    %v2030 = vmul.f32 %v2022, %v1933
    %v2031 = vmul.f32 %v2023, %v2005
    %v2032 = vmul.f32 %v2024, %v2007
    %v2033 = vmul.f32 %v2025, 0.044715
    %v2034 = vmul.f32 %v2026, 0.044715
    %v2035 = vmul.f32 %v2027, 0.044715
    %v2036 = vmul.f32 %v2028, 0.044715
    %v2037 = vmul.f32 %v2029, 0.044715
    %v2038 = vmul.f32 %v2030, 0.044715
    %v2039 = vmul.f32 %v2031, 0.044715
    %v2040 = vmul.f32 %v2032, 0.044715
    %v2041 = vadd.f32 %v1783, %v2033
    %v2042 = vadd.f32 %v1785, %v2034
    %v2043 = vadd.f32 %v1857, %v2035
    %v2044 = vadd.f32 %v1859, %v2036
    %v2045 = vadd.f32 %v1931, %v2037
    %v2046 = vadd.f32 %v1933, %v2038
    %v2047 = vadd.f32 %v2005, %v2039
    %v2048 = vadd.f32 %v2007, %v2040
    %v2049 = vmul.f32 %v2041, 0.7978846
    %v2050 = vmul.f32 %v2042, 0.7978846
    %v2051 = vmul.f32 %v2043, 0.7978846
    %v2052 = vmul.f32 %v2044, 0.7978846
    %v2053 = vmul.f32 %v2045, 0.7978846
    %v2054 = vmul.f32 %v2046, 0.7978846
    %v2055 = vmul.f32 %v2047, 0.7978846
    %v2056 = vmul.f32 %v2048, 0.7978846
    %v2057 = vtanh.pop %v2049
    %v2058 = vtanh.pop %v2050
    %v2059 = vtanh.pop %v2051
    %v2060 = vtanh.pop %v2052
    %v2061 = vtanh.pop %v2053
    %v2062 = vtanh.pop %v2054
    %v2063 = vtanh.pop %v2055
    %v2064 = vtanh.pop %v2056
    %v2065 = vadd.f32 %v2057, 1.0
    %v2066 = vadd.f32 %v2058, 1.0
    %v2067 = vadd.f32 %v2059, 1.0
    %v2068 = vadd.f32 %v2060, 1.0
    %v2069 = vadd.f32 %v2061, 1.0
    %v2070 = vadd.f32 %v2062, 1.0
    %v2071 = vadd.f32 %v2063, 1.0
    %v2072 = vadd.f32 %v2064, 1.0
    %v2073 = vmul.f32 %v2009, %v2065
    %v2074 = vmul.f32 %v2010, %v2066
    %v2075 = vmul.f32 %v2011, %v2067
    %v2076 = vmul.f32 %v2012, %v2068
    %v2077 = vmul.f32 %v2013, %v2069
    %v2078 = vmul.f32 %v2014, %v2070
    %v2079 = vmul.f32 %v2015, %v2071
    %v2080 = vmul.f32 %v2016, %v2072
    %v2082 = vlaneseq
    %v2083 = vshrl.u32 %v2082, 7
    %v2084 = vsub.s32 0, %v2083
    %v2085 = vrot.slane %v171, %v2084
    %v2086 = vlaneseq
    %v2087 = vshrl.u32 %v2086, 7
    %v2088 = vsub.s32 1, %v2087
    %v2089 = vrot.slane %v171, %v2088
    %2092 = vmatprep.subr.mxu0 %v138
    %2093 = vmatpush1.msra.mxu0 %v137
    %2094 = vmatprep.subr.mxu0 %v136
    %2095 = vmatpush1.msra.mxu0 %v135
    %2096 = vmatprep.subr.mxu0 %v134
    %2097 = vmatpush1.msra.mxu0 %v133
    %2098 = vmatprep.subr.mxu0 %v132
    %2099 = vmatpush1.msra.mxu0 %v131
    %2100 = vmatprep.subr.mxu0 %v130
    %2101 = vmatpush1.msra.mxu0 %v129
    %2102 = vmatprep.subr.mxu0 %v128
    %2103 = vmatpush1.msra.mxu0 %v127
    %2104 = vmatprep.subr.mxu0 %v126
    %2105 = vmatpush1.msra.mxu0 %v125
    %2106 = vmatprep.subr.mxu0 %v124
    %2107 = vmatpush1.msra.mxu0 %v123
    %2108 = vmatprep.subr.mxu0 %v122
    %2109 = vmatpush1.msra.mxu0 %v121
    %2110 = vmatprep.subr.mxu0 %v120
    %2111 = vmatpush1.msra.mxu0 %v119
    %2112 = vmatprep.subr.mxu0 %v118
    %2113 = vmatpush1.msra.mxu0 %v117
    %2114 = vmatprep.subr.mxu0 %v116
    %2115 = vmatpush1.msra.mxu0 %v115
    %2116 = vmatprep.subr.mxu0 %v114
    %2117 = vmatpush1.msra.mxu0 %v113
    %2118 = vmatprep.subr.mxu0 %v112
    %2119 = vmatpush1.msra.mxu0 %v111
    %2120 = vmatprep.subr.mxu0 %v110
    %2121 = vmatpush1.msra.mxu0 %v109
    %2122 = vmatprep.subr.mxu0 %v108
    %2123 = vmatpush1.msra.mxu0 %v107
    %2124 = vmatprep.subr.mxu0 %v170
    %2125 = vmatpush2.msra.mxu0 %v169
    %2126 = vmatprep.subr.mxu0 %v168
    %2127 = vmatpush2.msra.mxu0 %v167
    %2128 = vmatprep.subr.mxu0 %v166
    %2129 = vmatpush2.msra.mxu0 %v165
    %2130 = vmatprep.subr.mxu0 %v164
    %2131 = vmatpush2.msra.mxu0 %v163
    %2132 = vmatprep.subr.mxu0 %v162
    %2133 = vmatpush2.msra.mxu0 %v161
    %2134 = vmatprep.subr.mxu0 %v160
    %2135 = vmatpush2.msra.mxu0 %v159
    %2136 = vmatprep.subr.mxu0 %v158
    %2137 = vmatpush2.msra.mxu0 %v157
    %2138 = vmatprep.subr.mxu0 %v156
    %2139 = vmatpush2.msra.mxu0 %v155
    %2140 = vmatprep.subr.mxu0 %v154
    %2141 = vmatpush2.msra.mxu0 %v153
    %2142 = vmatprep.subr.mxu0 %v152
    %2143 = vmatpush2.msra.mxu0 %v151
    %2144 = vmatprep.subr.mxu0 %v150
    %2145 = vmatpush2.msra.mxu0 %v149
    %2146 = vmatprep.subr.mxu0 %v148
    %2147 = vmatpush2.msra.mxu0 %v147
    %2148 = vmatprep.subr.mxu0 %v146
    %2149 = vmatpush2.msra.mxu0 %v145
    %2150 = vmatprep.subr.mxu0 %v144
    %2151 = vmatpush2.msra.mxu0 %v143
    %2152 = vmatprep.subr.mxu0 %v142
    %2153 = vmatpush2.msra.mxu0 %v141
    %2154 = vmatprep.subr.mxu0 %v140
    %2155 = vmatpush2.msra.mxu0 %v139
    %2156 = vmatprep.mubr.f32.mxu0 %v2074
    %2157 = vmatmul.mubr.f32.gmra.mxu0 %v2073
    %v2158 = vpop.f32.mrf.mxu0
    %v2159 = vadd.f32 %v2085, %v2158
    %v2160 = vpop.f32.mrf.mxu0
    %v2161 = vadd.f32 %v2089, %v2160
    %2162 = vmatprep.mubr.f32.mxu0 %v2076
    %2163 = vmatmul.mubr.f32.gmra.mxu0 %v2075
    %v2164 = vpop.f32.mrf.mxu0
    %v2165 = vadd.f32 %v2085, %v2164
    %v2166 = vpop.f32.mrf.mxu0
    %v2167 = vadd.f32 %v2089, %v2166
    %2168 = vmatprep.mubr.f32.mxu0 %v2078
    %2169 = vmatmul.mubr.f32.gmra.mxu0 %v2077
    %v2170 = vpop.f32.mrf.mxu0
    %v2171 = vadd.f32 %v2085, %v2170
    %v2172 = vpop.f32.mrf.mxu0
    %v2173 = vadd.f32 %v2089, %v2172
    %2174 = vmatprep.mubr.f32.mxu0 %v2080
    %2175 = vmatmul.mubr.f32.gmra.mxu0 %v2079
    %v2176 = vpop.f32.mrf.mxu0
    %v2177 = vadd.f32 %v2085, %v2176
    %v2178 = vpop.f32.mrf.mxu0
    %v2179 = vadd.f32 %v2089, %v2178
    %2180 = vdwg.mxu0
    %v2181 = vmul.f32 %v2159, 0.5
    %v2182 = vmul.f32 %v2161, 0.5
    %v2183 = vmul.f32 %v2165, 0.5
    %v2184 = vmul.f32 %v2167, 0.5
    %v2185 = vmul.f32 %v2171, 0.5
    %v2186 = vmul.f32 %v2173, 0.5
    %v2187 = vmul.f32 %v2177, 0.5
    %v2188 = vmul.f32 %v2179, 0.5
    %v2189 = vmul.f32 %v2159, %v2159
    %v2190 = vmul.f32 %v2161, %v2161
    %v2191 = vmul.f32 %v2165, %v2165
    %v2192 = vmul.f32 %v2167, %v2167
    %v2193 = vmul.f32 %v2171, %v2171
    %v2194 = vmul.f32 %v2173, %v2173
    %v2195 = vmul.f32 %v2177, %v2177
    %v2196 = vmul.f32 %v2179, %v2179
    %v2197 = vmul.f32 %v2189, %v2159
    %v2198 = vmul.f32 %v2190, %v2161
    %v2199 = vmul.f32 %v2191, %v2165
    %v2200 = vmul.f32 %v2192, %v2167
    %v2201 = vmul.f32 %v2193, %v2171
    %v2202 = vmul.f32 %v2194, %v2173
    %v2203 = vmul.f32 %v2195, %v2177
    %v2204 = vmul.f32 %v2196, %v2179
    %v2205 = vmul.f32 %v2197, 0.044715
    %v2206 = vmul.f32 %v2198, 0.044715
    %v2207 = vmul.f32 %v2199, 0.044715
    %v2208 = vmul.f32 %v2200, 0.044715
    %v2209 = vmul.f32 %v2201, 0.044715
    %v2210 = vmul.f32 %v2202, 0.044715
    %v2211 = vmul.f32 %v2203, 0.044715
    %v2212 = vmul.f32 %v2204, 0.044715
    %v2213 = vadd.f32 %v2159, %v2205
    %v2214 = vadd.f32 %v2161, %v2206
    %v2215 = vadd.f32 %v2165, %v2207
    %v2216 = vadd.f32 %v2167, %v2208
    %v2217 = vadd.f32 %v2171, %v2209
    %v2218 = vadd.f32 %v2173, %v2210
    %v2219 = vadd.f32 %v2177, %v2211
    %v2220 = vadd.f32 %v2179, %v2212
    %v2221 = vmul.f32 %v2213, 0.7978846
    %v2222 = vmul.f32 %v2214, 0.7978846
    %v2223 = vmul.f32 %v2215, 0.7978846
    %v2224 = vmul.f32 %v2216, 0.7978846
    %v2225 = vmul.f32 %v2217, 0.7978846
    %v2226 = vmul.f32 %v2218, 0.7978846
    %v2227 = vmul.f32 %v2219, 0.7978846
    %v2228 = vmul.f32 %v2220, 0.7978846
    %v2229 = vtanh.pop %v2221
    %v2230 = vtanh.pop %v2222
    %v2231 = vtanh.pop %v2223
    %v2232 = vtanh.pop %v2224
    %v2233 = vtanh.pop %v2225
    %v2234 = vtanh.pop %v2226
    %v2235 = vtanh.pop %v2227
    %v2236 = vtanh.pop %v2228
    %v2237 = vadd.f32 %v2229, 1.0
    %v2238 = vadd.f32 %v2230, 1.0
    %v2239 = vadd.f32 %v2231, 1.0
    %v2240 = vadd.f32 %v2232, 1.0
    %v2241 = vadd.f32 %v2233, 1.0
    %v2242 = vadd.f32 %v2234, 1.0
    %v2243 = vadd.f32 %v2235, 1.0
    %v2244 = vadd.f32 %v2236, 1.0
    %v2245 = vmul.f32 %v2181, %v2237
    %v2246 = vmul.f32 %v2182, %v2238
    %v2247 = vmul.f32 %v2183, %v2239
    %v2248 = vmul.f32 %v2184, %v2240
    %v2249 = vmul.f32 %v2185, %v2241
    %v2250 = vmul.f32 %v2186, %v2242
    %v2251 = vmul.f32 %v2187, %v2243
    %v2252 = vmul.f32 %v2188, %v2244
    %2257 = vrot.lane.b32.xlu0 %v2245, 96
    %v2258 = vpop.permute.xlu0 %2257
    %2259 = vrot.lane.b32.xlu0 %v2247, 96
    %v2260 = vpop.permute.xlu0 %2259
    %2261 = vrot.lane.b32.xlu0 %v2249, 96
    %v2262 = vpop.permute.xlu0 %2261
    %2263 = vrot.lane.b32.xlu0 %v2251, 96
    %v2264 = vpop.permute.xlu0 %2263
    %2269 = vrot.lane.b32.xlu0 %v2245, 64
    %v2270 = vpop.permute.xlu0 %2269
    %2271 = vrot.lane.b32.xlu0 %v2247, 64
    %v2272 = vpop.permute.xlu0 %2271
    %2273 = vrot.lane.b32.xlu0 %v2249, 64
    %v2274 = vpop.permute.xlu0 %2273
    %2275 = vrot.lane.b32.xlu0 %v2251, 64
    %v2276 = vpop.permute.xlu0 %2275
    %2281 = vrot.lane.b32.xlu0 %v2245, 32
    %v2282 = vpop.permute.xlu0 %2281
    %2283 = vrot.lane.b32.xlu0 %v2247, 32
    %v2284 = vpop.permute.xlu0 %2283
    %2285 = vrot.lane.b32.xlu0 %v2249, 32
    %v2286 = vpop.permute.xlu0 %2285
    %2287 = vrot.lane.b32.xlu0 %v2251, 32
    %v2288 = vpop.permute.xlu0 %2287
    %2297 = vrot.lane.b32.xlu0 %v2246, 96
    %v2298 = vpop.permute.xlu0 %2297
    %2299 = vrot.lane.b32.xlu0 %v2248, 96
    %v2300 = vpop.permute.xlu0 %2299
    %2301 = vrot.lane.b32.xlu0 %v2250, 96
    %v2302 = vpop.permute.xlu0 %2301
    %2303 = vrot.lane.b32.xlu0 %v2252, 96
    %v2304 = vpop.permute.xlu0 %2303
    %2309 = vrot.lane.b32.xlu0 %v2246, 64
    %v2310 = vpop.permute.xlu0 %2309
    %2311 = vrot.lane.b32.xlu0 %v2248, 64
    %v2312 = vpop.permute.xlu0 %2311
    %2313 = vrot.lane.b32.xlu0 %v2250, 64
    %v2314 = vpop.permute.xlu0 %2313
    %2315 = vrot.lane.b32.xlu0 %v2252, 64
    %v2316 = vpop.permute.xlu0 %2315
    %2321 = vrot.lane.b32.xlu0 %v2246, 32
    %v2322 = vpop.permute.xlu0 %2321
    %2323 = vrot.lane.b32.xlu0 %v2248, 32
    %v2324 = vpop.permute.xlu0 %2323
    %2325 = vrot.lane.b32.xlu0 %v2250, 32
    %v2326 = vpop.permute.xlu0 %2325
    %2327 = vrot.lane.b32.xlu0 %v2252, 32
    %v2328 = vpop.permute.xlu0 %2327
    %v2333 = vcombine.low %v2245, %v2270
    %v2334 = vcombine.high %v2245, %v2270
    %v2336 = vunpack.c.l.s4 1983009808
    %v2337 = vunpack.c.0.s8 %v2336
    %v2338 = vlaneseq
    %v2339 = vshrl.u32 %v2338, 7
    %v2340 = vsub.s32 %v2337, %v2339
    %v2341 = vrot.slane %v2333, %v2340
    %v2343 = vunpack.c.l.s4 1983009808
    %v2344 = vunpack.c.0.s8 %v2343
    %v2345 = vlaneseq
    %v2346 = vshrl.u32 %v2345, 7
    %v2347 = vsub.s32 %v2344, %v2346
    %v2348 = vrot.slane %v2334, %v2347
    %v2349 = vcombine.low %v2258, %v2282
    %v2350 = vcombine.high %v2258, %v2282
    %v2352 = vunpack.c.l.s4 1983009808
    %v2353 = vunpack.c.0.s8 %v2352
    %v2354 = vlaneseq
    %v2355 = vshrl.u32 %v2354, 7
    %v2356 = vsub.s32 %v2353, %v2355
    %v2357 = vrot.slane %v2349, %v2356
    %v2359 = vunpack.c.l.s4 1983009808
    %v2360 = vunpack.c.0.s8 %v2359
    %v2361 = vlaneseq
    %v2362 = vshrl.u32 %v2361, 7
    %v2363 = vsub.s32 %v2360, %v2362
    %v2364 = vrot.slane %v2350, %v2363
    %v2365 = vcombine.low %v2246, %v2310
    %v2366 = vcombine.high %v2246, %v2310
    %v2368 = vunpack.c.l.s4 1983009808
    %v2369 = vunpack.c.0.s8 %v2368
    %v2370 = vlaneseq
    %v2371 = vshrl.u32 %v2370, 7
    %v2372 = vsub.s32 %v2369, %v2371
    %v2373 = vrot.slane %v2365, %v2372
    %v2375 = vunpack.c.l.s4 1983009808
    %v2376 = vunpack.c.0.s8 %v2375
    %v2377 = vlaneseq
    %v2378 = vshrl.u32 %v2377, 7
    %v2379 = vsub.s32 %v2376, %v2378
    %v2380 = vrot.slane %v2366, %v2379
    %v2381 = vcombine.low %v2298, %v2322
    %v2382 = vcombine.high %v2298, %v2322
    %v2384 = vunpack.c.l.s4 1983009808
    %v2385 = vunpack.c.0.s8 %v2384
    %v2386 = vlaneseq
    %v2387 = vshrl.u32 %v2386, 7
    %v2388 = vsub.s32 %v2385, %v2387
    %v2389 = vrot.slane %v2381, %v2388
    %v2391 = vunpack.c.l.s4 1983009808
    %v2392 = vunpack.c.0.s8 %v2391
    %v2393 = vlaneseq
    %v2394 = vshrl.u32 %v2393, 7
    %v2395 = vsub.s32 %v2392, %v2394
    %v2396 = vrot.slane %v2382, %v2395
    %v2397 = vcombine.low %v2341, %v2357
    %v2398 = vcombine.high %v2341, %v2357
    %v2400 = vunpack.c.l.s4 1934713408
    %v2401 = vunpack.c.0.s8 %v2400
    %v2402 = vlaneseq
    %v2403 = vshrl.u32 %v2402, 7
    %v2404 = vsub.s32 %v2401, %v2403
    %v2405 = vrot.slane %v2397, %v2404
    %v2407 = vunpack.c.l.s4 1934713408
    %v2408 = vunpack.c.0.s8 %v2407
    %v2409 = vlaneseq
    %v2410 = vshrl.u32 %v2409, 7
    %v2411 = vsub.s32 %v2408, %v2410
    %v2412 = vrot.slane %v2398, %v2411
    %v2413 = vcombine.low %v2348, %v2364
    %v2414 = vcombine.high %v2348, %v2364
    %v2416 = vunpack.c.l.s4 1934713408
    %v2417 = vunpack.c.0.s8 %v2416
    %v2418 = vlaneseq
    %v2419 = vshrl.u32 %v2418, 7
    %v2420 = vsub.s32 %v2417, %v2419
    %v2421 = vrot.slane %v2413, %v2420
    %v2423 = vunpack.c.l.s4 1934713408
    %v2424 = vunpack.c.0.s8 %v2423
    %v2425 = vlaneseq
    %v2426 = vshrl.u32 %v2425, 7
    %v2427 = vsub.s32 %v2424, %v2426
    %v2428 = vrot.slane %v2414, %v2427
    %v2429 = vcombine.low %v2373, %v2389
    %v2430 = vcombine.high %v2373, %v2389
    %v2432 = vunpack.c.l.s4 1934713408
    %v2433 = vunpack.c.0.s8 %v2432
    %v2434 = vlaneseq
    %v2435 = vshrl.u32 %v2434, 7
    %v2436 = vsub.s32 %v2433, %v2435
    %v2437 = vrot.slane %v2429, %v2436
    %v2439 = vunpack.c.l.s4 1934713408
    %v2440 = vunpack.c.0.s8 %v2439
    %v2441 = vlaneseq
    %v2442 = vshrl.u32 %v2441, 7
    %v2443 = vsub.s32 %v2440, %v2442
    %v2444 = vrot.slane %v2430, %v2443
    %v2445 = vcombine.low %v2380, %v2396
    %v2446 = vcombine.high %v2380, %v2396
    %v2448 = vunpack.c.l.s4 1934713408
    %v2449 = vunpack.c.0.s8 %v2448
    %v2450 = vlaneseq
    %v2451 = vshrl.u32 %v2450, 7
    %v2452 = vsub.s32 %v2449, %v2451
    %v2453 = vrot.slane %v2445, %v2452
    %v2455 = vunpack.c.l.s4 1934713408
    %v2456 = vunpack.c.0.s8 %v2455
    %v2457 = vlaneseq
    %v2458 = vshrl.u32 %v2457, 7
    %v2459 = vsub.s32 %v2456, %v2458
    %v2460 = vrot.slane %v2446, %v2459
    %v2461 = vcombine.low %v2405, %v2437
    %v2462 = vcombine.high %v2405, %v2437
    %v2463 = vcombine.low %v2412, %v2444
    %v2464 = vcombine.high %v2412, %v2444
    %v2465 = vcombine.low %v2421, %v2453
    %v2466 = vcombine.high %v2421, %v2453
    %v2467 = vcombine.low %v2428, %v2460
    %v2468 = vcombine.high %v2428, %v2460
    %v2469 = vcombine.low %v2247, %v2272
    %v2470 = vcombine.high %v2247, %v2272
    %v2472 = vunpack.c.l.s4 1983009808
    %v2473 = vunpack.c.0.s8 %v2472
    %v2474 = vlaneseq
    %v2475 = vshrl.u32 %v2474, 7
    %v2476 = vsub.s32 %v2473, %v2475
    %v2477 = vrot.slane %v2469, %v2476
    %v2479 = vunpack.c.l.s4 1983009808
    %v2480 = vunpack.c.0.s8 %v2479
    %v2481 = vlaneseq
    %v2482 = vshrl.u32 %v2481, 7
    %v2483 = vsub.s32 %v2480, %v2482
    %v2484 = vrot.slane %v2470, %v2483
    %v2485 = vcombine.low %v2260, %v2284
    %v2486 = vcombine.high %v2260, %v2284
    %v2488 = vunpack.c.l.s4 1983009808
    %v2489 = vunpack.c.0.s8 %v2488
    %v2490 = vlaneseq
    %v2491 = vshrl.u32 %v2490, 7
    %v2492 = vsub.s32 %v2489, %v2491
    %v2493 = vrot.slane %v2485, %v2492
    %v2495 = vunpack.c.l.s4 1983009808
    %v2496 = vunpack.c.0.s8 %v2495
    %v2497 = vlaneseq
    %v2498 = vshrl.u32 %v2497, 7
    %v2499 = vsub.s32 %v2496, %v2498
    %v2500 = vrot.slane %v2486, %v2499
    %v2501 = vcombine.low %v2248, %v2312
    %v2502 = vcombine.high %v2248, %v2312
    %v2504 = vunpack.c.l.s4 1983009808
    %v2505 = vunpack.c.0.s8 %v2504
    %v2506 = vlaneseq
    %v2507 = vshrl.u32 %v2506, 7
    %v2508 = vsub.s32 %v2505, %v2507
    %v2509 = vrot.slane %v2501, %v2508
    %v2511 = vunpack.c.l.s4 1983009808
    %v2512 = vunpack.c.0.s8 %v2511
    %v2513 = vlaneseq
    %v2514 = vshrl.u32 %v2513, 7
    %v2515 = vsub.s32 %v2512, %v2514
    %v2516 = vrot.slane %v2502, %v2515
    %v2517 = vcombine.low %v2300, %v2324
    %v2518 = vcombine.high %v2300, %v2324
    %v2520 = vunpack.c.l.s4 1983009808
    %v2521 = vunpack.c.0.s8 %v2520
    %v2522 = vlaneseq
    %v2523 = vshrl.u32 %v2522, 7
    %v2524 = vsub.s32 %v2521, %v2523
    %v2525 = vrot.slane %v2517, %v2524
    %v2527 = vunpack.c.l.s4 1983009808
    %v2528 = vunpack.c.0.s8 %v2527
    %v2529 = vlaneseq
    %v2530 = vshrl.u32 %v2529, 7
    %v2531 = vsub.s32 %v2528, %v2530
    %v2532 = vrot.slane %v2518, %v2531
    %v2533 = vcombine.low %v2477, %v2493
    %v2534 = vcombine.high %v2477, %v2493
    %v2536 = vunpack.c.l.s4 1934713408
    %v2537 = vunpack.c.0.s8 %v2536
    %v2538 = vlaneseq
    %v2539 = vshrl.u32 %v2538, 7
    %v2540 = vsub.s32 %v2537, %v2539
    %v2541 = vrot.slane %v2533, %v2540
    %v2543 = vunpack.c.l.s4 1934713408
    %v2544 = vunpack.c.0.s8 %v2543
    %v2545 = vlaneseq
    %v2546 = vshrl.u32 %v2545, 7
    %v2547 = vsub.s32 %v2544, %v2546
    %v2548 = vrot.slane %v2534, %v2547
    %v2549 = vcombine.low %v2484, %v2500
    %v2550 = vcombine.high %v2484, %v2500
    %v2552 = vunpack.c.l.s4 1934713408
    %v2553 = vunpack.c.0.s8 %v2552
    %v2554 = vlaneseq
    %v2555 = vshrl.u32 %v2554, 7
    %v2556 = vsub.s32 %v2553, %v2555
    %v2557 = vrot.slane %v2549, %v2556
    %v2559 = vunpack.c.l.s4 1934713408
    %v2560 = vunpack.c.0.s8 %v2559
    %v2561 = vlaneseq
    %v2562 = vshrl.u32 %v2561, 7
    %v2563 = vsub.s32 %v2560, %v2562
    %v2564 = vrot.slane %v2550, %v2563
    %v2565 = vcombine.low %v2509, %v2525
    %v2566 = vcombine.high %v2509, %v2525
    %v2568 = vunpack.c.l.s4 1934713408
    %v2569 = vunpack.c.0.s8 %v2568
    %v2570 = vlaneseq
    %v2571 = vshrl.u32 %v2570, 7
    %v2572 = vsub.s32 %v2569, %v2571
    %v2573 = vrot.slane %v2565, %v2572
    %v2575 = vunpack.c.l.s4 1934713408
    %v2576 = vunpack.c.0.s8 %v2575
    %v2577 = vlaneseq
    %v2578 = vshrl.u32 %v2577, 7
    %v2579 = vsub.s32 %v2576, %v2578
    %v2580 = vrot.slane %v2566, %v2579
    %v2581 = vcombine.low %v2516, %v2532
    %v2582 = vcombine.high %v2516, %v2532
    %v2584 = vunpack.c.l.s4 1934713408
    %v2585 = vunpack.c.0.s8 %v2584
    %v2586 = vlaneseq
    %v2587 = vshrl.u32 %v2586, 7
    %v2588 = vsub.s32 %v2585, %v2587
    %v2589 = vrot.slane %v2581, %v2588
    %v2591 = vunpack.c.l.s4 1934713408
    %v2592 = vunpack.c.0.s8 %v2591
    %v2593 = vlaneseq
    %v2594 = vshrl.u32 %v2593, 7
    %v2595 = vsub.s32 %v2592, %v2594
    %v2596 = vrot.slane %v2582, %v2595
    %v2597 = vcombine.low %v2541, %v2573
    %v2598 = vcombine.high %v2541, %v2573
    %v2599 = vcombine.low %v2548, %v2580
    %v2600 = vcombine.high %v2548, %v2580
    %v2601 = vcombine.low %v2557, %v2589
    %v2602 = vcombine.high %v2557, %v2589
    %v2603 = vcombine.low %v2564, %v2596
    %v2604 = vcombine.high %v2564, %v2596
    %v2605 = vcombine.low %v2249, %v2274
    %v2606 = vcombine.high %v2249, %v2274
    %v2608 = vunpack.c.l.s4 1983009808
    %v2609 = vunpack.c.0.s8 %v2608
    %v2610 = vlaneseq
    %v2611 = vshrl.u32 %v2610, 7
    %v2612 = vsub.s32 %v2609, %v2611
    %v2613 = vrot.slane %v2605, %v2612
    %v2615 = vunpack.c.l.s4 1983009808
    %v2616 = vunpack.c.0.s8 %v2615
    %v2617 = vlaneseq
    %v2618 = vshrl.u32 %v2617, 7
    %v2619 = vsub.s32 %v2616, %v2618
    %v2620 = vrot.slane %v2606, %v2619
    %v2621 = vcombine.low %v2262, %v2286
    %v2622 = vcombine.high %v2262, %v2286
    %v2624 = vunpack.c.l.s4 1983009808
    %v2625 = vunpack.c.0.s8 %v2624
    %v2626 = vlaneseq
    %v2627 = vshrl.u32 %v2626, 7
    %v2628 = vsub.s32 %v2625, %v2627
    %v2629 = vrot.slane %v2621, %v2628
    %v2631 = vunpack.c.l.s4 1983009808
    %v2632 = vunpack.c.0.s8 %v2631
    %v2633 = vlaneseq
    %v2634 = vshrl.u32 %v2633, 7
    %v2635 = vsub.s32 %v2632, %v2634
    %v2636 = vrot.slane %v2622, %v2635
    %v2637 = vcombine.low %v2250, %v2314
    %v2638 = vcombine.high %v2250, %v2314
    %v2640 = vunpack.c.l.s4 1983009808
    %v2641 = vunpack.c.0.s8 %v2640
    %v2642 = vlaneseq
    %v2643 = vshrl.u32 %v2642, 7
    %v2644 = vsub.s32 %v2641, %v2643
    %v2645 = vrot.slane %v2637, %v2644
    %v2647 = vunpack.c.l.s4 1983009808
    %v2648 = vunpack.c.0.s8 %v2647
    %v2649 = vlaneseq
    %v2650 = vshrl.u32 %v2649, 7
    %v2651 = vsub.s32 %v2648, %v2650
    %v2652 = vrot.slane %v2638, %v2651
    %v2653 = vcombine.low %v2302, %v2326
    %v2654 = vcombine.high %v2302, %v2326
    %v2656 = vunpack.c.l.s4 1983009808
    %v2657 = vunpack.c.0.s8 %v2656
    %v2658 = vlaneseq
    %v2659 = vshrl.u32 %v2658, 7
    %v2660 = vsub.s32 %v2657, %v2659
    %v2661 = vrot.slane %v2653, %v2660
    %v2663 = vunpack.c.l.s4 1983009808
    %v2664 = vunpack.c.0.s8 %v2663
    %v2665 = vlaneseq
    %v2666 = vshrl.u32 %v2665, 7
    %v2667 = vsub.s32 %v2664, %v2666
    %v2668 = vrot.slane %v2654, %v2667
    %v2669 = vcombine.low %v2613, %v2629
    %v2670 = vcombine.high %v2613, %v2629
    %v2672 = vunpack.c.l.s4 1934713408
    %v2673 = vunpack.c.0.s8 %v2672
    %v2674 = vlaneseq
    %v2675 = vshrl.u32 %v2674, 7
    %v2676 = vsub.s32 %v2673, %v2675
    %v2677 = vrot.slane %v2669, %v2676
    %v2679 = vunpack.c.l.s4 1934713408
    %v2680 = vunpack.c.0.s8 %v2679
    %v2681 = vlaneseq
    %v2682 = vshrl.u32 %v2681, 7
    %v2683 = vsub.s32 %v2680, %v2682
    %v2684 = vrot.slane %v2670, %v2683
    %v2685 = vcombine.low %v2620, %v2636
    %v2686 = vcombine.high %v2620, %v2636
    %v2688 = vunpack.c.l.s4 1934713408
    %v2689 = vunpack.c.0.s8 %v2688
    %v2690 = vlaneseq
    %v2691 = vshrl.u32 %v2690, 7
    %v2692 = vsub.s32 %v2689, %v2691
    %v2693 = vrot.slane %v2685, %v2692
    %v2695 = vunpack.c.l.s4 1934713408
    %v2696 = vunpack.c.0.s8 %v2695
    %v2697 = vlaneseq
    %v2698 = vshrl.u32 %v2697, 7
    %v2699 = vsub.s32 %v2696, %v2698
    %v2700 = vrot.slane %v2686, %v2699
    %v2701 = vcombine.low %v2645, %v2661
    %v2702 = vcombine.high %v2645, %v2661
    %v2704 = vunpack.c.l.s4 1934713408
    %v2705 = vunpack.c.0.s8 %v2704
    %v2706 = vlaneseq
    %v2707 = vshrl.u32 %v2706, 7
    %v2708 = vsub.s32 %v2705, %v2707
    %v2709 = vrot.slane %v2701, %v2708
    %v2711 = vunpack.c.l.s4 1934713408
    %v2712 = vunpack.c.0.s8 %v2711
    %v2713 = vlaneseq
    %v2714 = vshrl.u32 %v2713, 7
    %v2715 = vsub.s32 %v2712, %v2714
    %v2716 = vrot.slane %v2702, %v2715
    %v2717 = vcombine.low %v2652, %v2668
    %v2718 = vcombine.high %v2652, %v2668
    %v2720 = vunpack.c.l.s4 1934713408
    %v2721 = vunpack.c.0.s8 %v2720
    %v2722 = vlaneseq
    %v2723 = vshrl.u32 %v2722, 7
    %v2724 = vsub.s32 %v2721, %v2723
    %v2725 = vrot.slane %v2717, %v2724
    %v2727 = vunpack.c.l.s4 1934713408
    %v2728 = vunpack.c.0.s8 %v2727
    %v2729 = vlaneseq
    %v2730 = vshrl.u32 %v2729, 7
    %v2731 = vsub.s32 %v2728, %v2730
    %v2732 = vrot.slane %v2718, %v2731
    %v2733 = vcombine.low %v2677, %v2709
    %v2734 = vcombine.high %v2677, %v2709
    %v2735 = vcombine.low %v2684, %v2716
    %v2736 = vcombine.high %v2684, %v2716
    %v2737 = vcombine.low %v2693, %v2725
    %v2738 = vcombine.high %v2693, %v2725
    %v2739 = vcombine.low %v2700, %v2732
    %v2740 = vcombine.high %v2700, %v2732
    %v2741 = vcombine.low %v2251, %v2276
    %v2742 = vcombine.high %v2251, %v2276
    %v2744 = vunpack.c.l.s4 1983009808
    %v2745 = vunpack.c.0.s8 %v2744
    %v2746 = vlaneseq
    %v2747 = vshrl.u32 %v2746, 7
    %v2748 = vsub.s32 %v2745, %v2747
    %v2749 = vrot.slane %v2741, %v2748
    %v2751 = vunpack.c.l.s4 1983009808
    %v2752 = vunpack.c.0.s8 %v2751
    %v2753 = vlaneseq
    %v2754 = vshrl.u32 %v2753, 7
    %v2755 = vsub.s32 %v2752, %v2754
    %v2756 = vrot.slane %v2742, %v2755
    %v2757 = vcombine.low %v2264, %v2288
    %v2758 = vcombine.high %v2264, %v2288
    %v2760 = vunpack.c.l.s4 1983009808
    %v2761 = vunpack.c.0.s8 %v2760
    %v2762 = vlaneseq
    %v2763 = vshrl.u32 %v2762, 7
    %v2764 = vsub.s32 %v2761, %v2763
    %v2765 = vrot.slane %v2757, %v2764
    %v2767 = vunpack.c.l.s4 1983009808
    %v2768 = vunpack.c.0.s8 %v2767
    %v2769 = vlaneseq
    %v2770 = vshrl.u32 %v2769, 7
    %v2771 = vsub.s32 %v2768, %v2770
    %v2772 = vrot.slane %v2758, %v2771
    %v2773 = vcombine.low %v2252, %v2316
    %v2774 = vcombine.high %v2252, %v2316
    %v2776 = vunpack.c.l.s4 1983009808
    %v2777 = vunpack.c.0.s8 %v2776
    %v2778 = vlaneseq
    %v2779 = vshrl.u32 %v2778, 7
    %v2780 = vsub.s32 %v2777, %v2779
    %v2781 = vrot.slane %v2773, %v2780
    %v2783 = vunpack.c.l.s4 1983009808
    %v2784 = vunpack.c.0.s8 %v2783
    %v2785 = vlaneseq
    %v2786 = vshrl.u32 %v2785, 7
    %v2787 = vsub.s32 %v2784, %v2786
    %v2788 = vrot.slane %v2774, %v2787
    %v2789 = vcombine.low %v2304, %v2328
    %v2790 = vcombine.high %v2304, %v2328
    %v2792 = vunpack.c.l.s4 1983009808
    %v2793 = vunpack.c.0.s8 %v2792
    %v2794 = vlaneseq
    %v2795 = vshrl.u32 %v2794, 7
    %v2796 = vsub.s32 %v2793, %v2795
    %v2797 = vrot.slane %v2789, %v2796
    %v2799 = vunpack.c.l.s4 1983009808
    %v2800 = vunpack.c.0.s8 %v2799
    %v2801 = vlaneseq
    %v2802 = vshrl.u32 %v2801, 7
    %v2803 = vsub.s32 %v2800, %v2802
    %v2804 = vrot.slane %v2790, %v2803
    %v2805 = vcombine.low %v2749, %v2765
    %v2806 = vcombine.high %v2749, %v2765
    %v2808 = vunpack.c.l.s4 1934713408
    %v2809 = vunpack.c.0.s8 %v2808
    %v2810 = vlaneseq
    %v2811 = vshrl.u32 %v2810, 7
    %v2812 = vsub.s32 %v2809, %v2811
    %v2813 = vrot.slane %v2805, %v2812
    %v2815 = vunpack.c.l.s4 1934713408
    %v2816 = vunpack.c.0.s8 %v2815
    %v2817 = vlaneseq
    %v2818 = vshrl.u32 %v2817, 7
    %v2819 = vsub.s32 %v2816, %v2818
    %v2820 = vrot.slane %v2806, %v2819
    %v2821 = vcombine.low %v2756, %v2772
    %v2822 = vcombine.high %v2756, %v2772
    %v2824 = vunpack.c.l.s4 1934713408
    %v2825 = vunpack.c.0.s8 %v2824
    %v2826 = vlaneseq
    %v2827 = vshrl.u32 %v2826, 7
    %v2828 = vsub.s32 %v2825, %v2827
    %v2829 = vrot.slane %v2821, %v2828
    %v2831 = vunpack.c.l.s4 1934713408
    %v2832 = vunpack.c.0.s8 %v2831
    %v2833 = vlaneseq
    %v2834 = vshrl.u32 %v2833, 7
    %v2835 = vsub.s32 %v2832, %v2834
    %v2836 = vrot.slane %v2822, %v2835
    %v2837 = vcombine.low %v2781, %v2797
    %v2838 = vcombine.high %v2781, %v2797
    %v2840 = vunpack.c.l.s4 1934713408
    %v2841 = vunpack.c.0.s8 %v2840
    %v2842 = vlaneseq
    %v2843 = vshrl.u32 %v2842, 7
    %v2844 = vsub.s32 %v2841, %v2843
    %v2845 = vrot.slane %v2837, %v2844
    %v2847 = vunpack.c.l.s4 1934713408
    %v2848 = vunpack.c.0.s8 %v2847
    %v2849 = vlaneseq
    %v2850 = vshrl.u32 %v2849, 7
    %v2851 = vsub.s32 %v2848, %v2850
    %v2852 = vrot.slane %v2838, %v2851
    %v2853 = vcombine.low %v2788, %v2804
    %v2854 = vcombine.high %v2788, %v2804
    %v2856 = vunpack.c.l.s4 1934713408
    %v2857 = vunpack.c.0.s8 %v2856
    %v2858 = vlaneseq
    %v2859 = vshrl.u32 %v2858, 7
    %v2860 = vsub.s32 %v2857, %v2859
    %v2861 = vrot.slane %v2853, %v2860
    %v2863 = vunpack.c.l.s4 1934713408
    %v2864 = vunpack.c.0.s8 %v2863
    %v2865 = vlaneseq
    %v2866 = vshrl.u32 %v2865, 7
    %v2867 = vsub.s32 %v2864, %v2866
    %v2868 = vrot.slane %v2854, %v2867
    %v2869 = vcombine.low %v2813, %v2845
    %v2870 = vcombine.high %v2813, %v2845
    %v2871 = vcombine.low %v2820, %v2852
    %v2872 = vcombine.high %v2820, %v2852
    %v2873 = vcombine.low %v2829, %v2861
    %v2874 = vcombine.high %v2829, %v2861
    %v2875 = vcombine.low %v2836, %v2868
    %v2876 = vcombine.high %v2836, %v2868
    %vm2877 = vcmp.eq.s32.totalorder %v76, 1
    %vm2878 = vcmp.eq.s32.totalorder %v77, 1
    %vm2879 = vcmp.eq.s32.totalorder %v78, 1
    %vm2880 = vcmp.eq.s32.totalorder %v79, 1
    %v2881 = vsel %vm2877, %v2461, -1e+30
    %v2882 = vsel %vm2877, %v2462, -1e+30
    %v2883 = vsel %vm2877, %v2463, -1e+30
    %v2884 = vsel %vm2877, %v2464, -1e+30
    %v2885 = vsel %vm2877, %v2465, -1e+30
    %v2886 = vsel %vm2877, %v2466, -1e+30
    %v2887 = vsel %vm2877, %v2467, -1e+30
    %v2888 = vsel %vm2877, %v2468, -1e+30
    %v2889 = vsel %vm2878, %v2597, -1e+30
    %v2890 = vsel %vm2878, %v2598, -1e+30
    %v2891 = vsel %vm2878, %v2599, -1e+30
    %v2892 = vsel %vm2878, %v2600, -1e+30
    %v2893 = vsel %vm2878, %v2601, -1e+30
    %v2894 = vsel %vm2878, %v2602, -1e+30
    %v2895 = vsel %vm2878, %v2603, -1e+30
    %v2896 = vsel %vm2878, %v2604, -1e+30
    %v2897 = vsel %vm2879, %v2733, -1e+30
    %v2898 = vsel %vm2879, %v2734, -1e+30
    %v2899 = vsel %vm2879, %v2735, -1e+30
    %v2900 = vsel %vm2879, %v2736, -1e+30
    %v2901 = vsel %vm2879, %v2737, -1e+30
    %v2902 = vsel %vm2879, %v2738, -1e+30
    %v2903 = vsel %vm2879, %v2739, -1e+30
    %v2904 = vsel %vm2879, %v2740, -1e+30
    %v2905 = vsel %vm2880, %v2869, -1e+30
    %v2906 = vsel %vm2880, %v2870, -1e+30
    %v2907 = vsel %vm2880, %v2871, -1e+30
    %v2908 = vsel %vm2880, %v2872, -1e+30
    %v2909 = vsel %vm2880, %v2873, -1e+30
    %v2910 = vsel %vm2880, %v2874, -1e+30
    %v2911 = vsel %vm2880, %v2875, -1e+30
    %v2912 = vsel %vm2880, %v2876, -1e+30
    %v2913 = vsel %vm193, %v2881, -inf
    %v2914 = vrot.slane %v2913, 4
    %v2915 = vmax.f32 %v2913, %v2914
    %v2916 = vrot.slane %v2915, 2
    %v2917 = vmax.f32 %v2915, %v2916
    %v2918 = vrot.slane %v2917, 1
    %v2919 = vmax.f32 %v2917, %v2918
    %v2920 = vsel %vm193, %v2882, -inf
    %v2921 = vrot.slane %v2920, 4
    %v2922 = vmax.f32 %v2920, %v2921
    %v2923 = vrot.slane %v2922, 2
    %v2924 = vmax.f32 %v2922, %v2923
    %v2925 = vrot.slane %v2924, 1
    %v2926 = vmax.f32 %v2924, %v2925
    %v2927 = vsel %vm193, %v2883, -inf
    %v2928 = vrot.slane %v2927, 4
    %v2929 = vmax.f32 %v2927, %v2928
    %v2930 = vrot.slane %v2929, 2
    %v2931 = vmax.f32 %v2929, %v2930
    %v2932 = vrot.slane %v2931, 1
    %v2933 = vmax.f32 %v2931, %v2932
    %v2934 = vsel %vm193, %v2884, -inf
    %v2935 = vrot.slane %v2934, 4
    %v2936 = vmax.f32 %v2934, %v2935
    %v2937 = vrot.slane %v2936, 2
    %v2938 = vmax.f32 %v2936, %v2937
    %v2939 = vrot.slane %v2938, 1
    %v2940 = vmax.f32 %v2938, %v2939
    %v2941 = vsel %vm193, %v2885, -inf
    %v2942 = vrot.slane %v2941, 4
    %v2943 = vmax.f32 %v2941, %v2942
    %v2944 = vrot.slane %v2943, 2
    %v2945 = vmax.f32 %v2943, %v2944
    %v2946 = vrot.slane %v2945, 1
    %v2947 = vmax.f32 %v2945, %v2946
    %v2948 = vsel %vm193, %v2886, -inf
    %v2949 = vrot.slane %v2948, 4
    %v2950 = vmax.f32 %v2948, %v2949
    %v2951 = vrot.slane %v2950, 2
    %v2952 = vmax.f32 %v2950, %v2951
    %v2953 = vrot.slane %v2952, 1
    %v2954 = vmax.f32 %v2952, %v2953
    %v2955 = vsel %vm193, %v2887, -inf
    %v2956 = vrot.slane %v2955, 4
    %v2957 = vmax.f32 %v2955, %v2956
    %v2958 = vrot.slane %v2957, 2
    %v2959 = vmax.f32 %v2957, %v2958
    %v2960 = vrot.slane %v2959, 1
    %v2961 = vmax.f32 %v2959, %v2960
    %v2962 = vsel %vm193, %v2888, -inf
    %v2963 = vrot.slane %v2962, 4
    %v2964 = vmax.f32 %v2962, %v2963
    %v2965 = vrot.slane %v2964, 2
    %v2966 = vmax.f32 %v2964, %v2965
    %v2967 = vrot.slane %v2966, 1
    %v2968 = vmax.f32 %v2966, %v2967
    %v2969 = vsel %vm193, %v2889, -inf
    %v2970 = vrot.slane %v2969, 4
    %v2971 = vmax.f32 %v2969, %v2970
    %v2972 = vrot.slane %v2971, 2
    %v2973 = vmax.f32 %v2971, %v2972
    %v2974 = vrot.slane %v2973, 1
    %v2975 = vmax.f32 %v2973, %v2974
    %v2976 = vsel %vm193, %v2890, -inf
    %v2977 = vrot.slane %v2976, 4
    %v2978 = vmax.f32 %v2976, %v2977
    %v2979 = vrot.slane %v2978, 2
    %v2980 = vmax.f32 %v2978, %v2979
    %v2981 = vrot.slane %v2980, 1
    %v2982 = vmax.f32 %v2980, %v2981
    %v2983 = vsel %vm193, %v2891, -inf
    %v2984 = vrot.slane %v2983, 4
    %v2985 = vmax.f32 %v2983, %v2984
    %v2986 = vrot.slane %v2985, 2
    %v2987 = vmax.f32 %v2985, %v2986
    %v2988 = vrot.slane %v2987, 1
    %v2989 = vmax.f32 %v2987, %v2988
    %v2990 = vsel %vm193, %v2892, -inf
    %v2991 = vrot.slane %v2990, 4
    %v2992 = vmax.f32 %v2990, %v2991
    %v2993 = vrot.slane %v2992, 2
    %v2994 = vmax.f32 %v2992, %v2993
    %v2995 = vrot.slane %v2994, 1
    %v2996 = vmax.f32 %v2994, %v2995
    %v2997 = vsel %vm193, %v2893, -inf
    %v2998 = vrot.slane %v2997, 4
    %v2999 = vmax.f32 %v2997, %v2998
    %v3000 = vrot.slane %v2999, 2
    %v3001 = vmax.f32 %v2999, %v3000
    %v3002 = vrot.slane %v3001, 1
    %v3003 = vmax.f32 %v3001, %v3002
    %v3004 = vsel %vm193, %v2894, -inf
    %v3005 = vrot.slane %v3004, 4
    %v3006 = vmax.f32 %v3004, %v3005
    %v3007 = vrot.slane %v3006, 2
    %v3008 = vmax.f32 %v3006, %v3007
    %v3009 = vrot.slane %v3008, 1
    %v3010 = vmax.f32 %v3008, %v3009
    %v3011 = vsel %vm193, %v2895, -inf
    %v3012 = vrot.slane %v3011, 4
    %v3013 = vmax.f32 %v3011, %v3012
    %v3014 = vrot.slane %v3013, 2
    %v3015 = vmax.f32 %v3013, %v3014
    %v3016 = vrot.slane %v3015, 1
    %v3017 = vmax.f32 %v3015, %v3016
    %v3018 = vsel %vm193, %v2896, -inf
    %v3019 = vrot.slane %v3018, 4
    %v3020 = vmax.f32 %v3018, %v3019
    %v3021 = vrot.slane %v3020, 2
    %v3022 = vmax.f32 %v3020, %v3021
    %v3023 = vrot.slane %v3022, 1
    %v3024 = vmax.f32 %v3022, %v3023
    %v3025 = vsel %vm193, %v2897, -inf
    %v3026 = vrot.slane %v3025, 4
    %v3027 = vmax.f32 %v3025, %v3026
    %v3028 = vrot.slane %v3027, 2
    %v3029 = vmax.f32 %v3027, %v3028
    %v3030 = vrot.slane %v3029, 1
    %v3031 = vmax.f32 %v3029, %v3030
    %v3032 = vsel %vm193, %v2898, -inf
    %v3033 = vrot.slane %v3032, 4
    %v3034 = vmax.f32 %v3032, %v3033
    %v3035 = vrot.slane %v3034, 2
    %v3036 = vmax.f32 %v3034, %v3035
    %v3037 = vrot.slane %v3036, 1
    %v3038 = vmax.f32 %v3036, %v3037
    %v3039 = vsel %vm193, %v2899, -inf
    %v3040 = vrot.slane %v3039, 4
    %v3041 = vmax.f32 %v3039, %v3040
    %v3042 = vrot.slane %v3041, 2
    %v3043 = vmax.f32 %v3041, %v3042
    %v3044 = vrot.slane %v3043, 1
    %v3045 = vmax.f32 %v3043, %v3044
    %v3046 = vsel %vm193, %v2900, -inf
    %v3047 = vrot.slane %v3046, 4
    %v3048 = vmax.f32 %v3046, %v3047
    %v3049 = vrot.slane %v3048, 2
    %v3050 = vmax.f32 %v3048, %v3049
    %v3051 = vrot.slane %v3050, 1
    %v3052 = vmax.f32 %v3050, %v3051
    %v3053 = vsel %vm193, %v2901, -inf
    %v3054 = vrot.slane %v3053, 4
    %v3055 = vmax.f32 %v3053, %v3054
    %v3056 = vrot.slane %v3055, 2
    %v3057 = vmax.f32 %v3055, %v3056
    %v3058 = vrot.slane %v3057, 1
    %v3059 = vmax.f32 %v3057, %v3058
    %v3060 = vsel %vm193, %v2902, -inf
    %v3061 = vrot.slane %v3060, 4
    %v3062 = vmax.f32 %v3060, %v3061
    %v3063 = vrot.slane %v3062, 2
    %v3064 = vmax.f32 %v3062, %v3063
    %v3065 = vrot.slane %v3064, 1
    %v3066 = vmax.f32 %v3064, %v3065
    %v3067 = vsel %vm193, %v2903, -inf
    %v3068 = vrot.slane %v3067, 4
    %v3069 = vmax.f32 %v3067, %v3068
    %v3070 = vrot.slane %v3069, 2
    %v3071 = vmax.f32 %v3069, %v3070
    %v3072 = vrot.slane %v3071, 1
    %v3073 = vmax.f32 %v3071, %v3072
    %v3074 = vsel %vm193, %v2904, -inf
    %v3075 = vrot.slane %v3074, 4
    %v3076 = vmax.f32 %v3074, %v3075
    %v3077 = vrot.slane %v3076, 2
    %v3078 = vmax.f32 %v3076, %v3077
    %v3079 = vrot.slane %v3078, 1
    %v3080 = vmax.f32 %v3078, %v3079
    %v3081 = vsel %vm193, %v2905, -inf
    %v3082 = vrot.slane %v3081, 4
    %v3083 = vmax.f32 %v3081, %v3082
    %v3084 = vrot.slane %v3083, 2
    %v3085 = vmax.f32 %v3083, %v3084
    %v3086 = vrot.slane %v3085, 1
    %v3087 = vmax.f32 %v3085, %v3086
    %v3088 = vsel %vm193, %v2906, -inf
    %v3089 = vrot.slane %v3088, 4
    %v3090 = vmax.f32 %v3088, %v3089
    %v3091 = vrot.slane %v3090, 2
    %v3092 = vmax.f32 %v3090, %v3091
    %v3093 = vrot.slane %v3092, 1
    %v3094 = vmax.f32 %v3092, %v3093
    %v3095 = vsel %vm193, %v2907, -inf
    %v3096 = vrot.slane %v3095, 4
    %v3097 = vmax.f32 %v3095, %v3096
    %v3098 = vrot.slane %v3097, 2
    %v3099 = vmax.f32 %v3097, %v3098
    %v3100 = vrot.slane %v3099, 1
    %v3101 = vmax.f32 %v3099, %v3100
    %v3102 = vsel %vm193, %v2908, -inf
    %v3103 = vrot.slane %v3102, 4
    %v3104 = vmax.f32 %v3102, %v3103
    %v3105 = vrot.slane %v3104, 2
    %v3106 = vmax.f32 %v3104, %v3105
    %v3107 = vrot.slane %v3106, 1
    %v3108 = vmax.f32 %v3106, %v3107
    %v3109 = vsel %vm193, %v2909, -inf
    %v3110 = vrot.slane %v3109, 4
    %v3111 = vmax.f32 %v3109, %v3110
    %v3112 = vrot.slane %v3111, 2
    %v3113 = vmax.f32 %v3111, %v3112
    %v3114 = vrot.slane %v3113, 1
    %v3115 = vmax.f32 %v3113, %v3114
    %v3116 = vsel %vm193, %v2910, -inf
    %v3117 = vrot.slane %v3116, 4
    %v3118 = vmax.f32 %v3116, %v3117
    %v3119 = vrot.slane %v3118, 2
    %v3120 = vmax.f32 %v3118, %v3119
    %v3121 = vrot.slane %v3120, 1
    %v3122 = vmax.f32 %v3120, %v3121
    %v3123 = vsel %vm193, %v2911, -inf
    %v3124 = vrot.slane %v3123, 4
    %v3125 = vmax.f32 %v3123, %v3124
    %v3126 = vrot.slane %v3125, 2
    %v3127 = vmax.f32 %v3125, %v3126
    %v3128 = vrot.slane %v3127, 1
    %v3129 = vmax.f32 %v3127, %v3128
    %v3130 = vsel %vm193, %v2912, -inf
    %v3131 = vrot.slane %v3130, 4
    %v3132 = vmax.f32 %v3130, %v3131
    %v3133 = vrot.slane %v3132, 2
    %v3134 = vmax.f32 %v3132, %v3133
    %v3135 = vrot.slane %v3134, 1
    %v3136 = vmax.f32 %v3134, %v3135
    %v3137 = vsub.f32 %v2881, %v2919
    %v3138 = vsub.f32 %v2882, %v2926
    %v3139 = vsub.f32 %v2883, %v2933
    %v3140 = vsub.f32 %v2884, %v2940
    %v3141 = vsub.f32 %v2885, %v2947
    %v3142 = vsub.f32 %v2886, %v2954
    %v3143 = vsub.f32 %v2887, %v2961
    %v3144 = vsub.f32 %v2888, %v2968
    %v3145 = vsub.f32 %v2889, %v2975
    %v3146 = vsub.f32 %v2890, %v2982
    %v3147 = vsub.f32 %v2891, %v2989
    %v3148 = vsub.f32 %v2892, %v2996
    %v3149 = vsub.f32 %v2893, %v3003
    %v3150 = vsub.f32 %v2894, %v3010
    %v3151 = vsub.f32 %v2895, %v3017
    %v3152 = vsub.f32 %v2896, %v3024
    %v3153 = vsub.f32 %v2897, %v3031
    %v3154 = vsub.f32 %v2898, %v3038
    %v3155 = vsub.f32 %v2899, %v3045
    %v3156 = vsub.f32 %v2900, %v3052
    %v3157 = vsub.f32 %v2901, %v3059
    %v3158 = vsub.f32 %v2902, %v3066
    %v3159 = vsub.f32 %v2903, %v3073
    %v3160 = vsub.f32 %v2904, %v3080
    %v3161 = vsub.f32 %v2905, %v3087
    %v3162 = vsub.f32 %v2906, %v3094
    %v3163 = vsub.f32 %v2907, %v3101
    %v3164 = vsub.f32 %v2908, %v3108
    %v3165 = vsub.f32 %v2909, %v3115
    %v3166 = vsub.f32 %v2910, %v3122
    %v3167 = vsub.f32 %v2911, %v3129
    %v3168 = vsub.f32 %v2912, %v3136
    %v3169 = vmul.f32 %v3137, 1.442695
    %v3170 = vpow.pop %v3169
    %v3171 = vmul.f32 %v3138, 1.442695
    %v3172 = vpow.pop %v3171
    %v3173 = vmul.f32 %v3139, 1.442695
    %v3174 = vpow.pop %v3173
    %v3175 = vmul.f32 %v3140, 1.442695
    %v3176 = vpow.pop %v3175
    %v3177 = vmul.f32 %v3141, 1.442695
    %v3178 = vpow.pop %v3177
    %v3179 = vmul.f32 %v3142, 1.442695
    %v3180 = vpow.pop %v3179
    %v3181 = vmul.f32 %v3143, 1.442695
    %v3182 = vpow.pop %v3181
    %v3183 = vmul.f32 %v3144, 1.442695
    %v3184 = vpow.pop %v3183
    %v3185 = vmul.f32 %v3145, 1.442695
    %v3186 = vpow.pop %v3185
    %v3187 = vmul.f32 %v3146, 1.442695
    %v3188 = vpow.pop %v3187
    %v3189 = vmul.f32 %v3147, 1.442695
    %v3190 = vpow.pop %v3189
    %v3191 = vmul.f32 %v3148, 1.442695
    %v3192 = vpow.pop %v3191
    %v3193 = vmul.f32 %v3149, 1.442695
    %v3194 = vpow.pop %v3193
    %v3195 = vmul.f32 %v3150, 1.442695
    %v3196 = vpow.pop %v3195
    %v3197 = vmul.f32 %v3151, 1.442695
    %v3198 = vpow.pop %v3197
    %v3199 = vmul.f32 %v3152, 1.442695
    %v3200 = vpow.pop %v3199
    %v3201 = vmul.f32 %v3153, 1.442695
    %v3202 = vpow.pop %v3201
    %v3203 = vmul.f32 %v3154, 1.442695
    %v3204 = vpow.pop %v3203
    %v3205 = vmul.f32 %v3155, 1.442695
    %v3206 = vpow.pop %v3205
    %v3207 = vmul.f32 %v3156, 1.442695
    %v3208 = vpow.pop %v3207
    %v3209 = vmul.f32 %v3157, 1.442695
    %v3210 = vpow.pop %v3209
    %v3211 = vmul.f32 %v3158, 1.442695
    %v3212 = vpow.pop %v3211
    %v3213 = vmul.f32 %v3159, 1.442695
    %v3214 = vpow.pop %v3213
    %v3215 = vmul.f32 %v3160, 1.442695
    %v3216 = vpow.pop %v3215
    %v3217 = vmul.f32 %v3161, 1.442695
    %v3218 = vpow.pop %v3217
    %v3219 = vmul.f32 %v3162, 1.442695
    %v3220 = vpow.pop %v3219
    %v3221 = vmul.f32 %v3163, 1.442695
    %v3222 = vpow.pop %v3221
    %v3223 = vmul.f32 %v3164, 1.442695
    %v3224 = vpow.pop %v3223
    %v3225 = vmul.f32 %v3165, 1.442695
    %v3226 = vpow.pop %v3225
    %v3227 = vmul.f32 %v3166, 1.442695
    %v3228 = vpow.pop %v3227
    %v3229 = vmul.f32 %v3167, 1.442695
    %v3230 = vpow.pop %v3229
    %v3231 = vmul.f32 %v3168, 1.442695
    %v3232 = vpow.pop %v3231
    %v3233 = vsel %vm193, %v3170, 0.0
    %v3234 = vrot.slane %v3233, 4
    %v3235 = vadd.f32 %v3233, %v3234
    %v3236 = vrot.slane %v3235, 2
    %v3237 = vadd.f32 %v3235, %v3236
    %v3238 = vrot.slane %v3237, 1
    %v3239 = vadd.f32 %v3237, %v3238
    %v3240 = vsel %vm193, %v3172, 0.0
    %v3241 = vrot.slane %v3240, 4
    %v3242 = vadd.f32 %v3240, %v3241
    %v3243 = vrot.slane %v3242, 2
    %v3244 = vadd.f32 %v3242, %v3243
    %v3245 = vrot.slane %v3244, 1
    %v3246 = vadd.f32 %v3244, %v3245
    %v3247 = vsel %vm193, %v3174, 0.0
    %v3248 = vrot.slane %v3247, 4
    %v3249 = vadd.f32 %v3247, %v3248
    %v3250 = vrot.slane %v3249, 2
    %v3251 = vadd.f32 %v3249, %v3250
    %v3252 = vrot.slane %v3251, 1
    %v3253 = vadd.f32 %v3251, %v3252
    %v3254 = vsel %vm193, %v3176, 0.0
    %v3255 = vrot.slane %v3254, 4
    %v3256 = vadd.f32 %v3254, %v3255
    %v3257 = vrot.slane %v3256, 2
    %v3258 = vadd.f32 %v3256, %v3257
    %v3259 = vrot.slane %v3258, 1
    %v3260 = vadd.f32 %v3258, %v3259
    %v3261 = vsel %vm193, %v3178, 0.0
    %v3262 = vrot.slane %v3261, 4
    %v3263 = vadd.f32 %v3261, %v3262
    %v3264 = vrot.slane %v3263, 2
    %v3265 = vadd.f32 %v3263, %v3264
    %v3266 = vrot.slane %v3265, 1
    %v3267 = vadd.f32 %v3265, %v3266
    %v3268 = vsel %vm193, %v3180, 0.0
    %v3269 = vrot.slane %v3268, 4
    %v3270 = vadd.f32 %v3268, %v3269
    %v3271 = vrot.slane %v3270, 2
    %v3272 = vadd.f32 %v3270, %v3271
    %v3273 = vrot.slane %v3272, 1
    %v3274 = vadd.f32 %v3272, %v3273
    %v3275 = vsel %vm193, %v3182, 0.0
    %v3276 = vrot.slane %v3275, 4
    %v3277 = vadd.f32 %v3275, %v3276
    %v3278 = vrot.slane %v3277, 2
    %v3279 = vadd.f32 %v3277, %v3278
    %v3280 = vrot.slane %v3279, 1
    %v3281 = vadd.f32 %v3279, %v3280
    %v3282 = vsel %vm193, %v3184, 0.0
    %v3283 = vrot.slane %v3282, 4
    %v3284 = vadd.f32 %v3282, %v3283
    %v3285 = vrot.slane %v3284, 2
    %v3286 = vadd.f32 %v3284, %v3285
    %v3287 = vrot.slane %v3286, 1
    %v3288 = vadd.f32 %v3286, %v3287
    %v3289 = vsel %vm193, %v3186, 0.0
    %v3290 = vrot.slane %v3289, 4
    %v3291 = vadd.f32 %v3289, %v3290
    %v3292 = vrot.slane %v3291, 2
    %v3293 = vadd.f32 %v3291, %v3292
    %v3294 = vrot.slane %v3293, 1
    %v3295 = vadd.f32 %v3293, %v3294
    %v3296 = vsel %vm193, %v3188, 0.0
    %v3297 = vrot.slane %v3296, 4
    %v3298 = vadd.f32 %v3296, %v3297
    %v3299 = vrot.slane %v3298, 2
    %v3300 = vadd.f32 %v3298, %v3299
    %v3301 = vrot.slane %v3300, 1
    %v3302 = vadd.f32 %v3300, %v3301
    %v3303 = vsel %vm193, %v3190, 0.0
    %v3304 = vrot.slane %v3303, 4
    %v3305 = vadd.f32 %v3303, %v3304
    %v3306 = vrot.slane %v3305, 2
    %v3307 = vadd.f32 %v3305, %v3306
    %v3308 = vrot.slane %v3307, 1
    %v3309 = vadd.f32 %v3307, %v3308
    %v3310 = vsel %vm193, %v3192, 0.0
    %v3311 = vrot.slane %v3310, 4
    %v3312 = vadd.f32 %v3310, %v3311
    %v3313 = vrot.slane %v3312, 2
    %v3314 = vadd.f32 %v3312, %v3313
    %v3315 = vrot.slane %v3314, 1
    %v3316 = vadd.f32 %v3314, %v3315
    %v3317 = vsel %vm193, %v3194, 0.0
    %v3318 = vrot.slane %v3317, 4
    %v3319 = vadd.f32 %v3317, %v3318
    %v3320 = vrot.slane %v3319, 2
    %v3321 = vadd.f32 %v3319, %v3320
    %v3322 = vrot.slane %v3321, 1
    %v3323 = vadd.f32 %v3321, %v3322
    %v3324 = vsel %vm193, %v3196, 0.0
    %v3325 = vrot.slane %v3324, 4
    %v3326 = vadd.f32 %v3324, %v3325
    %v3327 = vrot.slane %v3326, 2
    %v3328 = vadd.f32 %v3326, %v3327
    %v3329 = vrot.slane %v3328, 1
    %v3330 = vadd.f32 %v3328, %v3329
    %v3331 = vsel %vm193, %v3198, 0.0
    %v3332 = vrot.slane %v3331, 4
    %v3333 = vadd.f32 %v3331, %v3332
    %v3334 = vrot.slane %v3333, 2
    %v3335 = vadd.f32 %v3333, %v3334
    %v3336 = vrot.slane %v3335, 1
    %v3337 = vadd.f32 %v3335, %v3336
    %v3338 = vsel %vm193, %v3200, 0.0
    %v3339 = vrot.slane %v3338, 4
    %v3340 = vadd.f32 %v3338, %v3339
    %v3341 = vrot.slane %v3340, 2
    %v3342 = vadd.f32 %v3340, %v3341
    %v3343 = vrot.slane %v3342, 1
    %v3344 = vadd.f32 %v3342, %v3343
    %v3345 = vsel %vm193, %v3202, 0.0
    %v3346 = vrot.slane %v3345, 4
    %v3347 = vadd.f32 %v3345, %v3346
    %v3348 = vrot.slane %v3347, 2
    %v3349 = vadd.f32 %v3347, %v3348
    %v3350 = vrot.slane %v3349, 1
    %v3351 = vadd.f32 %v3349, %v3350
    %v3352 = vsel %vm193, %v3204, 0.0
    %v3353 = vrot.slane %v3352, 4
    %v3354 = vadd.f32 %v3352, %v3353
    %v3355 = vrot.slane %v3354, 2
    %v3356 = vadd.f32 %v3354, %v3355
    %v3357 = vrot.slane %v3356, 1
    %v3358 = vadd.f32 %v3356, %v3357
    %v3359 = vsel %vm193, %v3206, 0.0
    %v3360 = vrot.slane %v3359, 4
    %v3361 = vadd.f32 %v3359, %v3360
    %v3362 = vrot.slane %v3361, 2
    %v3363 = vadd.f32 %v3361, %v3362
    %v3364 = vrot.slane %v3363, 1
    %v3365 = vadd.f32 %v3363, %v3364
    %v3366 = vsel %vm193, %v3208, 0.0
    %v3367 = vrot.slane %v3366, 4
    %v3368 = vadd.f32 %v3366, %v3367
    %v3369 = vrot.slane %v3368, 2
    %v3370 = vadd.f32 %v3368, %v3369
    %v3371 = vrot.slane %v3370, 1
    %v3372 = vadd.f32 %v3370, %v3371
    %v3373 = vsel %vm193, %v3210, 0.0
    %v3374 = vrot.slane %v3373, 4
    %v3375 = vadd.f32 %v3373, %v3374
    %v3376 = vrot.slane %v3375, 2
    %v3377 = vadd.f32 %v3375, %v3376
    %v3378 = vrot.slane %v3377, 1
    %v3379 = vadd.f32 %v3377, %v3378
    %v3380 = vsel %vm193, %v3212, 0.0
    %v3381 = vrot.slane %v3380, 4
    %v3382 = vadd.f32 %v3380, %v3381
    %v3383 = vrot.slane %v3382, 2
    %v3384 = vadd.f32 %v3382, %v3383
    %v3385 = vrot.slane %v3384, 1
    %v3386 = vadd.f32 %v3384, %v3385
    %v3387 = vsel %vm193, %v3214, 0.0
    %v3388 = vrot.slane %v3387, 4
    %v3389 = vadd.f32 %v3387, %v3388
    %v3390 = vrot.slane %v3389, 2
    %v3391 = vadd.f32 %v3389, %v3390
    %v3392 = vrot.slane %v3391, 1
    %v3393 = vadd.f32 %v3391, %v3392
    %v3394 = vsel %vm193, %v3216, 0.0
    %v3395 = vrot.slane %v3394, 4
    %v3396 = vadd.f32 %v3394, %v3395
    %v3397 = vrot.slane %v3396, 2
    %v3398 = vadd.f32 %v3396, %v3397
    %v3399 = vrot.slane %v3398, 1
    %v3400 = vadd.f32 %v3398, %v3399
    %v3401 = vsel %vm193, %v3218, 0.0
    %v3402 = vrot.slane %v3401, 4
    %v3403 = vadd.f32 %v3401, %v3402
    %v3404 = vrot.slane %v3403, 2
    %v3405 = vadd.f32 %v3403, %v3404
    %v3406 = vrot.slane %v3405, 1
    %v3407 = vadd.f32 %v3405, %v3406
    %v3408 = vsel %vm193, %v3220, 0.0
    %v3409 = vrot.slane %v3408, 4
    %v3410 = vadd.f32 %v3408, %v3409
    %v3411 = vrot.slane %v3410, 2
    %v3412 = vadd.f32 %v3410, %v3411
    %v3413 = vrot.slane %v3412, 1
    %v3414 = vadd.f32 %v3412, %v3413
    %v3415 = vsel %vm193, %v3222, 0.0
    %v3416 = vrot.slane %v3415, 4
    %v3417 = vadd.f32 %v3415, %v3416
    %v3418 = vrot.slane %v3417, 2
    %v3419 = vadd.f32 %v3417, %v3418
    %v3420 = vrot.slane %v3419, 1
    %v3421 = vadd.f32 %v3419, %v3420
    %v3422 = vsel %vm193, %v3224, 0.0
    %v3423 = vrot.slane %v3422, 4
    %v3424 = vadd.f32 %v3422, %v3423
    %v3425 = vrot.slane %v3424, 2
    %v3426 = vadd.f32 %v3424, %v3425
    %v3427 = vrot.slane %v3426, 1
    %v3428 = vadd.f32 %v3426, %v3427
    %v3429 = vsel %vm193, %v3226, 0.0
    %v3430 = vrot.slane %v3429, 4
    %v3431 = vadd.f32 %v3429, %v3430
    %v3432 = vrot.slane %v3431, 2
    %v3433 = vadd.f32 %v3431, %v3432
    %v3434 = vrot.slane %v3433, 1
    %v3435 = vadd.f32 %v3433, %v3434
    %v3436 = vsel %vm193, %v3228, 0.0
    %v3437 = vrot.slane %v3436, 4
    %v3438 = vadd.f32 %v3436, %v3437
    %v3439 = vrot.slane %v3438, 2
    %v3440 = vadd.f32 %v3438, %v3439
    %v3441 = vrot.slane %v3440, 1
    %v3442 = vadd.f32 %v3440, %v3441
    %v3443 = vsel %vm193, %v3230, 0.0
    %v3444 = vrot.slane %v3443, 4
    %v3445 = vadd.f32 %v3443, %v3444
    %v3446 = vrot.slane %v3445, 2
    %v3447 = vadd.f32 %v3445, %v3446
    %v3448 = vrot.slane %v3447, 1
    %v3449 = vadd.f32 %v3447, %v3448
    %v3450 = vsel %vm193, %v3232, 0.0
    %v3451 = vrot.slane %v3450, 4
    %v3452 = vadd.f32 %v3450, %v3451
    %v3453 = vrot.slane %v3452, 2
    %v3454 = vadd.f32 %v3452, %v3453
    %v3455 = vrot.slane %v3454, 1
    %v3456 = vadd.f32 %v3454, %v3455
    %v3457 = vmul.f32 %v3170, %v426
    %v3458 = vmul.f32 %v3172, %v426
    %v3459 = vmul.f32 %v3174, %v426
    %v3460 = vmul.f32 %v3176, %v426
    %v3461 = vmul.f32 %v3178, %v426
    %v3462 = vmul.f32 %v3180, %v426
    %v3463 = vmul.f32 %v3182, %v426
    %v3464 = vmul.f32 %v3184, %v426
    %v3465 = vmul.f32 %v3186, %v427
    %v3466 = vmul.f32 %v3188, %v427
    %v3467 = vmul.f32 %v3190, %v427
    %v3468 = vmul.f32 %v3192, %v427
    %v3469 = vmul.f32 %v3194, %v427
    %v3470 = vmul.f32 %v3196, %v427
    %v3471 = vmul.f32 %v3198, %v427
    %v3472 = vmul.f32 %v3200, %v427
    %v3473 = vmul.f32 %v3202, %v428
    %v3474 = vmul.f32 %v3204, %v428
    %v3475 = vmul.f32 %v3206, %v428
    %v3476 = vmul.f32 %v3208, %v428
    %v3477 = vmul.f32 %v3210, %v428
    %v3478 = vmul.f32 %v3212, %v428
    %v3479 = vmul.f32 %v3214, %v428
    %v3480 = vmul.f32 %v3216, %v428
    %v3481 = vmul.f32 %v3218, %v429
    %v3482 = vmul.f32 %v3220, %v429
    %v3483 = vmul.f32 %v3222, %v429
    %v3484 = vmul.f32 %v3224, %v429
    %v3485 = vmul.f32 %v3226, %v429
    %v3486 = vmul.f32 %v3228, %v429
    %v3487 = vmul.f32 %v3230, %v429
    %v3488 = vmul.f32 %v3232, %v429
    %v3489 = vsel %vm193, %v3457, 0.0
    %v3490 = vrot.slane %v3489, 4
    %v3491 = vadd.f32 %v3489, %v3490
    %v3492 = vrot.slane %v3491, 2
    %v3493 = vadd.f32 %v3491, %v3492
    %v3494 = vrot.slane %v3493, 1
    %v3495 = vadd.f32 %v3493, %v3494
    %v3496 = vsel %vm193, %v3458, 0.0
    %v3497 = vrot.slane %v3496, 4
    %v3498 = vadd.f32 %v3496, %v3497
    %v3499 = vrot.slane %v3498, 2
    %v3500 = vadd.f32 %v3498, %v3499
    %v3501 = vrot.slane %v3500, 1
    %v3502 = vadd.f32 %v3500, %v3501
    %v3503 = vsel %vm193, %v3459, 0.0
    %v3504 = vrot.slane %v3503, 4
    %v3505 = vadd.f32 %v3503, %v3504
    %v3506 = vrot.slane %v3505, 2
    %v3507 = vadd.f32 %v3505, %v3506
    %v3508 = vrot.slane %v3507, 1
    %v3509 = vadd.f32 %v3507, %v3508
    %v3510 = vsel %vm193, %v3460, 0.0
    %v3511 = vrot.slane %v3510, 4
    %v3512 = vadd.f32 %v3510, %v3511
    %v3513 = vrot.slane %v3512, 2
    %v3514 = vadd.f32 %v3512, %v3513
    %v3515 = vrot.slane %v3514, 1
    %v3516 = vadd.f32 %v3514, %v3515
    %v3517 = vsel %vm193, %v3461, 0.0
    %v3518 = vrot.slane %v3517, 4
    %v3519 = vadd.f32 %v3517, %v3518
    %v3520 = vrot.slane %v3519, 2
    %v3521 = vadd.f32 %v3519, %v3520
    %v3522 = vrot.slane %v3521, 1
    %v3523 = vadd.f32 %v3521, %v3522
    %v3524 = vsel %vm193, %v3462, 0.0
    %v3525 = vrot.slane %v3524, 4
    %v3526 = vadd.f32 %v3524, %v3525
    %v3527 = vrot.slane %v3526, 2
    %v3528 = vadd.f32 %v3526, %v3527
    %v3529 = vrot.slane %v3528, 1
    %v3530 = vadd.f32 %v3528, %v3529
    %v3531 = vsel %vm193, %v3463, 0.0
    %v3532 = vrot.slane %v3531, 4
    %v3533 = vadd.f32 %v3531, %v3532
    %v3534 = vrot.slane %v3533, 2
    %v3535 = vadd.f32 %v3533, %v3534
    %v3536 = vrot.slane %v3535, 1
    %v3537 = vadd.f32 %v3535, %v3536
    %v3538 = vsel %vm193, %v3464, 0.0
    %v3539 = vrot.slane %v3538, 4
    %v3540 = vadd.f32 %v3538, %v3539
    %v3541 = vrot.slane %v3540, 2
    %v3542 = vadd.f32 %v3540, %v3541
    %v3543 = vrot.slane %v3542, 1
    %v3544 = vadd.f32 %v3542, %v3543
    %v3545 = vsel %vm193, %v3465, 0.0
    %v3546 = vrot.slane %v3545, 4
    %v3547 = vadd.f32 %v3545, %v3546
    %v3548 = vrot.slane %v3547, 2
    %v3549 = vadd.f32 %v3547, %v3548
    %v3550 = vrot.slane %v3549, 1
    %v3551 = vadd.f32 %v3549, %v3550
    %v3552 = vsel %vm193, %v3466, 0.0
    %v3553 = vrot.slane %v3552, 4
    %v3554 = vadd.f32 %v3552, %v3553
    %v3555 = vrot.slane %v3554, 2
    %v3556 = vadd.f32 %v3554, %v3555
    %v3557 = vrot.slane %v3556, 1
    %v3558 = vadd.f32 %v3556, %v3557
    %v3559 = vsel %vm193, %v3467, 0.0
    %v3560 = vrot.slane %v3559, 4
    %v3561 = vadd.f32 %v3559, %v3560
    %v3562 = vrot.slane %v3561, 2
    %v3563 = vadd.f32 %v3561, %v3562
    %v3564 = vrot.slane %v3563, 1
    %v3565 = vadd.f32 %v3563, %v3564
    %v3566 = vsel %vm193, %v3468, 0.0
    %v3567 = vrot.slane %v3566, 4
    %v3568 = vadd.f32 %v3566, %v3567
    %v3569 = vrot.slane %v3568, 2
    %v3570 = vadd.f32 %v3568, %v3569
    %v3571 = vrot.slane %v3570, 1
    %v3572 = vadd.f32 %v3570, %v3571
    %v3573 = vsel %vm193, %v3469, 0.0
    %v3574 = vrot.slane %v3573, 4
    %v3575 = vadd.f32 %v3573, %v3574
    %v3576 = vrot.slane %v3575, 2
    %v3577 = vadd.f32 %v3575, %v3576
    %v3578 = vrot.slane %v3577, 1
    %v3579 = vadd.f32 %v3577, %v3578
    %v3580 = vsel %vm193, %v3470, 0.0
    %v3581 = vrot.slane %v3580, 4
    %v3582 = vadd.f32 %v3580, %v3581
    %v3583 = vrot.slane %v3582, 2
    %v3584 = vadd.f32 %v3582, %v3583
    %v3585 = vrot.slane %v3584, 1
    %v3586 = vadd.f32 %v3584, %v3585
    %v3587 = vsel %vm193, %v3471, 0.0
    %v3588 = vrot.slane %v3587, 4
    %v3589 = vadd.f32 %v3587, %v3588
    %v3590 = vrot.slane %v3589, 2
    %v3591 = vadd.f32 %v3589, %v3590
    %v3592 = vrot.slane %v3591, 1
    %v3593 = vadd.f32 %v3591, %v3592
    %v3594 = vsel %vm193, %v3472, 0.0
    %v3595 = vrot.slane %v3594, 4
    %v3596 = vadd.f32 %v3594, %v3595
    %v3597 = vrot.slane %v3596, 2
    %v3598 = vadd.f32 %v3596, %v3597
    %v3599 = vrot.slane %v3598, 1
    %v3600 = vadd.f32 %v3598, %v3599
    %v3601 = vsel %vm193, %v3473, 0.0
    %v3602 = vrot.slane %v3601, 4
    %v3603 = vadd.f32 %v3601, %v3602
    %v3604 = vrot.slane %v3603, 2
    %v3605 = vadd.f32 %v3603, %v3604
    %v3606 = vrot.slane %v3605, 1
    %v3607 = vadd.f32 %v3605, %v3606
    %v3608 = vsel %vm193, %v3474, 0.0
    %v3609 = vrot.slane %v3608, 4
    %v3610 = vadd.f32 %v3608, %v3609
    %v3611 = vrot.slane %v3610, 2
    %v3612 = vadd.f32 %v3610, %v3611
    %v3613 = vrot.slane %v3612, 1
    %v3614 = vadd.f32 %v3612, %v3613
    %v3615 = vsel %vm193, %v3475, 0.0
    %v3616 = vrot.slane %v3615, 4
    %v3617 = vadd.f32 %v3615, %v3616
    %v3618 = vrot.slane %v3617, 2
    %v3619 = vadd.f32 %v3617, %v3618
    %v3620 = vrot.slane %v3619, 1
    %v3621 = vadd.f32 %v3619, %v3620
    %v3622 = vsel %vm193, %v3476, 0.0
    %v3623 = vrot.slane %v3622, 4
    %v3624 = vadd.f32 %v3622, %v3623
    %v3625 = vrot.slane %v3624, 2
    %v3626 = vadd.f32 %v3624, %v3625
    %v3627 = vrot.slane %v3626, 1
    %v3628 = vadd.f32 %v3626, %v3627
    %v3629 = vsel %vm193, %v3477, 0.0
    %v3630 = vrot.slane %v3629, 4
    %v3631 = vadd.f32 %v3629, %v3630
    %v3632 = vrot.slane %v3631, 2
    %v3633 = vadd.f32 %v3631, %v3632
    %v3634 = vrot.slane %v3633, 1
    %v3635 = vadd.f32 %v3633, %v3634
    %v3636 = vsel %vm193, %v3478, 0.0
    %v3637 = vrot.slane %v3636, 4
    %v3638 = vadd.f32 %v3636, %v3637
    %v3639 = vrot.slane %v3638, 2
    %v3640 = vadd.f32 %v3638, %v3639
    %v3641 = vrot.slane %v3640, 1
    %v3642 = vadd.f32 %v3640, %v3641
    %v3643 = vsel %vm193, %v3479, 0.0
    %v3644 = vrot.slane %v3643, 4
    %v3645 = vadd.f32 %v3643, %v3644
    %v3646 = vrot.slane %v3645, 2
    %v3647 = vadd.f32 %v3645, %v3646
    %v3648 = vrot.slane %v3647, 1
    %v3649 = vadd.f32 %v3647, %v3648
    %v3650 = vsel %vm193, %v3480, 0.0
    %v3651 = vrot.slane %v3650, 4
    %v3652 = vadd.f32 %v3650, %v3651
    %v3653 = vrot.slane %v3652, 2
    %v3654 = vadd.f32 %v3652, %v3653
    %v3655 = vrot.slane %v3654, 1
    %v3656 = vadd.f32 %v3654, %v3655
    %v3657 = vsel %vm193, %v3481, 0.0
    %v3658 = vrot.slane %v3657, 4
    %v3659 = vadd.f32 %v3657, %v3658
    %v3660 = vrot.slane %v3659, 2
    %v3661 = vadd.f32 %v3659, %v3660
    %v3662 = vrot.slane %v3661, 1
    %v3663 = vadd.f32 %v3661, %v3662
    %v3664 = vsel %vm193, %v3482, 0.0
    %v3665 = vrot.slane %v3664, 4
    %v3666 = vadd.f32 %v3664, %v3665
    %v3667 = vrot.slane %v3666, 2
    %v3668 = vadd.f32 %v3666, %v3667
    %v3669 = vrot.slane %v3668, 1
    %v3670 = vadd.f32 %v3668, %v3669
    %v3671 = vsel %vm193, %v3483, 0.0
    %v3672 = vrot.slane %v3671, 4
    %v3673 = vadd.f32 %v3671, %v3672
    %v3674 = vrot.slane %v3673, 2
    %v3675 = vadd.f32 %v3673, %v3674
    %v3676 = vrot.slane %v3675, 1
    %v3677 = vadd.f32 %v3675, %v3676
    %v3678 = vsel %vm193, %v3484, 0.0
    %v3679 = vrot.slane %v3678, 4
    %v3680 = vadd.f32 %v3678, %v3679
    %v3681 = vrot.slane %v3680, 2
    %v3682 = vadd.f32 %v3680, %v3681
    %v3683 = vrot.slane %v3682, 1
    %v3684 = vadd.f32 %v3682, %v3683
    %v3685 = vsel %vm193, %v3485, 0.0
    %v3686 = vrot.slane %v3685, 4
    %v3687 = vadd.f32 %v3685, %v3686
    %v3688 = vrot.slane %v3687, 2
    %v3689 = vadd.f32 %v3687, %v3688
    %v3690 = vrot.slane %v3689, 1
    %v3691 = vadd.f32 %v3689, %v3690
    %v3692 = vsel %vm193, %v3486, 0.0
    %v3693 = vrot.slane %v3692, 4
    %v3694 = vadd.f32 %v3692, %v3693
    %v3695 = vrot.slane %v3694, 2
    %v3696 = vadd.f32 %v3694, %v3695
    %v3697 = vrot.slane %v3696, 1
    %v3698 = vadd.f32 %v3696, %v3697
    %v3699 = vsel %vm193, %v3487, 0.0
    %v3700 = vrot.slane %v3699, 4
    %v3701 = vadd.f32 %v3699, %v3700
    %v3702 = vrot.slane %v3701, 2
    %v3703 = vadd.f32 %v3701, %v3702
    %v3704 = vrot.slane %v3703, 1
    %v3705 = vadd.f32 %v3703, %v3704
    %v3706 = vsel %vm193, %v3488, 0.0
    %v3707 = vrot.slane %v3706, 4
    %v3708 = vadd.f32 %v3706, %v3707
    %v3709 = vrot.slane %v3708, 2
    %v3710 = vadd.f32 %v3708, %v3709
    %v3711 = vrot.slane %v3710, 1
    %v3712 = vadd.f32 %v3710, %v3711
    %v3713 = vmax.f32 %v3239, 1e-20
    %v3714 = vmax.f32 %v3246, 1e-20
    %v3715 = vmax.f32 %v3253, 1e-20
    %v3716 = vmax.f32 %v3260, 1e-20
    %v3717 = vmax.f32 %v3267, 1e-20
    %v3718 = vmax.f32 %v3274, 1e-20
    %v3719 = vmax.f32 %v3281, 1e-20
    %v3720 = vmax.f32 %v3288, 1e-20
    %v3721 = vmax.f32 %v3295, 1e-20
    %v3722 = vmax.f32 %v3302, 1e-20
    %v3723 = vmax.f32 %v3309, 1e-20
    %v3724 = vmax.f32 %v3316, 1e-20
    %v3725 = vmax.f32 %v3323, 1e-20
    %v3726 = vmax.f32 %v3330, 1e-20
    %v3727 = vmax.f32 %v3337, 1e-20
    %v3728 = vmax.f32 %v3344, 1e-20
    %v3729 = vmax.f32 %v3351, 1e-20
    %v3730 = vmax.f32 %v3358, 1e-20
    %v3731 = vmax.f32 %v3365, 1e-20
    %v3732 = vmax.f32 %v3372, 1e-20
    %v3733 = vmax.f32 %v3379, 1e-20
    %v3734 = vmax.f32 %v3386, 1e-20
    %v3735 = vmax.f32 %v3393, 1e-20
    %v3736 = vmax.f32 %v3400, 1e-20
    %v3737 = vmax.f32 %v3407, 1e-20
    %v3738 = vmax.f32 %v3414, 1e-20
    %v3739 = vmax.f32 %v3421, 1e-20
    %v3740 = vmax.f32 %v3428, 1e-20
    %v3741 = vmax.f32 %v3435, 1e-20
    %v3742 = vmax.f32 %v3442, 1e-20
    %v3743 = vmax.f32 %v3449, 1e-20
    %v3744 = vmax.f32 %v3456, 1e-20
    %v3745 = vrcp.pop %v3713
    %v3746 = vrcp.pop %v3714
    %v3747 = vrcp.pop %v3715
    %v3748 = vrcp.pop %v3716
    %v3749 = vrcp.pop %v3717
    %v3750 = vrcp.pop %v3718
    %v3751 = vrcp.pop %v3719
    %v3752 = vrcp.pop %v3720
    %v3753 = vrcp.pop %v3721
    %v3754 = vrcp.pop %v3722
    %v3755 = vrcp.pop %v3723
    %v3756 = vrcp.pop %v3724
    %v3757 = vrcp.pop %v3725
    %v3758 = vrcp.pop %v3726
    %v3759 = vrcp.pop %v3727
    %v3760 = vrcp.pop %v3728
    %v3761 = vrcp.pop %v3729
    %v3762 = vrcp.pop %v3730
    %v3763 = vrcp.pop %v3731
    %v3764 = vrcp.pop %v3732
    %v3765 = vrcp.pop %v3733
    %v3766 = vrcp.pop %v3734
    %v3767 = vrcp.pop %v3735
    %v3768 = vrcp.pop %v3736
    %v3769 = vrcp.pop %v3737
    %v3770 = vrcp.pop %v3738
    %v3771 = vrcp.pop %v3739
    %v3772 = vrcp.pop %v3740
    %v3773 = vrcp.pop %v3741
    %v3774 = vrcp.pop %v3742
    %v3775 = vrcp.pop %v3743
    %v3776 = vrcp.pop %v3744
    %v3777 = vmul.f32 %v3495, %v3745
    %v3778 = vmul.f32 %v3502, %v3746
    %v3779 = vmul.f32 %v3509, %v3747
    %v3780 = vmul.f32 %v3516, %v3748
    %v3781 = vmul.f32 %v3523, %v3749
    %v3782 = vmul.f32 %v3530, %v3750
    %v3783 = vmul.f32 %v3537, %v3751
    %v3784 = vmul.f32 %v3544, %v3752
    %v3785 = vmul.f32 %v3551, %v3753
    %v3786 = vmul.f32 %v3558, %v3754
    %v3787 = vmul.f32 %v3565, %v3755
    %v3788 = vmul.f32 %v3572, %v3756
    %v3789 = vmul.f32 %v3579, %v3757
    %v3790 = vmul.f32 %v3586, %v3758
    %v3791 = vmul.f32 %v3593, %v3759
    %v3792 = vmul.f32 %v3600, %v3760
    %v3793 = vmul.f32 %v3607, %v3761
    %v3794 = vmul.f32 %v3614, %v3762
    %v3795 = vmul.f32 %v3621, %v3763
    %v3796 = vmul.f32 %v3628, %v3764
    %v3797 = vmul.f32 %v3635, %v3765
    %v3798 = vmul.f32 %v3642, %v3766
    %v3799 = vmul.f32 %v3649, %v3767
    %v3800 = vmul.f32 %v3656, %v3768
    %v3801 = vmul.f32 %v3663, %v3769
    %v3802 = vmul.f32 %v3670, %v3770
    %v3803 = vmul.f32 %v3677, %v3771
    %v3804 = vmul.f32 %v3684, %v3772
    %v3805 = vmul.f32 %v3691, %v3773
    %v3806 = vmul.f32 %v3698, %v3774
    %v3807 = vmul.f32 %v3705, %v3775
    %v3808 = vmul.f32 %v3712, %v3776
    %v3813 = vrot.slane %v80, 1
    %v3814 = vrot.slane %v80, 2
    %v3815 = vrot.slane %v80, 3
    %v3816 = vrot.slane %v80, 4
    %v3817 = vrot.slane %v80, 5
    %v3818 = vrot.slane %v80, 6
    %v3819 = vrot.slane %v80, 7
    %v3820 = vrot.slane %v81, 1
    %v3821 = vrot.slane %v81, 2
    %v3822 = vrot.slane %v81, 3
    %v3823 = vrot.slane %v81, 4
    %v3824 = vrot.slane %v81, 5
    %v3825 = vrot.slane %v81, 6
    %v3826 = vrot.slane %v81, 7
    %v3827 = vrot.slane %v82, 1
    %v3828 = vrot.slane %v82, 2
    %v3829 = vrot.slane %v82, 3
    %v3830 = vrot.slane %v82, 4
    %v3831 = vrot.slane %v82, 5
    %v3832 = vrot.slane %v82, 6
    %v3833 = vrot.slane %v82, 7
    %v3834 = vrot.slane %v83, 1
    %v3835 = vrot.slane %v83, 2
    %v3836 = vrot.slane %v83, 3
    %v3837 = vrot.slane %v83, 4
    %v3838 = vrot.slane %v83, 5
    %v3839 = vrot.slane %v83, 6
    %v3840 = vrot.slane %v83, 7
    %v3873 = vmul.f32 %v3777, %v80
    %v3874 = vmul.f32 %v3778, %v3813
    %v3875 = vmul.f32 %v3779, %v3814
    %v3876 = vmul.f32 %v3780, %v3815
    %v3877 = vmul.f32 %v3781, %v3816
    %v3878 = vmul.f32 %v3782, %v3817
    %v3879 = vmul.f32 %v3783, %v3818
    %v3880 = vmul.f32 %v3784, %v3819
    %v3881 = vmul.f32 %v3785, %v81
    %v3882 = vmul.f32 %v3786, %v3820
    %v3883 = vmul.f32 %v3787, %v3821
    %v3884 = vmul.f32 %v3788, %v3822
    %v3885 = vmul.f32 %v3789, %v3823
    %v3886 = vmul.f32 %v3790, %v3824
    %v3887 = vmul.f32 %v3791, %v3825
    %v3888 = vmul.f32 %v3792, %v3826
    %v3889 = vmul.f32 %v3793, %v82
    %v3890 = vmul.f32 %v3794, %v3827
    %v3891 = vmul.f32 %v3795, %v3828
    %v3892 = vmul.f32 %v3796, %v3829
    %v3893 = vmul.f32 %v3797, %v3830
    %v3894 = vmul.f32 %v3798, %v3831
    %v3895 = vmul.f32 %v3799, %v3832
    %v3896 = vmul.f32 %v3800, %v3833
    %v3897 = vmul.f32 %v3801, %v83
    %v3898 = vmul.f32 %v3802, %v3834
    %v3899 = vmul.f32 %v3803, %v3835
    %v3900 = vmul.f32 %v3804, %v3836
    %v3901 = vmul.f32 %v3805, %v3837
    %v3902 = vmul.f32 %v3806, %v3838
    %v3903 = vmul.f32 %v3807, %v3839
    %v3904 = vmul.f32 %v3808, %v3840
    %v3937 = vrot.slane %v3874, 7
    %vm3938 = vcmask 1041409
    %v3939 = vsel %vm3938, %v3937, %v3873
    %v3940 = vrot.slane %v3875, 6
    %vm3941 = vcmask 1042434
    %v3942 = vsel %vm3941, %v3940, %v3939
    %v3943 = vrot.slane %v3876, 5
    %vm3944 = vcmask 1043459
    %v3945 = vsel %vm3944, %v3943, %v3942
    %v3946 = vrot.slane %v3877, 4
    %vm3947 = vcmask 1044484
    %v3948 = vsel %vm3947, %v3946, %v3945
    %v3949 = vrot.slane %v3878, 3
    %vm3950 = vcmask 1045509
    %v3951 = vsel %vm3950, %v3949, %v3948
    %v3952 = vrot.slane %v3879, 2
    %vm3953 = vcmask 1046534
    %v3954 = vsel %vm3953, %v3952, %v3951
    %v3955 = vrot.slane %v3880, 1
    %vm3956 = vcmask 1047559
    %v3957 = vsel %vm3956, %v3955, %v3954
    %v3958 = vrot.slane %v3882, 7
    %v3959 = vsel %vm3938, %v3958, %v3881
    %v3960 = vrot.slane %v3883, 6
    %v3961 = vsel %vm3941, %v3960, %v3959
    %v3962 = vrot.slane %v3884, 5
    %v3963 = vsel %vm3944, %v3962, %v3961
    %v3964 = vrot.slane %v3885, 4
    %v3965 = vsel %vm3947, %v3964, %v3963
    %v3966 = vrot.slane %v3886, 3
    %v3967 = vsel %vm3950, %v3966, %v3965
    %v3968 = vrot.slane %v3887, 2
    %v3969 = vsel %vm3953, %v3968, %v3967
    %v3970 = vrot.slane %v3888, 1
    %v3971 = vsel %vm3956, %v3970, %v3969
    %v3972 = vrot.slane %v3890, 7
    %v3973 = vsel %vm3938, %v3972, %v3889
    %v3974 = vrot.slane %v3891, 6
    %v3975 = vsel %vm3941, %v3974, %v3973
    %v3976 = vrot.slane %v3892, 5
    %v3977 = vsel %vm3944, %v3976, %v3975
    %v3978 = vrot.slane %v3893, 4
    %v3979 = vsel %vm3947, %v3978, %v3977
    %v3980 = vrot.slane %v3894, 3
    %v3981 = vsel %vm3950, %v3980, %v3979
    %v3982 = vrot.slane %v3895, 2
    %v3983 = vsel %vm3953, %v3982, %v3981
    %v3984 = vrot.slane %v3896, 1
    %v3985 = vsel %vm3956, %v3984, %v3983
    %v3986 = vrot.slane %v3898, 7
    %v3987 = vsel %vm3938, %v3986, %v3897
    %v3988 = vrot.slane %v3899, 6
    %v3989 = vsel %vm3941, %v3988, %v3987
    %v3990 = vrot.slane %v3900, 5
    %v3991 = vsel %vm3944, %v3990, %v3989
    %v3992 = vrot.slane %v3901, 4
    %v3993 = vsel %vm3947, %v3992, %v3991
    %v3994 = vrot.slane %v3902, 3
    %v3995 = vsel %vm3950, %v3994, %v3993
    %v3996 = vrot.slane %v3903, 2
    %v3997 = vsel %vm3953, %v3996, %v3995
    %v3998 = vrot.slane %v3904, 1
    %v3999 = vsel %vm3956, %v3998, %v3997
    %v4004 = vadd.f32 %v96, %v3957
    %v4005 = vadd.f32 %v97, %v3971
    %v4006 = vadd.f32 %v98, %v3985
    %v4007 = vadd.f32 %v99, %v3999
    %v4009 = vlaneseq
    %v4010 = vshrl.u32 %v4009, 7
    %v4011 = vsub.s32 0, %v4010
    %v4012 = vrot.slane %v181, %v4011
    %v4015 = vsel %vm193, %v4004, 0
    %v4018 = vsel %vm193, %v4005, 0
    %v4021 = vsel %vm193, %v4006, 0
    %v4024 = vsel %vm193, %v4007, 0
    %4026 = vmatprep.subr.mxu0 0.0
    %4027 = vmatpush1.msra.mxu0 0.0
    %4028 = vmatprep.subr.mxu0 0.0
    %4029 = vmatpush1.msra.mxu0 0.0
    %4030 = vmatprep.subr.mxu0 0.0
    %4031 = vmatpush1.msra.mxu0 0.0
    %4032 = vmatprep.subr.mxu0 0.0
    %4033 = vmatpush1.msra.mxu0 0.0
    %4034 = vmatprep.subr.mxu0 0.0
    %4035 = vmatpush1.msra.mxu0 0.0
    %4036 = vmatprep.subr.mxu0 0.0
    %4037 = vmatpush1.msra.mxu0 0.0
    %4038 = vmatprep.subr.mxu0 0.0
    %4039 = vmatpush1.msra.mxu0 0.0
    %4040 = vmatprep.subr.mxu0 0.0
    %4041 = vmatpush1.msra.mxu0 0.0
    %4042 = vmatprep.subr.mxu0 0.0
    %4043 = vmatpush1.msra.mxu0 0.0
    %4044 = vmatprep.subr.mxu0 0.0
    %4045 = vmatpush1.msra.mxu0 0.0
    %4046 = vmatprep.subr.mxu0 0.0
    %4047 = vmatpush1.msra.mxu0 0.0
    %4048 = vmatprep.subr.mxu0 0.0
    %4049 = vmatpush1.msra.mxu0 0.0
    %4050 = vmatprep.subr.mxu0 0.0
    %4051 = vmatpush1.msra.mxu0 %v180
    %4052 = vmatprep.subr.mxu0 0.0
    %4053 = vmatpush1.msra.mxu0 %v179
    %4054 = vmatprep.subr.mxu0 0.0
    %4055 = vmatpush1.msra.mxu0 %v178
    %4056 = vmatprep.subr.mxu0 0.0
    %4057 = vmatpush1.msra.mxu0 %v177
    %4058 = vmatprep.subr.mxu0 0.0
    %4059 = vmatpush2.msra.mxu0 0.0
    %4060 = vmatprep.subr.mxu0 0.0
    %4061 = vmatpush2.msra.mxu0 0.0
    %4062 = vmatprep.subr.mxu0 0.0
    %4063 = vmatpush2.msra.mxu0 0.0
    %4064 = vmatprep.subr.mxu0 0.0
    %4065 = vmatpush2.msra.mxu0 0.0
    %4066 = vmatprep.subr.mxu0 0.0
    %4067 = vmatpush2.msra.mxu0 0.0
    %4068 = vmatprep.subr.mxu0 0.0
    %4069 = vmatpush2.msra.mxu0 0.0
    %4070 = vmatprep.subr.mxu0 0.0
    %4071 = vmatpush2.msra.mxu0 0.0
    %4072 = vmatprep.subr.mxu0 0.0
    %4073 = vmatpush2.msra.mxu0 0.0
    %4074 = vmatprep.subr.mxu0 0.0
    %4075 = vmatpush2.msra.mxu0 0.0
    %4076 = vmatprep.subr.mxu0 0.0
    %4077 = vmatpush2.msra.mxu0 0.0
    %4078 = vmatprep.subr.mxu0 0.0
    %4079 = vmatpush2.msra.mxu0 0.0
    %4080 = vmatprep.subr.mxu0 0.0
    %4081 = vmatpush2.msra.mxu0 0.0
    %4082 = vmatprep.subr.mxu0 0.0
    %4083 = vmatpush2.msra.mxu0 0.0
    %4084 = vmatprep.subr.mxu0 0.0
    %4085 = vmatpush2.msra.mxu0 0.0
    %4086 = vmatprep.subr.mxu0 0.0
    %4087 = vmatpush2.msra.mxu0 0.0
    %4088 = vmatprep.subr.mxu0 0.0
    %4089 = vmatpush2.msra.mxu0 0.0
    %4090 = vmatprep.mubr.f32.mxu0 0.0
    %4091 = vmatmul.mubr.f32.gmra.mxu0 %v4015
    %v4092 = vpop.f32.mrf.mxu0
    %v4093 = vadd.f32 %v4012, %v4092
    %v4094 = vpop.f32.mrf.mxu0
    %4095 = vmatprep.mubr.f32.mxu0 0.0
    %4096 = vmatmul.mubr.f32.gmra.mxu0 %v4018
    %v4097 = vpop.f32.mrf.mxu0
    %v4098 = vadd.f32 %v4012, %v4097
    %v4099 = vpop.f32.mrf.mxu0
    %4100 = vmatprep.mubr.f32.mxu0 0.0
    %4101 = vmatmul.mubr.f32.gmra.mxu0 %v4021
    %v4102 = vpop.f32.mrf.mxu0
    %v4103 = vadd.f32 %v4012, %v4102
    %v4104 = vpop.f32.mrf.mxu0
    %4105 = vmatprep.mubr.f32.mxu0 0.0
    %4106 = vmatmul.mubr.f32.gmra.mxu0 %v4024
    %v4107 = vpop.f32.mrf.mxu0
    %v4108 = vadd.f32 %v4012, %v4107
    %v4109 = vpop.f32.mrf.mxu0
    %4110 = vdwg.mxu0
    %v4111 = vmax.f32 %v4093, 0.0
    %v4112 = vmax.f32 %v4098, 0.0
    %v4113 = vmax.f32 %v4103, 0.0
    %v4114 = vmax.f32 %v4108, 0.0
    %v4116 = vlaneseq
    %v4117 = vshrl.u32 %v4116, 7
    %v4118 = vsub.s32 0, %v4117
    %v4119 = vrot.slane %v186, %v4118
    %v4122 = vsel %vm193, %v4111, 0
    %v4125 = vsel %vm193, %v4112, 0
    %v4128 = vsel %vm193, %v4113, 0
    %v4131 = vsel %vm193, %v4114, 0
    %4133 = vmatprep.subr.mxu0 0.0
    %4134 = vmatpush1.msra.mxu0 0.0
    %4135 = vmatprep.subr.mxu0 0.0
    %4136 = vmatpush1.msra.mxu0 0.0
    %4137 = vmatprep.subr.mxu0 0.0
    %4138 = vmatpush1.msra.mxu0 0.0
    %4139 = vmatprep.subr.mxu0 0.0
    %4140 = vmatpush1.msra.mxu0 0.0
    %4141 = vmatprep.subr.mxu0 0.0
    %4142 = vmatpush1.msra.mxu0 0.0
    %4143 = vmatprep.subr.mxu0 0.0
    %4144 = vmatpush1.msra.mxu0 0.0
    %4145 = vmatprep.subr.mxu0 0.0
    %4146 = vmatpush1.msra.mxu0 0.0
    %4147 = vmatprep.subr.mxu0 0.0
    %4148 = vmatpush1.msra.mxu0 0.0
    %4149 = vmatprep.subr.mxu0 0.0
    %4150 = vmatpush1.msra.mxu0 0.0
    %4151 = vmatprep.subr.mxu0 0.0
    %4152 = vmatpush1.msra.mxu0 0.0
    %4153 = vmatprep.subr.mxu0 0.0
    %4154 = vmatpush1.msra.mxu0 0.0
    %4155 = vmatprep.subr.mxu0 0.0
    %4156 = vmatpush1.msra.mxu0 0.0
    %4157 = vmatprep.subr.mxu0 0.0
    %4158 = vmatpush1.msra.mxu0 %v185
    %4159 = vmatprep.subr.mxu0 0.0
    %4160 = vmatpush1.msra.mxu0 %v184
    %4161 = vmatprep.subr.mxu0 0.0
    %4162 = vmatpush1.msra.mxu0 %v183
    %4163 = vmatprep.subr.mxu0 0.0
    %4164 = vmatpush1.msra.mxu0 %v182
    %4165 = vmatprep.subr.mxu0 0.0
    %4166 = vmatpush2.msra.mxu0 0.0
    %4167 = vmatprep.subr.mxu0 0.0
    %4168 = vmatpush2.msra.mxu0 0.0
    %4169 = vmatprep.subr.mxu0 0.0
    %4170 = vmatpush2.msra.mxu0 0.0
    %4171 = vmatprep.subr.mxu0 0.0
    %4172 = vmatpush2.msra.mxu0 0.0
    %4173 = vmatprep.subr.mxu0 0.0
    %4174 = vmatpush2.msra.mxu0 0.0
    %4175 = vmatprep.subr.mxu0 0.0
    %4176 = vmatpush2.msra.mxu0 0.0
    %4177 = vmatprep.subr.mxu0 0.0
    %4178 = vmatpush2.msra.mxu0 0.0
    %4179 = vmatprep.subr.mxu0 0.0
    %4180 = vmatpush2.msra.mxu0 0.0
    %4181 = vmatprep.subr.mxu0 0.0
    %4182 = vmatpush2.msra.mxu0 0.0
    %4183 = vmatprep.subr.mxu0 0.0
    %4184 = vmatpush2.msra.mxu0 0.0
    %4185 = vmatprep.subr.mxu0 0.0
    %4186 = vmatpush2.msra.mxu0 0.0
    %4187 = vmatprep.subr.mxu0 0.0
    %4188 = vmatpush2.msra.mxu0 0.0
    %4189 = vmatprep.subr.mxu0 0.0
    %4190 = vmatpush2.msra.mxu0 0.0
    %4191 = vmatprep.subr.mxu0 0.0
    %4192 = vmatpush2.msra.mxu0 0.0
    %4193 = vmatprep.subr.mxu0 0.0
    %4194 = vmatpush2.msra.mxu0 0.0
    %4195 = vmatprep.subr.mxu0 0.0
    %4196 = vmatpush2.msra.mxu0 0.0
    %4197 = vmatprep.mubr.f32.mxu0 0.0
    %4198 = vmatmul.mubr.f32.gmra.mxu0 %v4122
    %v4199 = vpop.f32.mrf.mxu0
    %v4200 = vadd.f32 %v4119, %v4199
    %v4201 = vpop.f32.mrf.mxu0
    %4202 = vmatprep.mubr.f32.mxu0 0.0
    %4203 = vmatmul.mubr.f32.gmra.mxu0 %v4125
    %v4204 = vpop.f32.mrf.mxu0
    %v4205 = vadd.f32 %v4119, %v4204
    %v4206 = vpop.f32.mrf.mxu0
    %4207 = vmatprep.mubr.f32.mxu0 0.0
    %4208 = vmatmul.mubr.f32.gmra.mxu0 %v4128
    %v4209 = vpop.f32.mrf.mxu0
    %v4210 = vadd.f32 %v4119, %v4209
    %v4211 = vpop.f32.mrf.mxu0
    %4212 = vmatprep.mubr.f32.mxu0 0.0
    %4213 = vmatmul.mubr.f32.gmra.mxu0 %v4131
    %v4214 = vpop.f32.mrf.mxu0
    %v4215 = vadd.f32 %v4119, %v4214
    %v4216 = vpop.f32.mrf.mxu0
    %4217 = vdwg.mxu0
    %v4218 = vmax.f32 %v4200, 0.0
    %v4219 = vmax.f32 %v4205, 0.0
    %v4220 = vmax.f32 %v4210, 0.0
    %v4221 = vmax.f32 %v4215, 0.0
    %v4222 = vadd.f32 %v4004, %v4218
    %v4223 = vadd.f32 %v4005, %v4219
    %v4224 = vadd.f32 %v4006, %v4220
    %v4225 = vadd.f32 %v4007, %v4221
    %4226 = vst.msk [vmem:[#allocation4] sm:$0xff] %vm193, %v4222
    %4227 = vst.msk [vmem:[#allocation4 + $0x8] sm:$0xff] %vm193, %v4223
    %4228 = vst.msk [vmem:[#allocation4 + $0x10] sm:$0xff] %vm193, %v4224
    %4229 = vst.msk [vmem:[#allocation4 + $0x18] sm:$0xff] %vm193, %v4225
    // Predicated region
    $region62: #{modified_specformer_forward.1} parent=1 // pred_check
      _
    $region63: #{modified_specformer_forward.1} parent=1 // pred_check_branch
      %4231 = sbr.rel (0) target = $region65
    $region64: #{modified_specformer_forward.1} parent=1 // pred_region
      %s4233 = ssub.s32 512, 512
      %4234 = vsyncadd [#allocation5], %s4233
      %s4235 = sshll.u32 [#allocation4], 4
      %s4236 = int_to_ptr.vmem [resolvable:$true] %s4235
      %4241 = dma.vmem_to_hbm [thread:$0]  %s4236, 512, %s16, [#allocation5], 128, 128, 8
    $region65: #{modified_specformer_forward.1} parent=1 // pred_fallthru
      _
    // Predicated region
    $region66: #{modified_specformer_forward.1} parent=1 // pred_check
      _
    $region67: #{modified_specformer_forward.1} parent=1 // pred_check_branch
      %4243 = sbr.rel (0) target = $region69
    $region68: #{modified_specformer_forward.1} parent=1 // pred_region
      %4244 = dma.done [#allocation5], 512
    $region69: #{modified_specformer_forward.1} parent=1 // pred_fallthru
      _
    %4245 = vsyncpa [#allocation5], 1

</llo_original>
